<compile_context>
chip_gen: v7x
topology: tpu7x:2x2x1
jax: 0.10.0
libtpu: 0.0.40
codegen_flags: <defaults>
</compile_context>

<pallas_src>
import jax
import jax.numpy as jnp
from jax.experimental import pallas as pl
from jax.experimental.pallas import tpu as pltpu


def _clsfcn_kernel(x_ref, wf_ref, bf_ref, wc_ref, bc_ref, o_ref, pooled_ref):
    # x_ref     : (tb, Cin, t_hw)   f32  -- NCHW slab, HW on the lane axis
    # wf_ref    : (Cfeat, Cin)      f32  -- stand-in 1x1-conv weight (transposed)
    # bf_ref    : (Cfeat, 1)        f32
    # wc_ref    : (Cfeat, Cout_pad) f32  -- fc weight, pre-scaled by 1/HW, lane-padded
    # bc_ref    : (1, Cout_pad)     f32  -- fc bias, lane-padded
    # o_ref     : (1, tb, Cout_pad) f32
    # pooled_ref: (tb, Cfeat)       f32 scratch -- sum-pool accumulator over HW tiles
    h = pl.program_id(1)

    @pl.when(h == 0)
    def _():
        pooled_ref[...] = jnp.zeros_like(pooled_ref)

    x = x_ref[...]
    wf = wf_ref[...]
    bf = bf_ref[...]
    cin = x.shape[1]

    # Stand-in feature extractor (1x1 conv + ReLU).  Cin is tiny, so do it as
    # Cin broadcast multiply-adds on the VPU (HW lane-dense) instead of a
    # K=Cin MXU matmul.  f32 throughout (pooled accumulation must be f32; on
    # v6e/v7x the feat intermediate could be bf16 to halve vreg traffic).
    acc = x[:, 0:1, :] * wf[:, 0:1][None]                    # (tb, Cfeat, t_hw)
    for c in range(1, cin):
        acc = acc + x[:, c:c + 1, :] * wf[:, c:c + 1][None]
    feat = jnp.maximum(acc + bf[None], 0.0)                  # bias + ReLU

    # Partial sum-pool over this HW tile == x.mean(3).mean(2) up to the 1/HW
    # factor, which is folded into wc in the wrapper.  Single lane reduction.
    pooled_ref[...] += jnp.sum(feat, axis=-1)                # (tb, Cfeat)

    @pl.when(h == pl.num_programs(1) - 1)
    def _():
        cls = jnp.dot(pooled_ref[...], wc_ref[...],
                      preferred_element_type=jnp.float32) + bc_ref[...]
        o_ref[...] = cls[None].astype(o_ref.dtype)           # (1, tb, Cout_pad)


def clsfcn_forward(x_nchw, w_feat, b_feat, w_fc, b_fc, *, tb=4, t_hw=128):
    """x_nchw: (N, Cin, H, W) float32. Returns (N, c_output) float32."""
    N, Cin, H, W = x_nchw.shape
    HW = H * W
    Cfeat = w_feat.shape[1]
    Cout = w_fc.shape[1]
    Cout_pad = ((Cout + 127) // 128) * 128                   # lane-dense output

    # Batch tile: a divisor of N (no HBM zero-pad concat of x).  Default tb=4
    # gives >=4 grid steps for v7x's two TCs to pipeline; single-TC v5e/v6e
    # can pass larger tb.
    tb = max(1, min(tb, N))
    while N % tb:
        tb -= 1
    n_b = N // tb
    # TODO(synk): for ragged N with no good divisor, mask the tail tile
    # instead of shrinking tb.

    # HW tile: a lane-dense (multiple of 128) divisor of HW, else full HW.
    if t_hw is None or HW % t_hw or (t_hw % 128 and t_hw != HW):
        t_hw = HW
    n_h = HW // t_hw

    # x stays in NCHW layout: (N, Cin, H, W) -> (N, Cin, HW) is a free,
    # contiguous reshape; no transpose, no bf16 copy, no pad -> one HBM read.
    x2 = x_nchw.reshape(N, Cin, HW).astype(jnp.float32)

    # Tiny one-time weight prep (not per-element x traffic).
    wf = jnp.asarray(w_feat, jnp.float32).T                  # (Cfeat, Cin)
    bf = jnp.asarray(b_feat, jnp.float32).reshape(Cfeat, 1)
    wc = jnp.asarray(w_fc, jnp.float32) / HW                 # fold mean's 1/HW
    wc = jnp.pad(wc, ((0, 0), (0, Cout_pad - Cout)))
    bc = jnp.pad(jnp.asarray(b_fc, jnp.float32).reshape(1, Cout),
                 ((0, 0), (0, Cout_pad - Cout)))

    flops = 2 * N * HW * Cin * Cfeat + 2 * N * Cfeat * Cout_pad
    bytes_accessed = (x2.size * 4
                      + (wf.size + bf.size + wc.size + bc.size) * 4
                      + n_b * tb * Cout_pad * 4)

    def call(single_buffer_weights):
        const_kwargs = {}
        if single_buffer_weights:
            # Constant index_map -> fetched once; single buffer saves VMEM
            # (matters at real densenet169 widths against v7x's 64 MiB VMEM).
            const_kwargs["pipeline_mode"] = pl.Buffered(1)
        in_specs = [
            pl.BlockSpec((tb, Cin, t_hw), lambda n, h: (n, 0, h)),
            pl.BlockSpec((Cfeat, Cin), lambda n, h: (0, 0), **const_kwargs),
            pl.BlockSpec((Cfeat, 1), lambda n, h: (0, 0), **const_kwargs),
            pl.BlockSpec((Cfeat, Cout_pad), lambda n, h: (0, 0), **const_kwargs),
            pl.BlockSpec((1, Cout_pad), lambda n, h: (0, 0), **const_kwargs),
        ]
        return pl.pallas_call(
            _clsfcn_kernel,
            out_shape=jax.ShapeDtypeStruct((n_b, tb, Cout_pad), jnp.float32),
            grid_spec=pltpu.PrefetchScalarGridSpec(
                num_scalar_prefetch=0,
                grid=(n_b, n_h),                              # reduction axis last
                in_specs=in_specs,
                out_specs=pl.BlockSpec((1, tb, Cout_pad), lambda n, h: (n, 0, 0)),
                scratch_shapes=[pltpu.VMEM((tb, Cfeat), jnp.float32)],
            ),
            compiler_params=pltpu.CompilerParams(
                dimension_semantics=("parallel", "arbitrary"),
                vmem_limit_bytes=32 * 1024 * 1024),
            cost_estimate=pl.CostEstimate(
                flops=flops, transcendentals=0, bytes_accessed=bytes_accessed),
        )(x2, wf, bf, wc, bc)

    try:
        out = call(single_buffer_weights=True)
    except Exception:
        # Fallback for jax builds whose pallas_call pipeline does not accept
        # pipeline_mode=pl.Buffered(1); correctness is unaffected.
        out = call(single_buffer_weights=False)

    return out.reshape(N, Cout_pad)[:, :Cout]


def _reference(x_nchw, w_feat, b_feat, w_fc, b_fc):
    # Plain-JAX f32 reference (the kernel now computes the feature stand-in,
    # pooling and classifier entirely in f32).
    xt = jnp.transpose(x_nchw, (0, 2, 3, 1)).astype(jnp.float32)   # (N,H,W,Cin)
    feat = jnp.maximum(jnp.einsum("nhwc,cd->nhwd", xt, w_feat) + b_feat, 0.0)
    pooled = feat.mean(axis=(1, 2))                                 # == mean(3).mean(2)
    return pooled @ w_fc + b_fc


if __name__ == "__main__":
    # Small synthetic shapes: batch=16 (tb=4 -> 4 parallel grid steps),
    # in-channels=4, spatial=16x16 (HW=256, t_hw=128 -> 2 reduction steps),
    # stand-in feature width=128 (densenet169 would be 1664), c_output=20.
    N, Cin, H, W = 16, 4, 16, 16
    Cfeat, Cout = 128, 20

    key = jax.random.PRNGKey(0)
    kx, kwf, kbf, kwc, kbc = jax.random.split(key, 5)

    x = jax.random.normal(kx, (N, Cin, H, W), dtype=jnp.float32)
    w_feat = jax.random.normal(kwf, (Cin, Cfeat), dtype=jnp.float32) * 0.1
    b_feat = jax.random.normal(kbf, (Cfeat,), dtype=jnp.float32) * 0.1
    w_fc = jax.random.normal(kwc, (Cfeat, Cout), dtype=jnp.float32) * 0.1  # nn.Linear weight (transposed)
    b_fc = jax.random.normal(kbc, (Cout,), dtype=jnp.float32) * 0.1

    out = clsfcn_forward(x, w_feat, b_feat, w_fc, b_fc, tb=4, t_hw=128)
    out = jax.block_until_ready(out)

    ref = _reference(x, w_feat, b_feat, w_fc, b_fc)
    assert out.shape == (N, Cout)
    err = float(jnp.max(jnp.abs(out - ref)))
    assert jnp.allclose(out, ref, atol=1e-3, rtol=1e-3), err

    print("KERNEL_OK")
</pallas_src>

<mosaic_0001>
module attributes {stable_mosaic.version = 11 : i64} {
  func.func @_clsfcn_kernel(%arg0: i32, %arg1: i32, %arg2: memref<4x4x128xf32, #tpu.memory_space<vmem>>, %arg3: memref<128x4xf32, #tpu.memory_space<vmem>>, %arg4: memref<128x1xf32, #tpu.memory_space<vmem>>, %arg5: memref<128x128xf32, #tpu.memory_space<vmem>>, %arg6: memref<1x128xf32, #tpu.memory_space<vmem>>, %arg7: memref<1x4x128xf32, #tpu.memory_space<vmem>>, %arg8: memref<4x128xf32, #tpu.memory_space<vmem>>) attributes {dimension_semantics = [#tpu.dimension_semantics<parallel>, #tpu.dimension_semantics<arbitrary>], iteration_bounds = array<i64: 4, 2>, scalar_prefetch = 0 : i64, scratch_operands = 1 : i64, tpu.core_type = #tpu.core_type<tc>, window_params = [{transform_indices = @transform_0, window_bounds = array<i64: 4, 4, 128>}, {pipeline_mode = #tpu.pipeline_mode<synchronous>, transform_indices = @transform_1, window_bounds = array<i64: 128, 4>}, {pipeline_mode = #tpu.pipeline_mode<synchronous>, transform_indices = @transform_2, window_bounds = array<i64: 128, 1>}, {pipeline_mode = #tpu.pipeline_mode<synchronous>, transform_indices = @transform_3, window_bounds = array<i64: 128, 128>}, {pipeline_mode = #tpu.pipeline_mode<synchronous>, transform_indices = @transform_4, window_bounds = array<i64: 1, 128>}, {transform_indices = @transform_5, window_bounds = array<i64: 1, 4, 128>}]} {
    %c0_i32 = arith.constant 0 : i32
    %0 = arith.cmpi eq, %arg1, %c0_i32 : i32
    %1 = arith.extui %0 : i1 to i32
    %c0_i32_0 = arith.constant 0 : i32
    %2 = arith.cmpi ne, %1, %c0_i32_0 : i32
    scf.if %2 {
      %cst_13 = arith.constant 0.000000e+00 : f32
      %45 = vector.broadcast %cst_13 : f32 to vector<4x128xf32>
      %c0_14 = arith.constant 0 : index
      %c0_15 = arith.constant 0 : index
      %46 = vector.load %arg8[%c0_14, %c0_15] : memref<4x128xf32, #tpu.memory_space<vmem>>, vector<4x128xf32>
      tpu.vector_store %arg8[%c0_14, %c0_15], %45 {strides = array<i32>} : memref<4x128xf32, #tpu.memory_space<vmem>>, vector<4x128xf32>,
    } else {
    }
    %c0 = arith.constant 0 : index
    %c0_1 = arith.constant 0 : index
    %c0_2 = arith.constant 0 : index
    %3 = vector.load %arg2[%c0, %c0_1, %c0_2] : memref<4x4x128xf32, #tpu.memory_space<vmem>>, vector<4x4x128xf32>
    %c0_3 = arith.constant 0 : index
    %c0_4 = arith.constant 0 : index
    %4 = vector.load %arg3[%c0_3, %c0_4] : memref<128x4xf32, #tpu.memory_space<vmem>>, vector<128x4xf32>
    %c0_5 = arith.constant 0 : index
    %c0_6 = arith.constant 0 : index
    %5 = vector.load %arg4[%c0_5, %c0_6] : memref<128x1xf32, #tpu.memory_space<vmem>>, vector<128x1xf32>
    %6 = vector.extract_strided_slice %3 {offsets = [0, 0, 0], sizes = [4, 1, 128], strides = [1, 1, 1]} : vector<4x4x128xf32> to vector<4x1x128xf32>
    %7 = vector.extract_strided_slice %4 {offsets = [0, 0], sizes = [128, 1], strides = [1, 1]} : vector<128x4xf32> to vector<128x1xf32>
    %8 = vector.shape_cast %7 : vector<128x1xf32> to vector<1x128x1xf32>
    %9 = vector.broadcast %6 : vector<4x1x128xf32> to vector<4x128x128xf32>
    %10 = vector.broadcast %8 : vector<1x128x1xf32> to vector<4x128x128xf32>
    %11 = arith.mulf %9, %10 : vector<4x128x128xf32>
    %12 = vector.extract_strided_slice %3 {offsets = [0, 1, 0], sizes = [4, 1, 128], strides = [1, 1, 1]} : vector<4x4x128xf32> to vector<4x1x128xf32>
    %13 = vector.extract_strided_slice %4 {offsets = [0, 1], sizes = [128, 1], strides = [1, 1]} : vector<128x4xf32> to vector<128x1xf32>
    %14 = vector.shape_cast %13 : vector<128x1xf32> to vector<1x128x1xf32>
    %15 = vector.broadcast %12 : vector<4x1x128xf32> to vector<4x128x128xf32>
    %16 = vector.broadcast %14 : vector<1x128x1xf32> to vector<4x128x128xf32>
    %17 = arith.mulf %15, %16 : vector<4x128x128xf32>
    %18 = arith.addf %11, %17 : vector<4x128x128xf32>
    %19 = vector.extract_strided_slice %3 {offsets = [0, 2, 0], sizes = [4, 1, 128], strides = [1, 1, 1]} : vector<4x4x128xf32> to vector<4x1x128xf32>
    %20 = vector.extract_strided_slice %4 {offsets = [0, 2], sizes = [128, 1], strides = [1, 1]} : vector<128x4xf32> to vector<128x1xf32>
    %21 = vector.shape_cast %20 : vector<128x1xf32> to vector<1x128x1xf32>
    %22 = vector.broadcast %19 : vector<4x1x128xf32> to vector<4x128x128xf32>
    %23 = vector.broadcast %21 : vector<1x128x1xf32> to vector<4x128x128xf32>
    %24 = arith.mulf %22, %23 : vector<4x128x128xf32>
    %25 = arith.addf %18, %24 : vector<4x128x128xf32>
    %26 = vector.extract_strided_slice %3 {offsets = [0, 3, 0], sizes = [4, 1, 128], strides = [1, 1, 1]} : vector<4x4x128xf32> to vector<4x1x128xf32>
    %27 = vector.extract_strided_slice %4 {offsets = [0, 3], sizes = [128, 1], strides = [1, 1]} : vector<128x4xf32> to vector<128x1xf32>
    %28 = vector.shape_cast %27 : vector<128x1xf32> to vector<1x128x1xf32>
    %29 = vector.broadcast %26 : vector<4x1x128xf32> to vector<4x128x128xf32>
    %30 = vector.broadcast %28 : vector<1x128x1xf32> to vector<4x128x128xf32>
    %31 = arith.mulf %29, %30 : vector<4x128x128xf32>
    %32 = arith.addf %25, %31 : vector<4x128x128xf32>
    %33 = vector.shape_cast %5 : vector<128x1xf32> to vector<1x128x1xf32>
    %34 = vector.broadcast %33 : vector<1x128x1xf32> to vector<4x128x128xf32>
    %35 = arith.addf %32, %34 : vector<4x128x128xf32>
    %cst = arith.constant 0.000000e+00 : f32
    %36 = vector.broadcast %cst : f32 to vector<4x128x128xf32>
    %37 = arith.maximumf %35, %36 : vector<4x128x128xf32>
    %c0_7 = arith.constant 0 : index
    %c0_8 = arith.constant 0 : index
    %38 = vector.load %arg8[%c0_7, %c0_8] : memref<4x128xf32, #tpu.memory_space<vmem>>, vector<4x128xf32>
    %cst_9 = arith.constant dense<0.000000e+00> : vector<4x128xf32>
    %39 = vector.multi_reduction <add>, %37, %cst_9 [2] : vector<4x128x128xf32> to vector<4x128xf32>
    %40 = arith.addf %38, %39 : vector<4x128xf32>
    %c0_10 = arith.constant 0 : index
    %c0_11 = arith.constant 0 : index
    %41 = vector.load %arg8[%c0_10, %c0_11] : memref<4x128xf32, #tpu.memory_space<vmem>>, vector<4x128xf32>
    tpu.vector_store %arg8[%c0_10, %c0_11], %40 {strides = array<i32>} : memref<4x128xf32, #tpu.memory_space<vmem>>, vector<4x128xf32>,
    %c1_i32 = arith.constant 1 : i32
    %42 = arith.cmpi eq, %arg1, %c1_i32 : i32
    %43 = arith.extui %42 : i1 to i32
    %c0_i32_12 = arith.constant 0 : i32
    %44 = arith.cmpi ne, %43, %c0_i32_12 : i32
    scf.if %44 {
      %c0_13 = arith.constant 0 : index
      %c0_14 = arith.constant 0 : index
      %45 = vector.load %arg8[%c0_13, %c0_14] : memref<4x128xf32, #tpu.memory_space<vmem>>, vector<4x128xf32>
      %c0_15 = arith.constant 0 : index
      %c0_16 = arith.constant 0 : index
      %46 = vector.load %arg5[%c0_15, %c0_16] : memref<128x128xf32, #tpu.memory_space<vmem>>, vector<128x128xf32>
      %cst_17 = arith.constant dense<0.000000e+00> : vector<4x128xf32>
      %47 = tpu.matmul %45, %46, %cst_17 {dimension_numbers = #tpu.dot_dimension_numbers<[1], [0], [0], [1], [0, 0, 1, 1], [], []>} : vector<4x128xf32>, vector<128x128xf32>, vector<4x128xf32> -> vector<4x128xf32>
      %c0_18 = arith.constant 0 : index
      %c0_19 = arith.constant 0 : index
      %48 = vector.load %arg6[%c0_18, %c0_19] : memref<1x128xf32, #tpu.memory_space<vmem>>, vector<1x128xf32>
      %49 = vector.broadcast %48 : vector<1x128xf32> to vector<4x128xf32>
      %50 = arith.addf %47, %49 : vector<4x128xf32>
      %51 = vector.shape_cast %50 : vector<4x128xf32> to vector<1x4x128xf32>
      %c0_20 = arith.constant 0 : index
      %c0_21 = arith.constant 0 : index
      %c0_22 = arith.constant 0 : index
      %52 = vector.load %arg7[%c0_20, %c0_21, %c0_22] : memref<1x4x128xf32, #tpu.memory_space<vmem>>, vector<1x4x128xf32>
      tpu.vector_store %arg7[%c0_20, %c0_21, %c0_22], %51 {strides = array<i32>} : memref<1x4x128xf32, #tpu.memory_space<vmem>>, vector<1x4x128xf32>,
    } else {
    }
    return
  }
  func.func @transform_0(%arg0: i32, %arg1: i32) -> (i32, i32, i32) {
    %c0_i32 = arith.constant 0 : i32
    %c0_i32_0 = arith.constant 0 : i32
    return %arg0, %c0_i32, %arg1 : i32, i32, i32
  }
  func.func @transform_1(%arg0: i32, %arg1: i32) -> (i32, i32) {
    %c0_i32 = arith.constant 0 : i32
    %c0_i32_0 = arith.constant 0 : i32
    %c0_i32_1 = arith.constant 0 : i32
    return %c0_i32, %c0_i32_0 : i32, i32
  }
  func.func @transform_2(%arg0: i32, %arg1: i32) -> (i32, i32) {
    %c0_i32 = arith.constant 0 : i32
    %c0_i32_0 = arith.constant 0 : i32
    %c0_i32_1 = arith.constant 0 : i32
    return %c0_i32, %c0_i32_0 : i32, i32
  }
  func.func @transform_3(%arg0: i32, %arg1: i32) -> (i32, i32) {
    %c0_i32 = arith.constant 0 : i32
    %c0_i32_0 = arith.constant 0 : i32
    %c0_i32_1 = arith.constant 0 : i32
    return %c0_i32, %c0_i32_0 : i32, i32
  }
  func.func @transform_4(%arg0: i32, %arg1: i32) -> (i32, i32) {
    %c0_i32 = arith.constant 0 : i32
    %c0_i32_0 = arith.constant 0 : i32
    %c0_i32_1 = arith.constant 0 : i32
    return %c0_i32, %c0_i32_0 : i32, i32
  }
  func.func @transform_5(%arg0: i32, %arg1: i32) -> (i32, i32, i32) {
    %c0_i32 = arith.constant 0 : i32
    %c0_i32_0 = arith.constant 0 : i32
    %c0_i32_1 = arith.constant 0 : i32
    return %arg0, %c0_i32, %c0_i32_0 : i32, i32, i32
  }
}

module attributes {stable_mosaic.version = 11 : i64} {
  func.func @_clsfcn_kernel(%arg0: i32, %arg1: i32, %arg2: memref<4x4x128xf32, #tpu.memory_space<vmem>>, %arg3: memref<128x4xf32, #tpu.memory_space<vmem>>, %arg4: memref<128x1xf32, #tpu.memory_space<vmem>>, %arg5: memref<128x128xf32, #tpu.memory_space<vmem>>, %arg6: memref<1x128xf32, #tpu.memory_space<vmem>>, %arg7: memref<1x4x128xf32, #tpu.memory_space<vmem>>, %arg8: memref<4x128xf32, #tpu.memory_space<vmem>>) attributes {dimension_semantics = [#tpu.dimension_semantics<parallel>, #tpu.dimension_semantics<arbitrary>], iteration_bounds = array<i64: 4, 2>, scalar_prefetch = 0 : i64, scratch_operands = 1 : i64, tpu.core_type = #tpu.core_type<tc>, window_params = [{transform_indices = @transform_0, window_bounds = array<i64: 4, 4, 128>}, {pipeline_mode = #tpu.pipeline_mode<synchronous>, transform_indices = @transform_1, window_bounds = array<i64: 128, 4>}, {pipeline_mode = #tpu.pipeline_mode<synchronous>, transform_indices = @transform_2, window_bounds = array<i64: 128, 1>}, {pipeline_mode = #tpu.pipeline_mode<synchronous>, transform_indices = @transform_3, window_bounds = array<i64: 128, 128>}, {pipeline_mode = #tpu.pipeline_mode<synchronous>, transform_indices = @transform_4, window_bounds = array<i64: 1, 128>}, {transform_indices = @transform_5, window_bounds = array<i64: 1, 4, 128>}]} {
    %c0_i32 = arith.constant 0 : i32
    %0 = arith.cmpi eq, %arg1, %c0_i32 : i32
    %1 = arith.extui %0 : i1 to i32
    %c0_i32_0 = arith.constant 0 : i32
    %2 = arith.cmpi ne, %1, %c0_i32_0 : i32
    scf.if %2 {
      %cst_13 = arith.constant 0.000000e+00 : f32
      %45 = vector.broadcast %cst_13 : f32 to vector<4x128xf32>
      %c0_14 = arith.constant 0 : index
      %c0_15 = arith.constant 0 : index
      %46 = vector.load %arg8[%c0_14, %c0_15] : memref<4x128xf32, #tpu.memory_space<vmem>>, vector<4x128xf32>
      tpu.vector_store %arg8[%c0_14, %c0_15], %45 {strides = array<i32>} : memref<4x128xf32, #tpu.memory_space<vmem>>, vector<4x128xf32>,
    } else {
    }
    %c0 = arith.constant 0 : index
    %c0_1 = arith.constant 0 : index
    %c0_2 = arith.constant 0 : index
    %3 = vector.load %arg2[%c0, %c0_1, %c0_2] : memref<4x4x128xf32, #tpu.memory_space<vmem>>, vector<4x4x128xf32>
    %c0_3 = arith.constant 0 : index
    %c0_4 = arith.constant 0 : index
    %4 = vector.load %arg3[%c0_3, %c0_4] : memref<128x4xf32, #tpu.memory_space<vmem>>, vector<128x4xf32>
    %c0_5 = arith.constant 0 : index
    %c0_6 = arith.constant 0 : index
    %5 = vector.load %arg4[%c0_5, %c0_6] : memref<128x1xf32, #tpu.memory_space<vmem>>, vector<128x1xf32>
    %6 = vector.extract_strided_slice %3 {offsets = [0, 0, 0], sizes = [4, 1, 128], strides = [1, 1, 1]} : vector<4x4x128xf32> to vector<4x1x128xf32>
    %7 = vector.extract_strided_slice %4 {offsets = [0, 0], sizes = [128, 1], strides = [1, 1]} : vector<128x4xf32> to vector<128x1xf32>
    %8 = vector.shape_cast %7 : vector<128x1xf32> to vector<1x128x1xf32>
    %9 = vector.broadcast %6 : vector<4x1x128xf32> to vector<4x128x128xf32>
    %10 = vector.broadcast %8 : vector<1x128x1xf32> to vector<4x128x128xf32>
    %11 = arith.mulf %9, %10 : vector<4x128x128xf32>
    %12 = vector.extract_strided_slice %3 {offsets = [0, 1, 0], sizes = [4, 1, 128], strides = [1, 1, 1]} : vector<4x4x128xf32> to vector<4x1x128xf32>
    %13 = vector.extract_strided_slice %4 {offsets = [0, 1], sizes = [128, 1], strides = [1, 1]} : vector<128x4xf32> to vector<128x1xf32>
    %14 = vector.shape_cast %13 : vector<128x1xf32> to vector<1x128x1xf32>
    %15 = vector.broadcast %12 : vector<4x1x128xf32> to vector<4x128x128xf32>
    %16 = vector.broadcast %14 : vector<1x128x1xf32> to vector<4x128x128xf32>
    %17 = arith.mulf %15, %16 : vector<4x128x128xf32>
    %18 = arith.addf %11, %17 : vector<4x128x128xf32>
    %19 = vector.extract_strided_slice %3 {offsets = [0, 2, 0], sizes = [4, 1, 128], strides = [1, 1, 1]} : vector<4x4x128xf32> to vector<4x1x128xf32>
    %20 = vector.extract_strided_slice %4 {offsets = [0, 2], sizes = [128, 1], strides = [1, 1]} : vector<128x4xf32> to vector<128x1xf32>
    %21 = vector.shape_cast %20 : vector<128x1xf32> to vector<1x128x1xf32>
    %22 = vector.broadcast %19 : vector<4x1x128xf32> to vector<4x128x128xf32>
    %23 = vector.broadcast %21 : vector<1x128x1xf32> to vector<4x128x128xf32>
    %24 = arith.mulf %22, %23 : vector<4x128x128xf32>
    %25 = arith.addf %18, %24 : vector<4x128x128xf32>
    %26 = vector.extract_strided_slice %3 {offsets = [0, 3, 0], sizes = [4, 1, 128], strides = [1, 1, 1]} : vector<4x4x128xf32> to vector<4x1x128xf32>
    %27 = vector.extract_strided_slice %4 {offsets = [0, 3], sizes = [128, 1], strides = [1, 1]} : vector<128x4xf32> to vector<128x1xf32>
    %28 = vector.shape_cast %27 : vector<128x1xf32> to vector<1x128x1xf32>
    %29 = vector.broadcast %26 : vector<4x1x128xf32> to vector<4x128x128xf32>
    %30 = vector.broadcast %28 : vector<1x128x1xf32> to vector<4x128x128xf32>
    %31 = arith.mulf %29, %30 : vector<4x128x128xf32>
    %32 = arith.addf %25, %31 : vector<4x128x128xf32>
    %33 = vector.shape_cast %5 : vector<128x1xf32> to vector<1x128x1xf32>
    %34 = vector.broadcast %33 : vector<1x128x1xf32> to vector<4x128x128xf32>
    %35 = arith.addf %32, %34 : vector<4x128x128xf32>
    %cst = arith.constant 0.000000e+00 : f32
    %36 = vector.broadcast %cst : f32 to vector<4x128x128xf32>
    %37 = arith.maximumf %35, %36 : vector<4x128x128xf32>
    %c0_7 = arith.constant 0 : index
    %c0_8 = arith.constant 0 : index
    %38 = vector.load %arg8[%c0_7, %c0_8] : memref<4x128xf32, #tpu.memory_space<vmem>>, vector<4x128xf32>
    %cst_9 = arith.constant dense<0.000000e+00> : vector<4x128xf32>
    %39 = vector.multi_reduction <add>, %37, %cst_9 [2] : vector<4x128x128xf32> to vector<4x128xf32>
    %40 = arith.addf %38, %39 : vector<4x128xf32>
    %c0_10 = arith.constant 0 : index
    %c0_11 = arith.constant 0 : index
    %41 = vector.load %arg8[%c0_10, %c0_11] : memref<4x128xf32, #tpu.memory_space<vmem>>, vector<4x128xf32>
    tpu.vector_store %arg8[%c0_10, %c0_11], %40 {strides = array<i32>} : memref<4x128xf32, #tpu.memory_space<vmem>>, vector<4x128xf32>,
    %c1_i32 = arith.constant 1 : i32
    %42 = arith.cmpi eq, %arg1, %c1_i32 : i32
    %43 = arith.extui %42 : i1 to i32
    %c0_i32_12 = arith.constant 0 : i32
    %44 = arith.cmpi ne, %43, %c0_i32_12 : i32
    scf.if %44 {
      %c0_13 = arith.constant 0 : index
      %c0_14 = arith.constant 0 : index
      %45 = vector.load %arg8[%c0_13, %c0_14] : memref<4x128xf32, #tpu.memory_space<vmem>>, vector<4x128xf32>
      %c0_15 = arith.constant 0 : index
      %c0_16 = arith.constant 0 : index
      %46 = vector.load %arg5[%c0_15, %c0_16] : memref<128x128xf32, #tpu.memory_space<vmem>>, vector<128x128xf32>
      %cst_17 = arith.constant dense<0.000000e+00> : vector<4x128xf32>
      %47 = tpu.matmul %45, %46, %cst_17 {dimension_numbers = #tpu.dot_dimension_numbers<[1], [0], [0], [1], [0, 0, 1, 1], [], []>} : vector<4x128xf32>, vector<128x128xf32>, vector<4x128xf32> -> vector<4x128xf32>
      %c0_18 = arith.constant 0 : index
      %c0_19 = arith.constant 0 : index
      %48 = vector.load %arg6[%c0_18, %c0_19] : memref<1x128xf32, #tpu.memory_space<vmem>>, vector<1x128xf32>
      %49 = vector.broadcast %48 : vector<1x128xf32> to vector<4x128xf32>
      %50 = arith.addf %47, %49 : vector<4x128xf32>
      %51 = vector.shape_cast %50 : vector<4x128xf32> to vector<1x4x128xf32>
      %c0_20 = arith.constant 0 : index
      %c0_21 = arith.constant 0 : index
      %c0_22 = arith.constant 0 : index
      %52 = vector.load %arg7[%c0_20, %c0_21, %c0_22] : memref<1x4x128xf32, #tpu.memory_space<vmem>>, vector<1x4x128xf32>
      tpu.vector_store %arg7[%c0_20, %c0_21, %c0_22], %51 {strides = array<i32>} : memref<1x4x128xf32, #tpu.memory_space<vmem>>, vector<1x4x128xf32>,
    } else {
    }
    return
  }
  func.func @transform_0(%arg0: i32, %arg1: i32) -> (i32, i32, i32) {
    %c0_i32 = arith.constant 0 : i32
    %c0_i32_0 = arith.constant 0 : i32
    return %arg0, %c0_i32, %arg1 : i32, i32, i32
  }
  func.func @transform_1(%arg0: i32, %arg1: i32) -> (i32, i32) {
    %c0_i32 = arith.constant 0 : i32
    %c0_i32_0 = arith.constant 0 : i32
    %c0_i32_1 = arith.constant 0 : i32
    return %c0_i32, %c0_i32_0 : i32, i32
  }
  func.func @transform_2(%arg0: i32, %arg1: i32) -> (i32, i32) {
    %c0_i32 = arith.constant 0 : i32
    %c0_i32_0 = arith.constant 0 : i32
    %c0_i32_1 = arith.constant 0 : i32
    return %c0_i32, %c0_i32_0 : i32, i32
  }
  func.func @transform_3(%arg0: i32, %arg1: i32) -> (i32, i32) {
    %c0_i32 = arith.constant 0 : i32
    %c0_i32_0 = arith.constant 0 : i32
    %c0_i32_1 = arith.constant 0 : i32
    return %c0_i32, %c0_i32_0 : i32, i32
  }
  func.func @transform_4(%arg0: i32, %arg1: i32) -> (i32, i32) {
    %c0_i32 = arith.constant 0 : i32
    %c0_i32_0 = arith.constant 0 : i32
    %c0_i32_1 = arith.constant 0 : i32
    return %c0_i32, %c0_i32_0 : i32, i32
  }
  func.func @transform_5(%arg0: i32, %arg1: i32) -> (i32, i32, i32) {
    %c0_i32 = arith.constant 0 : i32
    %c0_i32_0 = arith.constant 0 : i32
    %c0_i32_1 = arith.constant 0 : i32
    return %arg0, %c0_i32, %c0_i32_0 : i32, i32, i32
  }
}

</mosaic_0001>

<llo_original>
// kernel: tpu_custom_call.1
$region0: #{tpu_custom_call.1}
  #allocation0 [shape = 'u32[]', space=smem, size = 0x4, offset = 0x4, fixed_abs, tag = 'smem constant byte address 0x4 - core index']
  #allocation1 [shape = 'u32[144,128]{1,0:T(1,128)}', space=vmem, size = 0x12000, scoped, tag = 'internal scratch']
  #allocation2 [shape = 'f32[4,128]{1,0:T(4,128)}', space=vmem, size = 0x800, scoped, tag = 'scratch operand']
  %s0 = inlined_call_operand.vmem [shape: f32[16,4,256], index: 0, kind: input, shape index: {}]
  %s1 = inlined_call_operand.vmem [shape: f32[128,4], index: 1, kind: input, shape index: {}]
  %s2 = inlined_call_operand.vmem [shape: f32[128,1], index: 2, kind: input, shape index: {}]
  %s3 = inlined_call_operand.vmem [shape: f32[128,128], index: 3, kind: input, shape index: {}]
  %s4 = inlined_call_operand.vmem [shape: f32[1,128], index: 4, kind: input, shape index: {}]
  %s5 = inlined_call_operand.hbm [shape: f32[4,4,128], index: 5, kind: output, shape index: {}]
  %s6 = sld [smem:[#allocation0]]
  $region102: #{tpu_custom_call.1} parent=0
    _
  %s8 = ssub.s32 1, %s6
  %s9 = scalar_select 0, %s8, %s6
  $region1: #{tpu_custom_call.1} parent=0
    #allocation3 [shape = 'u8[16384]{0}', space=vmem, size = 0x4000, scoped, tag = 'input window, operand 0']
    #allocation4 [shape = 'u8[4096]{0}', space=vmem, size = 0x1000, scoped, tag = 'output window, operand 0']
    #allocation5 [shape = 's32[2]{0}', space=sflag, size = 0x8, scoped, tag = 'scoped memory for tpu_custom_call.1']
    %10 = vsyncpa [#allocation5], 0
    %s11 = scalar_lea.sflag [#allocation5], 1
    %12 = vsyncpa %s11, 0
    loop: start=0, step=1, limit=10
    $region2: #{tpu_custom_call.1} parent=1 // loop_pre_header
      _
    $region3: #{tpu_custom_call.1} parent=1 // loop_header
      %s14 = sphi 0, %s18
      %p15 = scmp.ge.s32.totalorder %s14, 10
      %s21 = sphi 0, %s33
      %s22 = sphi 0, %s29
      %s23 = sphi 0, %s21
      %s24 = sphi 0, %s22
      %s25 = sphi 0, %s23
      %s26 = sphi 0, %s24
      %s38 = sphi 0, %s40
      %s41 = sphi 0, %s38
      %s42 = sphi 0, %s41
      %s58 = sphi 0, %s42
      %s62 = sphi 0, %s62
      %s64 = sphi 0, %s62
      %s65 = sphi 0, %s64
      %s79 = sphi 0, %s65
      %s83 = sphi 0, %s83
      %s85 = sphi 0, %s83
      %s86 = sphi 0, %s85
      %s100 = sphi 0, %s86
      %s104 = sphi 0, %s104
      %s106 = sphi 0, %s104
      %s107 = sphi 0, %s106
      %s121 = sphi 0, %s107
      %s125 = sphi 0, %s125
      %s127 = sphi 0, %s125
      %s128 = sphi 0, %s127
      %s142 = sphi 0, %s128
      %s148 = sphi 0, %s150
      %s151 = sphi 0, %s148
      %s152 = sphi 0, %s151
      %s168 = sphi 0, %s152
    $region4: #{tpu_custom_call.1} parent=1 // loop_header_branch
      %17 = sbr.rel (%p15) target = $region8
    $region5: #{tpu_custom_call.1} parent=1 // loop_body
      %s19 = ssub.s32 %s14, 1
      %s20 = ssub.s32 %s14, 2
      %s27 = sadd.s32 1, %s22
      %p28 = scmp.ge.s32.totalorder %s27, 2
      %s29 = scalar_select %p28, 0, %s27
      %s30 = sadd.s32 1, %s21
      %s31 = scalar_select %p28, %s30, %s21
      %p32 = scmp.ge.s32.totalorder %s31, 4
      %s33 = scalar_select %p32, 0, %s31
      %s34 = ssub.s32 %s21, %s33
      %s35 = ssub.s32 %s22, %s29
      %s36 = sor.u32 %s34, %s35
      %p37 = scmp.eq.s32.totalorder %s36, 0
      %s39 = sadd.s32 %s38, 1
      %s40 = scalar_select %p37, %s38, %s39
      %p43 = pneg %p37
      %p44 = scmp.eq.s32.totalorder %s14, 7
      %p45 = por %p43, %p44
      %p46 = scmp.ne.s32.totalorder %s38, %s41
      %p47 = scmp.eq.s32.totalorder %s14, 0
      %p48 = por %p46, %p47
      %p49 = scmp.ne.s32.totalorder %s38, %s41
      %p50 = scmp.eq.s32.totalorder %s19, 7
      %p51 = por %p49, %p50
      %p52 = scmp.ne.s32.totalorder %s41, %s42
      %p53 = scmp.eq.s32.totalorder %s19, 0
      %p54 = por %p52, %p53
      %p55 = scmp.ne.s32.totalorder %s41, %s42
      %p56 = scmp.eq.s32.totalorder %s20, 7
      %p57 = por %p55, %p56
      %p59 = scmp.ne.s32.totalorder %s42, %s58
      %p60 = scmp.eq.s32.totalorder %s20, 0
      %p61 = por %p59, %p60
      %s63 = sadd.s32 %s62, 1
      %p66 = scmp.eq.s32.totalorder %s14, 7
      %p67 = scmp.ne.s32.totalorder %s62, %s64
      %p68 = scmp.eq.s32.totalorder %s14, 0
      %p69 = por %p67, %p68
      %p70 = scmp.ne.s32.totalorder %s62, %s64
      %p71 = scmp.eq.s32.totalorder %s19, 7
      %p72 = por %p70, %p71
      %p73 = scmp.ne.s32.totalorder %s64, %s65
      %p74 = scmp.eq.s32.totalorder %s19, 0
      %p75 = por %p73, %p74
      %p76 = scmp.ne.s32.totalorder %s64, %s65
      %p77 = scmp.eq.s32.totalorder %s20, 7
      %p78 = por %p76, %p77
      %p80 = scmp.ne.s32.totalorder %s65, %s79
      %p81 = scmp.eq.s32.totalorder %s20, 0
      %p82 = por %p80, %p81
      %s84 = sadd.s32 %s83, 1
      %p87 = scmp.eq.s32.totalorder %s14, 7
      %p88 = scmp.ne.s32.totalorder %s83, %s85
      %p89 = scmp.eq.s32.totalorder %s14, 0
      %p90 = por %p88, %p89
      %p91 = scmp.ne.s32.totalorder %s83, %s85
      %p92 = scmp.eq.s32.totalorder %s19, 7
      %p93 = por %p91, %p92
      %p94 = scmp.ne.s32.totalorder %s85, %s86
      %p95 = scmp.eq.s32.totalorder %s19, 0
      %p96 = por %p94, %p95
      %p97 = scmp.ne.s32.totalorder %s85, %s86
      %p98 = scmp.eq.s32.totalorder %s20, 7
      %p99 = por %p97, %p98
      %p101 = scmp.ne.s32.totalorder %s86, %s100
      %p102 = scmp.eq.s32.totalorder %s20, 0
      %p103 = por %p101, %p102
      %s105 = sadd.s32 %s104, 1
      %p108 = scmp.eq.s32.totalorder %s14, 7
      %p109 = scmp.ne.s32.totalorder %s104, %s106
      %p110 = scmp.eq.s32.totalorder %s14, 0
      %p111 = por %p109, %p110
      %p112 = scmp.ne.s32.totalorder %s104, %s106
      %p113 = scmp.eq.s32.totalorder %s19, 7
      %p114 = por %p112, %p113
      %p115 = scmp.ne.s32.totalorder %s106, %s107
      %p116 = scmp.eq.s32.totalorder %s19, 0
      %p117 = por %p115, %p116
      %p118 = scmp.ne.s32.totalorder %s106, %s107
      %p119 = scmp.eq.s32.totalorder %s20, 7
      %p120 = por %p118, %p119
      %p122 = scmp.ne.s32.totalorder %s107, %s121
      %p123 = scmp.eq.s32.totalorder %s20, 0
      %p124 = por %p122, %p123
      %s126 = sadd.s32 %s125, 1
      %p129 = scmp.eq.s32.totalorder %s14, 7
      %p130 = scmp.ne.s32.totalorder %s125, %s127
      %p131 = scmp.eq.s32.totalorder %s14, 0
      %p132 = por %p130, %p131
      %p133 = scmp.ne.s32.totalorder %s125, %s127
      %p134 = scmp.eq.s32.totalorder %s19, 7
      %p135 = por %p133, %p134
      %p136 = scmp.ne.s32.totalorder %s127, %s128
      %p137 = scmp.eq.s32.totalorder %s19, 0
      %p138 = por %p136, %p137
      %p139 = scmp.ne.s32.totalorder %s127, %s128
      %p140 = scmp.eq.s32.totalorder %s20, 7
      %p141 = por %p139, %p140
      %p143 = scmp.ne.s32.totalorder %s128, %s142
      %p144 = scmp.eq.s32.totalorder %s20, 0
      %p145 = por %p143, %p144
      %s146 = ssub.s32 %s21, %s33
      %p147 = scmp.eq.s32.totalorder %s146, 0
      %s149 = sadd.s32 %s148, 1
      %s150 = scalar_select %p147, %s148, %s149
      %p153 = pneg %p147
      %p154 = scmp.eq.s32.totalorder %s14, 7
      %p155 = por %p153, %p154
      %p156 = scmp.ne.s32.totalorder %s148, %s151
      %p157 = scmp.eq.s32.totalorder %s14, 0
      %p158 = por %p156, %p157
      %p159 = scmp.ne.s32.totalorder %s148, %s151
      %p160 = scmp.eq.s32.totalorder %s19, 7
      %p161 = por %p159, %p160
      %p162 = scmp.ne.s32.totalorder %s151, %s152
      %p163 = scmp.eq.s32.totalorder %s19, 0
      %p164 = por %p162, %p163
      %p165 = scmp.ne.s32.totalorder %s151, %s152
      %p166 = scmp.eq.s32.totalorder %s20, 7
      %p167 = por %p165, %p166
      %p169 = scmp.ne.s32.totalorder %s152, %s168
      %p170 = scmp.eq.s32.totalorder %s20, 0
      %p171 = por %p169, %p170
      %p172 = scmp.le.s32.totalorder 1, %s14
      %p173 = scmp.lt.s32.totalorder %s14, 9
      %p174 = pnand %p172, %p173
      %p175 = pneg %p174
      // Predicated region
      $region9: #{tpu_custom_call.1} parent=5 // pred_check
        _
      $region10: #{tpu_custom_call.1} parent=5 // pred_check_branch
        %177 = sbr.rel (%p174) target = $region12
      $region11: #{tpu_custom_call.1} parent=5 // pred_region
        %s178 = ssub.s32 %s14, 1
        // Predicated region
        $region13: #{tpu_custom_call.1} parent=11 // pred_check
          %p179 = pneg %p75
        $region14: #{tpu_custom_call.1} parent=11 // pred_check_branch
          %181 = sbr.rel (%p179) target = $region16
        $region15: #{tpu_custom_call.1} parent=11 // pred_region
          _
        $region16: #{tpu_custom_call.1} parent=11 // pred_fallthru
          _
        // Predicated region
        $region17: #{tpu_custom_call.1} parent=11 // pred_check
          %p182 = pneg %p96
        $region18: #{tpu_custom_call.1} parent=11 // pred_check_branch
          %184 = sbr.rel (%p182) target = $region20
        $region19: #{tpu_custom_call.1} parent=11 // pred_region
          _
        $region20: #{tpu_custom_call.1} parent=11 // pred_fallthru
          _
        // Predicated region
        $region21: #{tpu_custom_call.1} parent=11 // pred_check
          %p185 = pneg %p117
        $region22: #{tpu_custom_call.1} parent=11 // pred_check_branch
          %187 = sbr.rel (%p185) target = $region24
        $region23: #{tpu_custom_call.1} parent=11 // pred_region
          _
        $region24: #{tpu_custom_call.1} parent=11 // pred_fallthru
          _
        // Predicated region
        $region25: #{tpu_custom_call.1} parent=11 // pred_check
          %p188 = pneg %p138
        $region26: #{tpu_custom_call.1} parent=11 // pred_check_branch
          %190 = sbr.rel (%p188) target = $region28
        $region27: #{tpu_custom_call.1} parent=11 // pred_region
          _
        $region28: #{tpu_custom_call.1} parent=11 // pred_fallthru
          _
      $region12: #{tpu_custom_call.1} parent=5 // pred_fallthru
        _
      %p191 = scmp.lt.s32.totalorder %s14, 8
      // Predicated region
      $region29: #{tpu_custom_call.1} parent=5 // pred_check
        %p192 = pneg %p191
      $region30: #{tpu_custom_call.1} parent=5 // pred_check_branch
        %194 = sbr.rel (%p192) target = $region32
      $region31: #{tpu_custom_call.1} parent=5 // pred_region
        // Predicated region
        $region33: #{tpu_custom_call.1} parent=31 // pred_check
          %p195 = pneg %p48
        $region34: #{tpu_custom_call.1} parent=31 // pred_check_branch
          %197 = sbr.rel (%p195) target = $region36
        $region35: #{tpu_custom_call.1} parent=31 // pred_region
          %s198 = sand.u32 %s38, 1
          %s199 = sand.u32 %s38, 1
          %s200 = smul.addr %s199, 16
          %s201 = scalar_lea.vmem [#allocation3], %s200
          %s202 = smul.u32 4, %s21
          %s203 = smul.addr %s202, 2
          %s204 = sadd.s32 %s22, %s203
          %s205 = smul.addr %s204, 4
          %s206 = scalar_lea.vmem %s0, %s205
          // Predicated region
          $region37: #{tpu_custom_call.1} parent=35 // pred_check
            _
          $region38: #{tpu_custom_call.1} parent=35 // pred_check_branch
            %208 = sbr.rel (0) target = $region40
          $region39: #{tpu_custom_call.1} parent=35 // pred_region
            // Predicated region
            $region41: #{tpu_custom_call.1} parent=39 // pred_check
              _
            $region42: #{tpu_custom_call.1} parent=39 // pred_check_branch
              %210 = sbr.rel target = $region44
            $region43: #{tpu_custom_call.1} parent=39 // pred_region
              // Predicated region
              $region56: #{tpu_custom_call.1} parent=43 // pred_check
                _
              $region57: #{tpu_custom_call.1} parent=43 // pred_check_branch
                %231 = sbr.rel (0) target = $region59
              $region58: #{tpu_custom_call.1} parent=43 // pred_region
                loop: start=0, step=1, limit=1
                $region60: #{tpu_custom_call.1} parent=58 // loop_pre_header
                  _
                $region61: #{tpu_custom_call.1} parent=58 // loop_header
                  %s233 = sphi 0, %s237
                  %p234 = scmp.ge.s32.totalorder %s233, 1
                  %s238 = sphi %s206, %s206
                  %s239 = sphi %s201, %s201
                $region62: #{tpu_custom_call.1} parent=58 // loop_header_branch
                  %236 = sbr.rel (%p234) target = $region66
                $region63: #{tpu_custom_call.1} parent=58 // loop_body
                  _
                $region64: #{tpu_custom_call.1} parent=58 // loop_footer
                  %s237 = sadd.s32 1, %s233
                $region65: #{tpu_custom_call.1} parent=58 // loop_footer_branch
                  %232 = sbr.rel target = $region61
                $region66: #{tpu_custom_call.1} parent=58 // loop_exit
                  _
                loop: start=0, step=1, limit=1
                $region67: #{tpu_custom_call.1} parent=58 // loop_pre_header
                  _
                $region68: #{tpu_custom_call.1} parent=58 // loop_header
                  %s242 = sphi 0, %s246
                  %p243 = scmp.ge.s32.totalorder %s242, 1
                  %s247 = sphi %s206, %s206
                  %s248 = sphi %s201, %s201
                $region69: #{tpu_custom_call.1} parent=58 // loop_header_branch
                  %245 = sbr.rel (%p243) target = $region73
                $region70: #{tpu_custom_call.1} parent=58 // loop_body
                  %v249 = vld [vmem:[%s247] sm:$0xf]
                  %250 = vst [vmem:[%s248] sm:$0xf] %v249
                  %v251 = vld [vmem:[%s247 + $0x8] sm:$0xf]
                  %252 = vst [vmem:[%s248 + $0x4] sm:$0xf] %v251
                  %v253 = vld [vmem:[%s247 + $0x10] sm:$0xf]
                  %254 = vst [vmem:[%s248 + $0x8] sm:$0xf] %v253
                  %v255 = vld [vmem:[%s247 + $0x18] sm:$0xf]
                  %256 = vst [vmem:[%s248 + $0xc] sm:$0xf] %v255
                $region71: #{tpu_custom_call.1} parent=58 // loop_footer
                  %s246 = sadd.s32 1, %s242
                $region72: #{tpu_custom_call.1} parent=58 // loop_footer_branch
                  %241 = sbr.rel target = $region68
                $region73: #{tpu_custom_call.1} parent=58 // loop_exit
                  _
              $region59: #{tpu_custom_call.1} parent=43 // pred_fallthru
                _
            $region44: #{tpu_custom_call.1} parent=39 // pred_fallthru
              _
            // Predicated region
            $region45: #{tpu_custom_call.1} parent=39 // pred_check
              _
            $region46: #{tpu_custom_call.1} parent=39 // pred_check_branch
              %212 = sbr.rel (0) target = $region48
            $region47: #{tpu_custom_call.1} parent=39 // pred_region
              loop: start=0, step=1, limit=1
              $region49: #{tpu_custom_call.1} parent=47 // loop_pre_header
                _
              $region50: #{tpu_custom_call.1} parent=47 // loop_header
                %s215 = sphi 0, %s219
                %p216 = scmp.ge.s32.totalorder %s215, 1
                %s220 = sphi %s206, %s206
                %s221 = sphi %s201, %s201
              $region51: #{tpu_custom_call.1} parent=47 // loop_header_branch
                %218 = sbr.rel (%p216) target = $region55
              $region52: #{tpu_custom_call.1} parent=47 // loop_body
                %v222 = vld [vmem:[%s220] sm:$0xf]
                %223 = vst [vmem:[%s221] sm:$0xf] %v222
                %v224 = vld [vmem:[%s220 + $0x8] sm:$0xf]
                %225 = vst [vmem:[%s221 + $0x4] sm:$0xf] %v224
                %v226 = vld [vmem:[%s220 + $0x10] sm:$0xf]
                %227 = vst [vmem:[%s221 + $0x8] sm:$0xf] %v226
                %v228 = vld [vmem:[%s220 + $0x18] sm:$0xf]
                %229 = vst [vmem:[%s221 + $0xc] sm:$0xf] %v228
              $region53: #{tpu_custom_call.1} parent=47 // loop_footer
                %s219 = sadd.s32 1, %s215
              $region54: #{tpu_custom_call.1} parent=47 // loop_footer_branch
                %214 = sbr.rel target = $region50
              $region55: #{tpu_custom_call.1} parent=47 // loop_exit
                _
            $region48: #{tpu_custom_call.1} parent=39 // pred_fallthru
              _
          $region40: #{tpu_custom_call.1} parent=35 // pred_fallthru
            _
          %257 = vnop
        $region36: #{tpu_custom_call.1} parent=31 // pred_fallthru
          _
      $region32: #{tpu_custom_call.1} parent=5 // pred_fallthru
        _
      %p258 = scmp.le.s32.totalorder 1, %s14
      %p259 = scmp.lt.s32.totalorder %s14, 9
      %p260 = pnand %p258, %p259
      %p261 = pneg %p260
      // Predicated region
      $region74: #{tpu_custom_call.1} parent=5 // pred_check
        _
      $region75: #{tpu_custom_call.1} parent=5 // pred_check_branch
        %263 = sbr.rel (%p260) target = $region77
      $region76: #{tpu_custom_call.1} parent=5 // pred_region
        %s264 = ssub.s32 %s14, 1
        %s265 = sand.u32 %s41, 1
        %s266 = sand.u32 %s41, 1
        %s267 = smul.addr %s266, 16
        %s268 = scalar_lea.vmem [#allocation3], %s267
        // Predicated region
        $region78: #{tpu_custom_call.1} parent=76 // pred_check
          %p269 = pneg %p54
        $region79: #{tpu_custom_call.1} parent=76 // pred_check_branch
          %271 = sbr.rel (%p269) target = $region81
        $region80: #{tpu_custom_call.1} parent=76 // pred_region
          _
        $region81: #{tpu_custom_call.1} parent=76 // pred_fallthru
          _
        %s272 = sand.u32 %s41, 1
        %s273 = sand.u32 %s41, 1
        %s274 = smul.addr %s273, 16
        %s275 = scalar_lea.vmem [#allocation3], %s274
        %p276 = pneg %p54
        %p277 = pneg %p51
        %p278 = pneg %p75
        %p279 = pneg %p72
        %p280 = pneg %p96
        %p281 = pneg %p93
        %p282 = pneg %p117
        %p283 = pneg %p114
        %p284 = pneg %p138
        %p285 = pneg %p135
        %p286 = pneg %p164
        %p287 = pneg %p161
        %s288 = sand.u32 %s151, 1
        %s289 = scalar_lea.sflag [#allocation5], %s288
        %s290 = sand.u32 %s151, 1
        %s291 = smul.addr %s290, 4
        %s292 = scalar_lea.vmem [#allocation4], %s291
        %s293 = smul.u32 4, %s23
        %p294 = scmp.eq.s32.totalorder %s24, 0
        // Predicated region
        $region82: #{tpu_custom_call.1} parent=76 // pred_check
          %p295 = pneg %p294
        $region83: #{tpu_custom_call.1} parent=76 // pred_check_branch
          %297 = sbr.rel (%p295) target = $region85
        $region84: #{tpu_custom_call.1} parent=76 // pred_region
          %298 = vst [vmem:[#allocation2] sm:$0xf] 0.0
        $region85: #{tpu_custom_call.1} parent=76 // pred_fallthru
          _
        %v299 = vld [vmem:[%s268] sm:$0xf]
        %v300 = vld [vmem:[%s268 + $0x4] sm:$0xf]
        %v301 = vld [vmem:[%s268 + $0x8] sm:$0xf]
        %v302 = vld [vmem:[%s268 + $0xc] sm:$0xf]
        %v303 = vld [vmem:[%s1] sm:$0xff]
        %v304 = vld [vmem:[%s1 + $0x8] sm:$0xff]
        %v305 = vld [vmem:[%s1 + $0x10] sm:$0xff]
        %v306 = vld [vmem:[%s1 + $0x18] sm:$0xff]
        %v307 = vld [vmem:[%s1 + $0x20] sm:$0xff]
        %v308 = vld [vmem:[%s1 + $0x28] sm:$0xff]
        %v309 = vld [vmem:[%s1 + $0x30] sm:$0xff]
        %v310 = vld [vmem:[%s1 + $0x38] sm:$0xff]
        %v311 = vld [vmem:[%s1 + $0x40] sm:$0xff]
        %v312 = vld [vmem:[%s1 + $0x48] sm:$0xff]
        %v313 = vld [vmem:[%s1 + $0x50] sm:$0xff]
        %v314 = vld [vmem:[%s1 + $0x58] sm:$0xff]
        %v315 = vld [vmem:[%s1 + $0x60] sm:$0xff]
        %v316 = vld [vmem:[%s1 + $0x68] sm:$0xff]
        %v317 = vld [vmem:[%s1 + $0x70] sm:$0xff]
        %v318 = vld [vmem:[%s1 + $0x78] sm:$0xff]
        %v319 = vld [vmem:[%s2] sm:$0xff]
        %v320 = vld [vmem:[%s2 + $0x8] sm:$0xff]
        %v321 = vld [vmem:[%s2 + $0x10] sm:$0xff]
        %v322 = vld [vmem:[%s2 + $0x18] sm:$0xff]
        %v323 = vld [vmem:[%s2 + $0x20] sm:$0xff]
        %v324 = vld [vmem:[%s2 + $0x28] sm:$0xff]
        %v325 = vld [vmem:[%s2 + $0x30] sm:$0xff]
        %v326 = vld [vmem:[%s2 + $0x38] sm:$0xff]
        %v327 = vld [vmem:[%s2 + $0x40] sm:$0xff]
        %v328 = vld [vmem:[%s2 + $0x48] sm:$0xff]
        %v329 = vld [vmem:[%s2 + $0x50] sm:$0xff]
        %v330 = vld [vmem:[%s2 + $0x58] sm:$0xff]
        %v331 = vld [vmem:[%s2 + $0x60] sm:$0xff]
        %v332 = vld [vmem:[%s2 + $0x68] sm:$0xff]
        %v333 = vld [vmem:[%s2 + $0x70] sm:$0xff]
        %v334 = vld [vmem:[%s2 + $0x78] sm:$0xff]
        %v335 = vlaneseq
        %v336 = vshrl.u32 %v335, 7
        %v337 = vsub.s32 0, %v336
        %v338 = vrot.slane %v299, %v337
        %v339 = vlaneseq
        %v340 = vshrl.u32 %v339, 7
        %v341 = vsub.s32 0, %v340
        %v342 = vrot.slane %v300, %v341
        %v343 = vlaneseq
        %v344 = vshrl.u32 %v343, 7
        %v345 = vsub.s32 0, %v344
        %v346 = vrot.slane %v301, %v345
        %v347 = vlaneseq
        %v348 = vshrl.u32 %v347, 7
        %v349 = vsub.s32 0, %v348
        %v350 = vrot.slane %v302, %v349
        %352 = vset.pattern.permute.xlu0 0
        %353 = vperm.xlu0 %352, %v303
        %v354 = vpop.permute.xlu0 %353
        %357 = vset.pattern.permute.xlu0 0
        %358 = vperm.xlu0 %357, %v304
        %v359 = vpop.permute.xlu0 %358
        %362 = vset.pattern.permute.xlu0 0
        %363 = vperm.xlu0 %362, %v305
        %v364 = vpop.permute.xlu0 %363
        %367 = vset.pattern.permute.xlu0 0
        %368 = vperm.xlu0 %367, %v306
        %v369 = vpop.permute.xlu0 %368
        %372 = vset.pattern.permute.xlu0 0
        %373 = vperm.xlu0 %372, %v307
        %v374 = vpop.permute.xlu0 %373
        %377 = vset.pattern.permute.xlu0 0
        %378 = vperm.xlu0 %377, %v308
        %v379 = vpop.permute.xlu0 %378
        %382 = vset.pattern.permute.xlu0 0
        %383 = vperm.xlu0 %382, %v309
        %v384 = vpop.permute.xlu0 %383
        %387 = vset.pattern.permute.xlu0 0
        %388 = vperm.xlu0 %387, %v310
        %v389 = vpop.permute.xlu0 %388
        %392 = vset.pattern.permute.xlu0 0
        %393 = vperm.xlu0 %392, %v311
        %v394 = vpop.permute.xlu0 %393
        %397 = vset.pattern.permute.xlu0 0
        %398 = vperm.xlu0 %397, %v312
        %v399 = vpop.permute.xlu0 %398
        %402 = vset.pattern.permute.xlu0 0
        %403 = vperm.xlu0 %402, %v313
        %v404 = vpop.permute.xlu0 %403
        %407 = vset.pattern.permute.xlu0 0
        %408 = vperm.xlu0 %407, %v314
        %v409 = vpop.permute.xlu0 %408
        %412 = vset.pattern.permute.xlu0 0
        %413 = vperm.xlu0 %412, %v315
        %v414 = vpop.permute.xlu0 %413
        %417 = vset.pattern.permute.xlu0 0
        %418 = vperm.xlu0 %417, %v316
        %v419 = vpop.permute.xlu0 %418
        %422 = vset.pattern.permute.xlu0 0
        %423 = vperm.xlu0 %422, %v317
        %v424 = vpop.permute.xlu0 %423
        %427 = vset.pattern.permute.xlu0 0
        %428 = vperm.xlu0 %427, %v318
        %v429 = vpop.permute.xlu0 %428
        %v431 = vmul.f32 %v338, %v354
        %v432 = vmul.f32 %v338, %v359
        %v433 = vmul.f32 %v338, %v364
        %v434 = vmul.f32 %v338, %v369
        %v435 = vmul.f32 %v338, %v374
        %v436 = vmul.f32 %v338, %v379
        %v437 = vmul.f32 %v338, %v384
        %v438 = vmul.f32 %v338, %v389
        %v439 = vmul.f32 %v338, %v394
        %v440 = vmul.f32 %v338, %v399
        %v441 = vmul.f32 %v338, %v404
        %v442 = vmul.f32 %v338, %v409
        %v443 = vmul.f32 %v338, %v414
        %v444 = vmul.f32 %v338, %v419
        %v445 = vmul.f32 %v338, %v424
        %v446 = vmul.f32 %v338, %v429
        %v447 = vmul.f32 %v342, %v354
        %v448 = vmul.f32 %v342, %v359
        %v449 = vmul.f32 %v342, %v364
        %v450 = vmul.f32 %v342, %v369
        %v451 = vmul.f32 %v342, %v374
        %v452 = vmul.f32 %v342, %v379
        %v453 = vmul.f32 %v342, %v384
        %v454 = vmul.f32 %v342, %v389
        %v455 = vmul.f32 %v342, %v394
        %v456 = vmul.f32 %v342, %v399
        %v457 = vmul.f32 %v342, %v404
        %v458 = vmul.f32 %v342, %v409
        %v459 = vmul.f32 %v342, %v414
        %v460 = vmul.f32 %v342, %v419
        %v461 = vmul.f32 %v342, %v424
        %v462 = vmul.f32 %v342, %v429
        %v463 = vmul.f32 %v346, %v354
        %v464 = vmul.f32 %v346, %v359
        %v465 = vmul.f32 %v346, %v364
        %v466 = vmul.f32 %v346, %v369
        %v467 = vmul.f32 %v346, %v374
        %v468 = vmul.f32 %v346, %v379
        %v469 = vmul.f32 %v346, %v384
        %v470 = vmul.f32 %v346, %v389
        %v471 = vmul.f32 %v346, %v394
        %v472 = vmul.f32 %v346, %v399
        %v473 = vmul.f32 %v346, %v404
        %v474 = vmul.f32 %v346, %v409
        %v475 = vmul.f32 %v346, %v414
        %v476 = vmul.f32 %v346, %v419
        %v477 = vmul.f32 %v346, %v424
        %v478 = vmul.f32 %v346, %v429
        %v479 = vmul.f32 %v350, %v354
        %v480 = vmul.f32 %v350, %v359
        %v481 = vmul.f32 %v350, %v364
        %v482 = vmul.f32 %v350, %v369
        %v483 = vmul.f32 %v350, %v374
        %v484 = vmul.f32 %v350, %v379
        %v485 = vmul.f32 %v350, %v384
        %v486 = vmul.f32 %v350, %v389
        %v487 = vmul.f32 %v350, %v394
        %v488 = vmul.f32 %v350, %v399
        %v489 = vmul.f32 %v350, %v404
        %v490 = vmul.f32 %v350, %v409
        %v491 = vmul.f32 %v350, %v414
        %v492 = vmul.f32 %v350, %v419
        %v493 = vmul.f32 %v350, %v424
        %v494 = vmul.f32 %v350, %v429
        %v495 = vlaneseq
        %v496 = vshrl.u32 %v495, 7
        %v497 = vsub.s32 1, %v496
        %v498 = vrot.slane %v299, %v497
        %v499 = vlaneseq
        %v500 = vshrl.u32 %v499, 7
        %v501 = vsub.s32 1, %v500
        %v502 = vrot.slane %v300, %v501
        %v503 = vlaneseq
        %v504 = vshrl.u32 %v503, 7
        %v505 = vsub.s32 1, %v504
        %v506 = vrot.slane %v301, %v505
        %v507 = vlaneseq
        %v508 = vshrl.u32 %v507, 7
        %v509 = vsub.s32 1, %v508
        %v510 = vrot.slane %v302, %v509
        %511 = vset.pattern.permute.xlu0 1
        %512 = vperm.xlu0 %511, %v303
        %v513 = vpop.permute.xlu0 %512
        %515 = vset.pattern.permute.xlu0 1
        %516 = vperm.xlu0 %515, %v304
        %v517 = vpop.permute.xlu0 %516
        %519 = vset.pattern.permute.xlu0 1
        %520 = vperm.xlu0 %519, %v305
        %v521 = vpop.permute.xlu0 %520
        %523 = vset.pattern.permute.xlu0 1
        %524 = vperm.xlu0 %523, %v306
        %v525 = vpop.permute.xlu0 %524
        %527 = vset.pattern.permute.xlu0 1
        %528 = vperm.xlu0 %527, %v307
        %v529 = vpop.permute.xlu0 %528
        %531 = vset.pattern.permute.xlu0 1
        %532 = vperm.xlu0 %531, %v308
        %v533 = vpop.permute.xlu0 %532
        %535 = vset.pattern.permute.xlu0 1
        %536 = vperm.xlu0 %535, %v309
        %v537 = vpop.permute.xlu0 %536
        %539 = vset.pattern.permute.xlu0 1
        %540 = vperm.xlu0 %539, %v310
        %v541 = vpop.permute.xlu0 %540
        %543 = vset.pattern.permute.xlu0 1
        %544 = vperm.xlu0 %543, %v311
        %v545 = vpop.permute.xlu0 %544
        %547 = vset.pattern.permute.xlu0 1
        %548 = vperm.xlu0 %547, %v312
        %v549 = vpop.permute.xlu0 %548
        %551 = vset.pattern.permute.xlu0 1
        %552 = vperm.xlu0 %551, %v313
        %v553 = vpop.permute.xlu0 %552
        %555 = vset.pattern.permute.xlu0 1
        %556 = vperm.xlu0 %555, %v314
        %v557 = vpop.permute.xlu0 %556
        %559 = vset.pattern.permute.xlu0 1
        %560 = vperm.xlu0 %559, %v315
        %v561 = vpop.permute.xlu0 %560
        %563 = vset.pattern.permute.xlu0 1
        %564 = vperm.xlu0 %563, %v316
        %v565 = vpop.permute.xlu0 %564
        %567 = vset.pattern.permute.xlu0 1
        %568 = vperm.xlu0 %567, %v317
        %v569 = vpop.permute.xlu0 %568
        %571 = vset.pattern.permute.xlu0 1
        %572 = vperm.xlu0 %571, %v318
        %v573 = vpop.permute.xlu0 %572
        %v575 = vmul.f32 %v498, %v513
        %v576 = vmul.f32 %v498, %v517
        %v577 = vmul.f32 %v498, %v521
        %v578 = vmul.f32 %v498, %v525
        %v579 = vmul.f32 %v498, %v529
        %v580 = vmul.f32 %v498, %v533
        %v581 = vmul.f32 %v498, %v537
        %v582 = vmul.f32 %v498, %v541
        %v583 = vmul.f32 %v498, %v545
        %v584 = vmul.f32 %v498, %v549
        %v585 = vmul.f32 %v498, %v553
        %v586 = vmul.f32 %v498, %v557
        %v587 = vmul.f32 %v498, %v561
        %v588 = vmul.f32 %v498, %v565
        %v589 = vmul.f32 %v498, %v569
        %v590 = vmul.f32 %v498, %v573
        %v591 = vmul.f32 %v502, %v513
        %v592 = vmul.f32 %v502, %v517
        %v593 = vmul.f32 %v502, %v521
        %v594 = vmul.f32 %v502, %v525
        %v595 = vmul.f32 %v502, %v529
        %v596 = vmul.f32 %v502, %v533
        %v597 = vmul.f32 %v502, %v537
        %v598 = vmul.f32 %v502, %v541
        %v599 = vmul.f32 %v502, %v545
        %v600 = vmul.f32 %v502, %v549
        %v601 = vmul.f32 %v502, %v553
        %v602 = vmul.f32 %v502, %v557
        %v603 = vmul.f32 %v502, %v561
        %v604 = vmul.f32 %v502, %v565
        %v605 = vmul.f32 %v502, %v569
        %v606 = vmul.f32 %v502, %v573
        %v607 = vmul.f32 %v506, %v513
        %v608 = vmul.f32 %v506, %v517
        %v609 = vmul.f32 %v506, %v521
        %v610 = vmul.f32 %v506, %v525
        %v611 = vmul.f32 %v506, %v529
        %v612 = vmul.f32 %v506, %v533
        %v613 = vmul.f32 %v506, %v537
        %v614 = vmul.f32 %v506, %v541
        %v615 = vmul.f32 %v506, %v545
        %v616 = vmul.f32 %v506, %v549
        %v617 = vmul.f32 %v506, %v553
        %v618 = vmul.f32 %v506, %v557
        %v619 = vmul.f32 %v506, %v561
        %v620 = vmul.f32 %v506, %v565
        %v621 = vmul.f32 %v506, %v569
        %v622 = vmul.f32 %v506, %v573
        %v623 = vmul.f32 %v510, %v513
        %v624 = vmul.f32 %v510, %v517
        %v625 = vmul.f32 %v510, %v521
        %v626 = vmul.f32 %v510, %v525
        %v627 = vmul.f32 %v510, %v529
        %v628 = vmul.f32 %v510, %v533
        %v629 = vmul.f32 %v510, %v537
        %v630 = vmul.f32 %v510, %v541
        %v631 = vmul.f32 %v510, %v545
        %v632 = vmul.f32 %v510, %v549
        %v633 = vmul.f32 %v510, %v553
        %v634 = vmul.f32 %v510, %v557
        %v635 = vmul.f32 %v510, %v561
        %v636 = vmul.f32 %v510, %v565
        %v637 = vmul.f32 %v510, %v569
        %v638 = vmul.f32 %v510, %v573
        %v639 = vadd.f32 %v431, %v575
        %v640 = vadd.f32 %v432, %v576
        %v641 = vadd.f32 %v433, %v577
        %v642 = vadd.f32 %v434, %v578
        %v643 = vadd.f32 %v435, %v579
        %v644 = vadd.f32 %v436, %v580
        %v645 = vadd.f32 %v437, %v581
        %v646 = vadd.f32 %v438, %v582
        %v647 = vadd.f32 %v439, %v583
        %v648 = vadd.f32 %v440, %v584
        %v649 = vadd.f32 %v441, %v585
        %v650 = vadd.f32 %v442, %v586
        %v651 = vadd.f32 %v443, %v587
        %v652 = vadd.f32 %v444, %v588
        %v653 = vadd.f32 %v445, %v589
        %v654 = vadd.f32 %v446, %v590
        %v655 = vadd.f32 %v447, %v591
        %v656 = vadd.f32 %v448, %v592
        %v657 = vadd.f32 %v449, %v593
        %v658 = vadd.f32 %v450, %v594
        %v659 = vadd.f32 %v451, %v595
        %v660 = vadd.f32 %v452, %v596
        %v661 = vadd.f32 %v453, %v597
        %v662 = vadd.f32 %v454, %v598
        %v663 = vadd.f32 %v455, %v599
        %v664 = vadd.f32 %v456, %v600
        %v665 = vadd.f32 %v457, %v601
        %v666 = vadd.f32 %v458, %v602
        %v667 = vadd.f32 %v459, %v603
        %v668 = vadd.f32 %v460, %v604
        %v669 = vadd.f32 %v461, %v605
        %v670 = vadd.f32 %v462, %v606
        %v671 = vadd.f32 %v463, %v607
        %v672 = vadd.f32 %v464, %v608
        %v673 = vadd.f32 %v465, %v609
        %v674 = vadd.f32 %v466, %v610
        %v675 = vadd.f32 %v467, %v611
        %v676 = vadd.f32 %v468, %v612
        %v677 = vadd.f32 %v469, %v613
        %v678 = vadd.f32 %v470, %v614
        %v679 = vadd.f32 %v471, %v615
        %v680 = vadd.f32 %v472, %v616
        %v681 = vadd.f32 %v473, %v617
        %v682 = vadd.f32 %v474, %v618
        %v683 = vadd.f32 %v475, %v619
        %v684 = vadd.f32 %v476, %v620
        %v685 = vadd.f32 %v477, %v621
        %v686 = vadd.f32 %v478, %v622
        %v687 = vadd.f32 %v479, %v623
        %v688 = vadd.f32 %v480, %v624
        %v689 = vadd.f32 %v481, %v625
        %v690 = vadd.f32 %v482, %v626
        %v691 = vadd.f32 %v483, %v627
        %v692 = vadd.f32 %v484, %v628
        %v693 = vadd.f32 %v485, %v629
        %v694 = vadd.f32 %v486, %v630
        %v695 = vadd.f32 %v487, %v631
        %v696 = vadd.f32 %v488, %v632
        %v697 = vadd.f32 %v489, %v633
        %v698 = vadd.f32 %v490, %v634
        %v699 = vadd.f32 %v491, %v635
        %v700 = vadd.f32 %v492, %v636
        %v701 = vadd.f32 %v493, %v637
        %v702 = vadd.f32 %v494, %v638
        %v703 = vlaneseq
        %v704 = vshrl.u32 %v703, 7
        %v705 = vsub.s32 2, %v704
        %v706 = vrot.slane %v299, %v705
        %v707 = vlaneseq
        %v708 = vshrl.u32 %v707, 7
        %v709 = vsub.s32 2, %v708
        %v710 = vrot.slane %v300, %v709
        %v711 = vlaneseq
        %v712 = vshrl.u32 %v711, 7
        %v713 = vsub.s32 2, %v712
        %v714 = vrot.slane %v301, %v713
        %v715 = vlaneseq
        %v716 = vshrl.u32 %v715, 7
        %v717 = vsub.s32 2, %v716
        %v718 = vrot.slane %v302, %v717
        %719 = vset.pattern.permute.xlu0 2
        %720 = vperm.xlu0 %719, %v303
        %v721 = vpop.permute.xlu0 %720
        %723 = vset.pattern.permute.xlu0 2
        %724 = vperm.xlu0 %723, %v304
        %v725 = vpop.permute.xlu0 %724
        %727 = vset.pattern.permute.xlu0 2
        %728 = vperm.xlu0 %727, %v305
        %v729 = vpop.permute.xlu0 %728
        %731 = vset.pattern.permute.xlu0 2
        %732 = vperm.xlu0 %731, %v306
        %v733 = vpop.permute.xlu0 %732
        %735 = vset.pattern.permute.xlu0 2
        %736 = vperm.xlu0 %735, %v307
        %v737 = vpop.permute.xlu0 %736
        %739 = vset.pattern.permute.xlu0 2
        %740 = vperm.xlu0 %739, %v308
        %v741 = vpop.permute.xlu0 %740
        %743 = vset.pattern.permute.xlu0 2
        %744 = vperm.xlu0 %743, %v309
        %v745 = vpop.permute.xlu0 %744
        %747 = vset.pattern.permute.xlu0 2
        %748 = vperm.xlu0 %747, %v310
        %v749 = vpop.permute.xlu0 %748
        %751 = vset.pattern.permute.xlu0 2
        %752 = vperm.xlu0 %751, %v311
        %v753 = vpop.permute.xlu0 %752
        %755 = vset.pattern.permute.xlu0 2
        %756 = vperm.xlu0 %755, %v312
        %v757 = vpop.permute.xlu0 %756
        %759 = vset.pattern.permute.xlu0 2
        %760 = vperm.xlu0 %759, %v313
        %v761 = vpop.permute.xlu0 %760
        %763 = vset.pattern.permute.xlu0 2
        %764 = vperm.xlu0 %763, %v314
        %v765 = vpop.permute.xlu0 %764
        %767 = vset.pattern.permute.xlu0 2
        %768 = vperm.xlu0 %767, %v315
        %v769 = vpop.permute.xlu0 %768
        %771 = vset.pattern.permute.xlu0 2
        %772 = vperm.xlu0 %771, %v316
        %v773 = vpop.permute.xlu0 %772
        %775 = vset.pattern.permute.xlu0 2
        %776 = vperm.xlu0 %775, %v317
        %v777 = vpop.permute.xlu0 %776
        %779 = vset.pattern.permute.xlu0 2
        %780 = vperm.xlu0 %779, %v318
        %v781 = vpop.permute.xlu0 %780
        %v783 = vmul.f32 %v706, %v721
        %v784 = vmul.f32 %v706, %v725
        %v785 = vmul.f32 %v706, %v729
        %v786 = vmul.f32 %v706, %v733
        %v787 = vmul.f32 %v706, %v737
        %v788 = vmul.f32 %v706, %v741
        %v789 = vmul.f32 %v706, %v745
        %v790 = vmul.f32 %v706, %v749
        %v791 = vmul.f32 %v706, %v753
        %v792 = vmul.f32 %v706, %v757
        %v793 = vmul.f32 %v706, %v761
        %v794 = vmul.f32 %v706, %v765
        %v795 = vmul.f32 %v706, %v769
        %v796 = vmul.f32 %v706, %v773
        %v797 = vmul.f32 %v706, %v777
        %v798 = vmul.f32 %v706, %v781
        %v799 = vmul.f32 %v710, %v721
        %v800 = vmul.f32 %v710, %v725
        %v801 = vmul.f32 %v710, %v729
        %v802 = vmul.f32 %v710, %v733
        %v803 = vmul.f32 %v710, %v737
        %v804 = vmul.f32 %v710, %v741
        %v805 = vmul.f32 %v710, %v745
        %v806 = vmul.f32 %v710, %v749
        %v807 = vmul.f32 %v710, %v753
        %v808 = vmul.f32 %v710, %v757
        %v809 = vmul.f32 %v710, %v761
        %v810 = vmul.f32 %v710, %v765
        %v811 = vmul.f32 %v710, %v769
        %v812 = vmul.f32 %v710, %v773
        %v813 = vmul.f32 %v710, %v777
        %v814 = vmul.f32 %v710, %v781
        %v815 = vmul.f32 %v714, %v721
        %v816 = vmul.f32 %v714, %v725
        %v817 = vmul.f32 %v714, %v729
        %v818 = vmul.f32 %v714, %v733
        %v819 = vmul.f32 %v714, %v737
        %v820 = vmul.f32 %v714, %v741
        %v821 = vmul.f32 %v714, %v745
        %v822 = vmul.f32 %v714, %v749
        %v823 = vmul.f32 %v714, %v753
        %v824 = vmul.f32 %v714, %v757
        %v825 = vmul.f32 %v714, %v761
        %v826 = vmul.f32 %v714, %v765
        %v827 = vmul.f32 %v714, %v769
        %v828 = vmul.f32 %v714, %v773
        %v829 = vmul.f32 %v714, %v777
        %v830 = vmul.f32 %v714, %v781
        %v831 = vmul.f32 %v718, %v721
        %v832 = vmul.f32 %v718, %v725
        %v833 = vmul.f32 %v718, %v729
        %v834 = vmul.f32 %v718, %v733
        %v835 = vmul.f32 %v718, %v737
        %v836 = vmul.f32 %v718, %v741
        %v837 = vmul.f32 %v718, %v745
        %v838 = vmul.f32 %v718, %v749
        %v839 = vmul.f32 %v718, %v753
        %v840 = vmul.f32 %v718, %v757
        %v841 = vmul.f32 %v718, %v761
        %v842 = vmul.f32 %v718, %v765
        %v843 = vmul.f32 %v718, %v769
        %v844 = vmul.f32 %v718, %v773
        %v845 = vmul.f32 %v718, %v777
        %v846 = vmul.f32 %v718, %v781
        %v847 = vadd.f32 %v639, %v783
        %v848 = vadd.f32 %v640, %v784
        %v849 = vadd.f32 %v641, %v785
        %v850 = vadd.f32 %v642, %v786
        %v851 = vadd.f32 %v643, %v787
        %v852 = vadd.f32 %v644, %v788
        %v853 = vadd.f32 %v645, %v789
        %v854 = vadd.f32 %v646, %v790
        %v855 = vadd.f32 %v647, %v791
        %v856 = vadd.f32 %v648, %v792
        %v857 = vadd.f32 %v649, %v793
        %v858 = vadd.f32 %v650, %v794
        %v859 = vadd.f32 %v651, %v795
        %v860 = vadd.f32 %v652, %v796
        %v861 = vadd.f32 %v653, %v797
        %v862 = vadd.f32 %v654, %v798
        %v863 = vadd.f32 %v655, %v799
        %v864 = vadd.f32 %v656, %v800
        %v865 = vadd.f32 %v657, %v801
        %v866 = vadd.f32 %v658, %v802
        %v867 = vadd.f32 %v659, %v803
        %v868 = vadd.f32 %v660, %v804
        %v869 = vadd.f32 %v661, %v805
        %v870 = vadd.f32 %v662, %v806
        %v871 = vadd.f32 %v663, %v807
        %v872 = vadd.f32 %v664, %v808
        %v873 = vadd.f32 %v665, %v809
        %v874 = vadd.f32 %v666, %v810
        %v875 = vadd.f32 %v667, %v811
        %v876 = vadd.f32 %v668, %v812
        %v877 = vadd.f32 %v669, %v813
        %v878 = vadd.f32 %v670, %v814
        %v879 = vadd.f32 %v671, %v815
        %v880 = vadd.f32 %v672, %v816
        %v881 = vadd.f32 %v673, %v817
        %v882 = vadd.f32 %v674, %v818
        %v883 = vadd.f32 %v675, %v819
        %v884 = vadd.f32 %v676, %v820
        %v885 = vadd.f32 %v677, %v821
        %v886 = vadd.f32 %v678, %v822
        %v887 = vadd.f32 %v679, %v823
        %v888 = vadd.f32 %v680, %v824
        %v889 = vadd.f32 %v681, %v825
        %v890 = vadd.f32 %v682, %v826
        %v891 = vadd.f32 %v683, %v827
        %v892 = vadd.f32 %v684, %v828
        %v893 = vadd.f32 %v685, %v829
        %v894 = vadd.f32 %v686, %v830
        %v895 = vadd.f32 %v687, %v831
        %v896 = vadd.f32 %v688, %v832
        %v897 = vadd.f32 %v689, %v833
        %v898 = vadd.f32 %v690, %v834
        %v899 = vadd.f32 %v691, %v835
        %v900 = vadd.f32 %v692, %v836
        %v901 = vadd.f32 %v693, %v837
        %v902 = vadd.f32 %v694, %v838
        %v903 = vadd.f32 %v695, %v839
        %v904 = vadd.f32 %v696, %v840
        %v905 = vadd.f32 %v697, %v841
        %v906 = vadd.f32 %v698, %v842
        %v907 = vadd.f32 %v699, %v843
        %v908 = vadd.f32 %v700, %v844
        %v909 = vadd.f32 %v701, %v845
        %v910 = vadd.f32 %v702, %v846
        %v911 = vlaneseq
        %v912 = vshrl.u32 %v911, 7
        %v913 = vsub.s32 3, %v912
        %v914 = vrot.slane %v299, %v913
        %v915 = vlaneseq
        %v916 = vshrl.u32 %v915, 7
        %v917 = vsub.s32 3, %v916
        %v918 = vrot.slane %v300, %v917
        %v919 = vlaneseq
        %v920 = vshrl.u32 %v919, 7
        %v921 = vsub.s32 3, %v920
        %v922 = vrot.slane %v301, %v921
        %v923 = vlaneseq
        %v924 = vshrl.u32 %v923, 7
        %v925 = vsub.s32 3, %v924
        %v926 = vrot.slane %v302, %v925
        %927 = vset.pattern.permute.xlu0 3
        %928 = vperm.xlu0 %927, %v303
        %v929 = vpop.permute.xlu0 %928
        %931 = vset.pattern.permute.xlu0 3
        %932 = vperm.xlu0 %931, %v304
        %v933 = vpop.permute.xlu0 %932
        %935 = vset.pattern.permute.xlu0 3
        %936 = vperm.xlu0 %935, %v305
        %v937 = vpop.permute.xlu0 %936
        %939 = vset.pattern.permute.xlu0 3
        %940 = vperm.xlu0 %939, %v306
        %v941 = vpop.permute.xlu0 %940
        %943 = vset.pattern.permute.xlu0 3
        %944 = vperm.xlu0 %943, %v307
        %v945 = vpop.permute.xlu0 %944
        %947 = vset.pattern.permute.xlu0 3
        %948 = vperm.xlu0 %947, %v308
        %v949 = vpop.permute.xlu0 %948
        %951 = vset.pattern.permute.xlu0 3
        %952 = vperm.xlu0 %951, %v309
        %v953 = vpop.permute.xlu0 %952
        %955 = vset.pattern.permute.xlu0 3
        %956 = vperm.xlu0 %955, %v310
        %v957 = vpop.permute.xlu0 %956
        %959 = vset.pattern.permute.xlu0 3
        %960 = vperm.xlu0 %959, %v311
        %v961 = vpop.permute.xlu0 %960
        %963 = vset.pattern.permute.xlu0 3
        %964 = vperm.xlu0 %963, %v312
        %v965 = vpop.permute.xlu0 %964
        %967 = vset.pattern.permute.xlu0 3
        %968 = vperm.xlu0 %967, %v313
        %v969 = vpop.permute.xlu0 %968
        %971 = vset.pattern.permute.xlu0 3
        %972 = vperm.xlu0 %971, %v314
        %v973 = vpop.permute.xlu0 %972
        %975 = vset.pattern.permute.xlu0 3
        %976 = vperm.xlu0 %975, %v315
        %v977 = vpop.permute.xlu0 %976
        %979 = vset.pattern.permute.xlu0 3
        %980 = vperm.xlu0 %979, %v316
        %v981 = vpop.permute.xlu0 %980
        %983 = vset.pattern.permute.xlu0 3
        %984 = vperm.xlu0 %983, %v317
        %v985 = vpop.permute.xlu0 %984
        %987 = vset.pattern.permute.xlu0 3
        %988 = vperm.xlu0 %987, %v318
        %v989 = vpop.permute.xlu0 %988
        %v991 = vmul.f32 %v914, %v929
        %v992 = vmul.f32 %v914, %v933
        %v993 = vmul.f32 %v914, %v937
        %v994 = vmul.f32 %v914, %v941
        %v995 = vmul.f32 %v914, %v945
        %v996 = vmul.f32 %v914, %v949
        %v997 = vmul.f32 %v914, %v953
        %v998 = vmul.f32 %v914, %v957
        %v999 = vmul.f32 %v914, %v961
        %v1000 = vmul.f32 %v914, %v965
        %v1001 = vmul.f32 %v914, %v969
        %v1002 = vmul.f32 %v914, %v973
        %v1003 = vmul.f32 %v914, %v977
        %v1004 = vmul.f32 %v914, %v981
        %v1005 = vmul.f32 %v914, %v985
        %v1006 = vmul.f32 %v914, %v989
        %v1007 = vmul.f32 %v918, %v929
        %v1008 = vmul.f32 %v918, %v933
        %v1009 = vmul.f32 %v918, %v937
        %v1010 = vmul.f32 %v918, %v941
        %v1011 = vmul.f32 %v918, %v945
        %v1012 = vmul.f32 %v918, %v949
        %v1013 = vmul.f32 %v918, %v953
        %v1014 = vmul.f32 %v918, %v957
        %v1015 = vmul.f32 %v918, %v961
        %v1016 = vmul.f32 %v918, %v965
        %v1017 = vmul.f32 %v918, %v969
        %v1018 = vmul.f32 %v918, %v973
        %v1019 = vmul.f32 %v918, %v977
        %v1020 = vmul.f32 %v918, %v981
        %v1021 = vmul.f32 %v918, %v985
        %v1022 = vmul.f32 %v918, %v989
        %v1023 = vmul.f32 %v922, %v929
        %v1024 = vmul.f32 %v922, %v933
        %v1025 = vmul.f32 %v922, %v937
        %v1026 = vmul.f32 %v922, %v941
        %v1027 = vmul.f32 %v922, %v945
        %v1028 = vmul.f32 %v922, %v949
        %v1029 = vmul.f32 %v922, %v953
        %v1030 = vmul.f32 %v922, %v957
        %v1031 = vmul.f32 %v922, %v961
        %v1032 = vmul.f32 %v922, %v965
        %v1033 = vmul.f32 %v922, %v969
        %v1034 = vmul.f32 %v922, %v973
        %v1035 = vmul.f32 %v922, %v977
        %v1036 = vmul.f32 %v922, %v981
        %v1037 = vmul.f32 %v922, %v985
        %v1038 = vmul.f32 %v922, %v989
        %v1039 = vmul.f32 %v926, %v929
        %v1040 = vmul.f32 %v926, %v933
        %v1041 = vmul.f32 %v926, %v937
        %v1042 = vmul.f32 %v926, %v941
        %v1043 = vmul.f32 %v926, %v945
        %v1044 = vmul.f32 %v926, %v949
        %v1045 = vmul.f32 %v926, %v953
        %v1046 = vmul.f32 %v926, %v957
        %v1047 = vmul.f32 %v926, %v961
        %v1048 = vmul.f32 %v926, %v965
        %v1049 = vmul.f32 %v926, %v969
        %v1050 = vmul.f32 %v926, %v973
        %v1051 = vmul.f32 %v926, %v977
        %v1052 = vmul.f32 %v926, %v981
        %v1053 = vmul.f32 %v926, %v985
        %v1054 = vmul.f32 %v926, %v989
        %v1055 = vadd.f32 %v847, %v991
        %v1056 = vadd.f32 %v848, %v992
        %v1057 = vadd.f32 %v849, %v993
        %v1058 = vadd.f32 %v850, %v994
        %v1059 = vadd.f32 %v851, %v995
        %v1060 = vadd.f32 %v852, %v996
        %v1061 = vadd.f32 %v853, %v997
        %v1062 = vadd.f32 %v854, %v998
        %v1063 = vadd.f32 %v855, %v999
        %v1064 = vadd.f32 %v856, %v1000
        %v1065 = vadd.f32 %v857, %v1001
        %v1066 = vadd.f32 %v858, %v1002
        %v1067 = vadd.f32 %v859, %v1003
        %v1068 = vadd.f32 %v860, %v1004
        %v1069 = vadd.f32 %v861, %v1005
        %v1070 = vadd.f32 %v862, %v1006
        %v1071 = vadd.f32 %v863, %v1007
        %v1072 = vadd.f32 %v864, %v1008
        %v1073 = vadd.f32 %v865, %v1009
        %v1074 = vadd.f32 %v866, %v1010
        %v1075 = vadd.f32 %v867, %v1011
        %v1076 = vadd.f32 %v868, %v1012
        %v1077 = vadd.f32 %v869, %v1013
        %v1078 = vadd.f32 %v870, %v1014
        %v1079 = vadd.f32 %v871, %v1015
        %v1080 = vadd.f32 %v872, %v1016
        %v1081 = vadd.f32 %v873, %v1017
        %v1082 = vadd.f32 %v874, %v1018
        %v1083 = vadd.f32 %v875, %v1019
        %v1084 = vadd.f32 %v876, %v1020
        %v1085 = vadd.f32 %v877, %v1021
        %v1086 = vadd.f32 %v878, %v1022
        %v1087 = vadd.f32 %v879, %v1023
        %v1088 = vadd.f32 %v880, %v1024
        %v1089 = vadd.f32 %v881, %v1025
        %v1090 = vadd.f32 %v882, %v1026
        %v1091 = vadd.f32 %v883, %v1027
        %v1092 = vadd.f32 %v884, %v1028
        %v1093 = vadd.f32 %v885, %v1029
        %v1094 = vadd.f32 %v886, %v1030
        %v1095 = vadd.f32 %v887, %v1031
        %v1096 = vadd.f32 %v888, %v1032
        %v1097 = vadd.f32 %v889, %v1033
        %v1098 = vadd.f32 %v890, %v1034
        %v1099 = vadd.f32 %v891, %v1035
        %v1100 = vadd.f32 %v892, %v1036
        %v1101 = vadd.f32 %v893, %v1037
        %v1102 = vadd.f32 %v894, %v1038
        %v1103 = vadd.f32 %v895, %v1039
        %v1104 = vadd.f32 %v896, %v1040
        %v1105 = vadd.f32 %v897, %v1041
        %v1106 = vadd.f32 %v898, %v1042
        %v1107 = vadd.f32 %v899, %v1043
        %v1108 = vadd.f32 %v900, %v1044
        %v1109 = vadd.f32 %v901, %v1045
        %v1110 = vadd.f32 %v902, %v1046
        %v1111 = vadd.f32 %v903, %v1047
        %v1112 = vadd.f32 %v904, %v1048
        %v1113 = vadd.f32 %v905, %v1049
        %v1114 = vadd.f32 %v906, %v1050
        %v1115 = vadd.f32 %v907, %v1051
        %v1116 = vadd.f32 %v908, %v1052
        %v1117 = vadd.f32 %v909, %v1053
        %v1118 = vadd.f32 %v910, %v1054
        %1120 = vset.pattern.permute.xlu0 0
        %1121 = vperm.xlu0 %1120, %v319
        %v1122 = vpop.permute.xlu0 %1121
        %1125 = vset.pattern.permute.xlu0 0
        %1126 = vperm.xlu0 %1125, %v320
        %v1127 = vpop.permute.xlu0 %1126
        %1130 = vset.pattern.permute.xlu0 0
        %1131 = vperm.xlu0 %1130, %v321
        %v1132 = vpop.permute.xlu0 %1131
        %1135 = vset.pattern.permute.xlu0 0
        %1136 = vperm.xlu0 %1135, %v322
        %v1137 = vpop.permute.xlu0 %1136
        %1140 = vset.pattern.permute.xlu0 0
        %1141 = vperm.xlu0 %1140, %v323
        %v1142 = vpop.permute.xlu0 %1141
        %1145 = vset.pattern.permute.xlu0 0
        %1146 = vperm.xlu0 %1145, %v324
        %v1147 = vpop.permute.xlu0 %1146
        %1150 = vset.pattern.permute.xlu0 0
        %1151 = vperm.xlu0 %1150, %v325
        %v1152 = vpop.permute.xlu0 %1151
        %1155 = vset.pattern.permute.xlu0 0
        %1156 = vperm.xlu0 %1155, %v326
        %v1157 = vpop.permute.xlu0 %1156
        %1160 = vset.pattern.permute.xlu0 0
        %1161 = vperm.xlu0 %1160, %v327
        %v1162 = vpop.permute.xlu0 %1161
        %1165 = vset.pattern.permute.xlu0 0
        %1166 = vperm.xlu0 %1165, %v328
        %v1167 = vpop.permute.xlu0 %1166
        %1170 = vset.pattern.permute.xlu0 0
        %1171 = vperm.xlu0 %1170, %v329
        %v1172 = vpop.permute.xlu0 %1171
        %1175 = vset.pattern.permute.xlu0 0
        %1176 = vperm.xlu0 %1175, %v330
        %v1177 = vpop.permute.xlu0 %1176
        %1180 = vset.pattern.permute.xlu0 0
        %1181 = vperm.xlu0 %1180, %v331
        %v1182 = vpop.permute.xlu0 %1181
        %1185 = vset.pattern.permute.xlu0 0
        %1186 = vperm.xlu0 %1185, %v332
        %v1187 = vpop.permute.xlu0 %1186
        %1190 = vset.pattern.permute.xlu0 0
        %1191 = vperm.xlu0 %1190, %v333
        %v1192 = vpop.permute.xlu0 %1191
        %1195 = vset.pattern.permute.xlu0 0
        %1196 = vperm.xlu0 %1195, %v334
        %v1197 = vpop.permute.xlu0 %1196
        %v1199 = vadd.f32 %v1055, %v1122
        %v1200 = vadd.f32 %v1056, %v1127
        %v1201 = vadd.f32 %v1057, %v1132
        %v1202 = vadd.f32 %v1058, %v1137
        %v1203 = vadd.f32 %v1059, %v1142
        %v1204 = vadd.f32 %v1060, %v1147
        %v1205 = vadd.f32 %v1061, %v1152
        %v1206 = vadd.f32 %v1062, %v1157
        %v1207 = vadd.f32 %v1063, %v1162
        %v1208 = vadd.f32 %v1064, %v1167
        %v1209 = vadd.f32 %v1065, %v1172
        %v1210 = vadd.f32 %v1066, %v1177
        %v1211 = vadd.f32 %v1067, %v1182
        %v1212 = vadd.f32 %v1068, %v1187
        %v1213 = vadd.f32 %v1069, %v1192
        %v1214 = vadd.f32 %v1070, %v1197
        %v1215 = vadd.f32 %v1071, %v1122
        %v1216 = vadd.f32 %v1072, %v1127
        %v1217 = vadd.f32 %v1073, %v1132
        %v1218 = vadd.f32 %v1074, %v1137
        %v1219 = vadd.f32 %v1075, %v1142
        %v1220 = vadd.f32 %v1076, %v1147
        %v1221 = vadd.f32 %v1077, %v1152
        %v1222 = vadd.f32 %v1078, %v1157
        %v1223 = vadd.f32 %v1079, %v1162
        %v1224 = vadd.f32 %v1080, %v1167
        %v1225 = vadd.f32 %v1081, %v1172
        %v1226 = vadd.f32 %v1082, %v1177
        %v1227 = vadd.f32 %v1083, %v1182
        %v1228 = vadd.f32 %v1084, %v1187
        %v1229 = vadd.f32 %v1085, %v1192
        %v1230 = vadd.f32 %v1086, %v1197
        %v1231 = vadd.f32 %v1087, %v1122
        %v1232 = vadd.f32 %v1088, %v1127
        %v1233 = vadd.f32 %v1089, %v1132
        %v1234 = vadd.f32 %v1090, %v1137
        %v1235 = vadd.f32 %v1091, %v1142
        %v1236 = vadd.f32 %v1092, %v1147
        %v1237 = vadd.f32 %v1093, %v1152
        %v1238 = vadd.f32 %v1094, %v1157
        %v1239 = vadd.f32 %v1095, %v1162
        %v1240 = vadd.f32 %v1096, %v1167
        %v1241 = vadd.f32 %v1097, %v1172
        %v1242 = vadd.f32 %v1098, %v1177
        %v1243 = vadd.f32 %v1099, %v1182
        %v1244 = vadd.f32 %v1100, %v1187
        %v1245 = vadd.f32 %v1101, %v1192
        %v1246 = vadd.f32 %v1102, %v1197
        %v1247 = vadd.f32 %v1103, %v1122
        %v1248 = vadd.f32 %v1104, %v1127
        %v1249 = vadd.f32 %v1105, %v1132
        %v1250 = vadd.f32 %v1106, %v1137
        %v1251 = vadd.f32 %v1107, %v1142
        %v1252 = vadd.f32 %v1108, %v1147
        %v1253 = vadd.f32 %v1109, %v1152
        %v1254 = vadd.f32 %v1110, %v1157
        %v1255 = vadd.f32 %v1111, %v1162
        %v1256 = vadd.f32 %v1112, %v1167
        %v1257 = vadd.f32 %v1113, %v1172
        %v1258 = vadd.f32 %v1114, %v1177
        %v1259 = vadd.f32 %v1115, %v1182
        %v1260 = vadd.f32 %v1116, %v1187
        %v1261 = vadd.f32 %v1117, %v1192
        %v1262 = vadd.f32 %v1118, %v1197
        %v1263 = vmax.f32 %v1199, 0.0
        %v1264 = vmax.f32 %v1200, 0.0
        %v1265 = vmax.f32 %v1201, 0.0
        %v1266 = vmax.f32 %v1202, 0.0
        %v1267 = vmax.f32 %v1203, 0.0
        %v1268 = vmax.f32 %v1204, 0.0
        %v1269 = vmax.f32 %v1205, 0.0
        %v1270 = vmax.f32 %v1206, 0.0
        %v1271 = vmax.f32 %v1207, 0.0
        %v1272 = vmax.f32 %v1208, 0.0
        %v1273 = vmax.f32 %v1209, 0.0
        %v1274 = vmax.f32 %v1210, 0.0
        %v1275 = vmax.f32 %v1211, 0.0
        %v1276 = vmax.f32 %v1212, 0.0
        %v1277 = vmax.f32 %v1213, 0.0
        %v1278 = vmax.f32 %v1214, 0.0
        %v1279 = vmax.f32 %v1215, 0.0
        %v1280 = vmax.f32 %v1216, 0.0
        %v1281 = vmax.f32 %v1217, 0.0
        %v1282 = vmax.f32 %v1218, 0.0
        %v1283 = vmax.f32 %v1219, 0.0
        %v1284 = vmax.f32 %v1220, 0.0
        %v1285 = vmax.f32 %v1221, 0.0
        %v1286 = vmax.f32 %v1222, 0.0
        %v1287 = vmax.f32 %v1223, 0.0
        %v1288 = vmax.f32 %v1224, 0.0
        %v1289 = vmax.f32 %v1225, 0.0
        %v1290 = vmax.f32 %v1226, 0.0
        %v1291 = vmax.f32 %v1227, 0.0
        %v1292 = vmax.f32 %v1228, 0.0
        %v1293 = vmax.f32 %v1229, 0.0
        %v1294 = vmax.f32 %v1230, 0.0
        %v1295 = vmax.f32 %v1231, 0.0
        %v1296 = vmax.f32 %v1232, 0.0
        %v1297 = vmax.f32 %v1233, 0.0
        %v1298 = vmax.f32 %v1234, 0.0
        %v1299 = vmax.f32 %v1235, 0.0
        %v1300 = vmax.f32 %v1236, 0.0
        %v1301 = vmax.f32 %v1237, 0.0
        %v1302 = vmax.f32 %v1238, 0.0
        %v1303 = vmax.f32 %v1239, 0.0
        %v1304 = vmax.f32 %v1240, 0.0
        %v1305 = vmax.f32 %v1241, 0.0
        %v1306 = vmax.f32 %v1242, 0.0
        %v1307 = vmax.f32 %v1243, 0.0
        %v1308 = vmax.f32 %v1244, 0.0
        %v1309 = vmax.f32 %v1245, 0.0
        %v1310 = vmax.f32 %v1246, 0.0
        %v1311 = vmax.f32 %v1247, 0.0
        %v1312 = vmax.f32 %v1248, 0.0
        %v1313 = vmax.f32 %v1249, 0.0
        %v1314 = vmax.f32 %v1250, 0.0
        %v1315 = vmax.f32 %v1251, 0.0
        %v1316 = vmax.f32 %v1252, 0.0
        %v1317 = vmax.f32 %v1253, 0.0
        %v1318 = vmax.f32 %v1254, 0.0
        %v1319 = vmax.f32 %v1255, 0.0
        %v1320 = vmax.f32 %v1256, 0.0
        %v1321 = vmax.f32 %v1257, 0.0
        %v1322 = vmax.f32 %v1258, 0.0
        %v1323 = vmax.f32 %v1259, 0.0
        %v1324 = vmax.f32 %v1260, 0.0
        %v1325 = vmax.f32 %v1261, 0.0
        %v1326 = vmax.f32 %v1262, 0.0
        %v1327 = vld [vmem:[#allocation2] sm:$0xf]
        %1328 = vadd.xlane.f32.xlu0 %v1263
        %v1329 = vpop.xlane.xlu0 %1328
        %1330 = vadd.xlane.f32.xlu0 %v1264
        %v1331 = vpop.xlane.xlu0 %1330
        %1332 = vadd.xlane.f32.xlu0 %v1265
        %v1333 = vpop.xlane.xlu0 %1332
        %1334 = vadd.xlane.f32.xlu0 %v1266
        %v1335 = vpop.xlane.xlu0 %1334
        %1336 = vadd.xlane.f32.xlu0 %v1267
        %v1337 = vpop.xlane.xlu0 %1336
        %1338 = vadd.xlane.f32.xlu0 %v1268
        %v1339 = vpop.xlane.xlu0 %1338
        %1340 = vadd.xlane.f32.xlu0 %v1269
        %v1341 = vpop.xlane.xlu0 %1340
        %1342 = vadd.xlane.f32.xlu0 %v1270
        %v1343 = vpop.xlane.xlu0 %1342
        %1344 = vadd.xlane.f32.xlu0 %v1271
        %v1345 = vpop.xlane.xlu0 %1344
        %1346 = vadd.xlane.f32.xlu0 %v1272
        %v1347 = vpop.xlane.xlu0 %1346
        %1348 = vadd.xlane.f32.xlu0 %v1273
        %v1349 = vpop.xlane.xlu0 %1348
        %1350 = vadd.xlane.f32.xlu0 %v1274
        %v1351 = vpop.xlane.xlu0 %1350
        %1352 = vadd.xlane.f32.xlu0 %v1275
        %v1353 = vpop.xlane.xlu0 %1352
        %1354 = vadd.xlane.f32.xlu0 %v1276
        %v1355 = vpop.xlane.xlu0 %1354
        %1356 = vadd.xlane.f32.xlu0 %v1277
        %v1357 = vpop.xlane.xlu0 %1356
        %1358 = vadd.xlane.f32.xlu0 %v1278
        %v1359 = vpop.xlane.xlu0 %1358
        %1360 = vadd.xlane.f32.xlu0 %v1279
        %v1361 = vpop.xlane.xlu0 %1360
        %1362 = vadd.xlane.f32.xlu0 %v1280
        %v1363 = vpop.xlane.xlu0 %1362
        %1364 = vadd.xlane.f32.xlu0 %v1281
        %v1365 = vpop.xlane.xlu0 %1364
        %1366 = vadd.xlane.f32.xlu0 %v1282
        %v1367 = vpop.xlane.xlu0 %1366
        %1368 = vadd.xlane.f32.xlu0 %v1283
        %v1369 = vpop.xlane.xlu0 %1368
        %1370 = vadd.xlane.f32.xlu0 %v1284
        %v1371 = vpop.xlane.xlu0 %1370
        %1372 = vadd.xlane.f32.xlu0 %v1285
        %v1373 = vpop.xlane.xlu0 %1372
        %1374 = vadd.xlane.f32.xlu0 %v1286
        %v1375 = vpop.xlane.xlu0 %1374
        %1376 = vadd.xlane.f32.xlu0 %v1287
        %v1377 = vpop.xlane.xlu0 %1376
        %1378 = vadd.xlane.f32.xlu0 %v1288
        %v1379 = vpop.xlane.xlu0 %1378
        %1380 = vadd.xlane.f32.xlu0 %v1289
        %v1381 = vpop.xlane.xlu0 %1380
        %1382 = vadd.xlane.f32.xlu0 %v1290
        %v1383 = vpop.xlane.xlu0 %1382
        %1384 = vadd.xlane.f32.xlu0 %v1291
        %v1385 = vpop.xlane.xlu0 %1384
        %1386 = vadd.xlane.f32.xlu0 %v1292
        %v1387 = vpop.xlane.xlu0 %1386
        %1388 = vadd.xlane.f32.xlu0 %v1293
        %v1389 = vpop.xlane.xlu0 %1388
        %1390 = vadd.xlane.f32.xlu0 %v1294
        %v1391 = vpop.xlane.xlu0 %1390
        %1392 = vadd.xlane.f32.xlu0 %v1295
        %v1393 = vpop.xlane.xlu0 %1392
        %1394 = vadd.xlane.f32.xlu0 %v1296
        %v1395 = vpop.xlane.xlu0 %1394
        %1396 = vadd.xlane.f32.xlu0 %v1297
        %v1397 = vpop.xlane.xlu0 %1396
        %1398 = vadd.xlane.f32.xlu0 %v1298
        %v1399 = vpop.xlane.xlu0 %1398
        %1400 = vadd.xlane.f32.xlu0 %v1299
        %v1401 = vpop.xlane.xlu0 %1400
        %1402 = vadd.xlane.f32.xlu0 %v1300
        %v1403 = vpop.xlane.xlu0 %1402
        %1404 = vadd.xlane.f32.xlu0 %v1301
        %v1405 = vpop.xlane.xlu0 %1404
        %1406 = vadd.xlane.f32.xlu0 %v1302
        %v1407 = vpop.xlane.xlu0 %1406
        %1408 = vadd.xlane.f32.xlu0 %v1303
        %v1409 = vpop.xlane.xlu0 %1408
        %1410 = vadd.xlane.f32.xlu0 %v1304
        %v1411 = vpop.xlane.xlu0 %1410
        %1412 = vadd.xlane.f32.xlu0 %v1305
        %v1413 = vpop.xlane.xlu0 %1412
        %1414 = vadd.xlane.f32.xlu0 %v1306
        %v1415 = vpop.xlane.xlu0 %1414
        %1416 = vadd.xlane.f32.xlu0 %v1307
        %v1417 = vpop.xlane.xlu0 %1416
        %1418 = vadd.xlane.f32.xlu0 %v1308
        %v1419 = vpop.xlane.xlu0 %1418
        %1420 = vadd.xlane.f32.xlu0 %v1309
        %v1421 = vpop.xlane.xlu0 %1420
        %1422 = vadd.xlane.f32.xlu0 %v1310
        %v1423 = vpop.xlane.xlu0 %1422
        %1424 = vadd.xlane.f32.xlu0 %v1311
        %v1425 = vpop.xlane.xlu0 %1424
        %1426 = vadd.xlane.f32.xlu0 %v1312
        %v1427 = vpop.xlane.xlu0 %1426
        %1428 = vadd.xlane.f32.xlu0 %v1313
        %v1429 = vpop.xlane.xlu0 %1428
        %1430 = vadd.xlane.f32.xlu0 %v1314
        %v1431 = vpop.xlane.xlu0 %1430
        %1432 = vadd.xlane.f32.xlu0 %v1315
        %v1433 = vpop.xlane.xlu0 %1432
        %1434 = vadd.xlane.f32.xlu0 %v1316
        %v1435 = vpop.xlane.xlu0 %1434
        %1436 = vadd.xlane.f32.xlu0 %v1317
        %v1437 = vpop.xlane.xlu0 %1436
        %1438 = vadd.xlane.f32.xlu0 %v1318
        %v1439 = vpop.xlane.xlu0 %1438
        %1440 = vadd.xlane.f32.xlu0 %v1319
        %v1441 = vpop.xlane.xlu0 %1440
        %1442 = vadd.xlane.f32.xlu0 %v1320
        %v1443 = vpop.xlane.xlu0 %1442
        %1444 = vadd.xlane.f32.xlu0 %v1321
        %v1445 = vpop.xlane.xlu0 %1444
        %1446 = vadd.xlane.f32.xlu0 %v1322
        %v1447 = vpop.xlane.xlu0 %1446
        %1448 = vadd.xlane.f32.xlu0 %v1323
        %v1449 = vpop.xlane.xlu0 %1448
        %1450 = vadd.xlane.f32.xlu0 %v1324
        %v1451 = vpop.xlane.xlu0 %1450
        %1452 = vadd.xlane.f32.xlu0 %v1325
        %v1453 = vpop.xlane.xlu0 %1452
        %1454 = vadd.xlane.f32.xlu0 %v1326
        %v1455 = vpop.xlane.xlu0 %1454
        %v1520 = vlaneseq
        %v1521 = vand.u32 %v1520, 127
        %v1522 = vlaneseq
        %v1523 = vshrl.u32 %v1522, 7
        %v1524 = vsub.s32 %v1521, %v1523
        %v1525 = vrot.slane %v1329, %v1524
        %v1526 = vadd.s32 %v1521, 4294967288
        %v1527 = vlaneseq
        %v1528 = vshrl.u32 %v1527, 7
        %v1529 = vsub.s32 %v1526, %v1528
        %v1530 = vrot.slane %v1331, %v1529
        %vm1531 = vcmask 130112
        %v1532 = vsel %vm1531, %v1530, %v1525
        %v1533 = vadd.s32 %v1521, 4294967280
        %v1534 = vlaneseq
        %v1535 = vshrl.u32 %v1534, 7
        %v1536 = vsub.s32 %v1533, %v1535
        %v1537 = vrot.slane %v1333, %v1536
        %vm1538 = vcmask 195712
        %v1539 = vsel %vm1538, %v1537, %v1532
        %v1540 = vadd.s32 %v1521, 4294967272
        %v1541 = vlaneseq
        %v1542 = vshrl.u32 %v1541, 7
        %v1543 = vsub.s32 %v1540, %v1542
        %v1544 = vrot.slane %v1335, %v1543
        %vm1545 = vcmask 261312
        %v1546 = vsel %vm1545, %v1544, %v1539
        %v1547 = vadd.s32 %v1521, 4294967264
        %v1548 = vlaneseq
        %v1549 = vshrl.u32 %v1548, 7
        %v1550 = vsub.s32 %v1547, %v1549
        %v1551 = vrot.slane %v1337, %v1550
        %vm1552 = vcmask 326912
        %v1553 = vsel %vm1552, %v1551, %v1546
        %v1554 = vadd.s32 %v1521, 4294967256
        %v1555 = vlaneseq
        %v1556 = vshrl.u32 %v1555, 7
        %v1557 = vsub.s32 %v1554, %v1556
        %v1558 = vrot.slane %v1339, %v1557
        %vm1559 = vcmask 392512
        %v1560 = vsel %vm1559, %v1558, %v1553
        %v1561 = vadd.s32 %v1521, 4294967248
        %v1562 = vlaneseq
        %v1563 = vshrl.u32 %v1562, 7
        %v1564 = vsub.s32 %v1561, %v1563
        %v1565 = vrot.slane %v1341, %v1564
        %vm1566 = vcmask 458112
        %v1567 = vsel %vm1566, %v1565, %v1560
        %v1568 = vadd.s32 %v1521, 4294967240
        %v1569 = vlaneseq
        %v1570 = vshrl.u32 %v1569, 7
        %v1571 = vsub.s32 %v1568, %v1570
        %v1572 = vrot.slane %v1343, %v1571
        %vm1573 = vcmask 523712
        %v1574 = vsel %vm1573, %v1572, %v1567
        %v1575 = vadd.s32 %v1521, 4294967232
        %v1576 = vlaneseq
        %v1577 = vshrl.u32 %v1576, 7
        %v1578 = vsub.s32 %v1575, %v1577
        %v1579 = vrot.slane %v1345, %v1578
        %vm1580 = vcmask 589312
        %v1581 = vsel %vm1580, %v1579, %v1574
        %v1582 = vadd.s32 %v1521, 4294967224
        %v1583 = vlaneseq
        %v1584 = vshrl.u32 %v1583, 7
        %v1585 = vsub.s32 %v1582, %v1584
        %v1586 = vrot.slane %v1347, %v1585
        %vm1587 = vcmask 654912
        %v1588 = vsel %vm1587, %v1586, %v1581
        %v1589 = vadd.s32 %v1521, 4294967216
        %v1590 = vlaneseq
        %v1591 = vshrl.u32 %v1590, 7
        %v1592 = vsub.s32 %v1589, %v1591
        %v1593 = vrot.slane %v1349, %v1592
        %vm1594 = vcmask 720512
        %v1595 = vsel %vm1594, %v1593, %v1588
        %v1596 = vadd.s32 %v1521, 4294967208
        %v1597 = vlaneseq
        %v1598 = vshrl.u32 %v1597, 7
        %v1599 = vsub.s32 %v1596, %v1598
        %v1600 = vrot.slane %v1351, %v1599
        %vm1601 = vcmask 786112
        %v1602 = vsel %vm1601, %v1600, %v1595
        %v1603 = vadd.s32 %v1521, 4294967200
        %v1604 = vlaneseq
        %v1605 = vshrl.u32 %v1604, 7
        %v1606 = vsub.s32 %v1603, %v1605
        %v1607 = vrot.slane %v1353, %v1606
        %vm1608 = vcmask 851712
        %v1609 = vsel %vm1608, %v1607, %v1602
        %v1610 = vadd.s32 %v1521, 4294967192
        %v1611 = vlaneseq
        %v1612 = vshrl.u32 %v1611, 7
        %v1613 = vsub.s32 %v1610, %v1612
        %v1614 = vrot.slane %v1355, %v1613
        %vm1615 = vcmask 917312
        %v1616 = vsel %vm1615, %v1614, %v1609
        %v1617 = vadd.s32 %v1521, 4294967184
        %v1618 = vlaneseq
        %v1619 = vshrl.u32 %v1618, 7
        %v1620 = vsub.s32 %v1617, %v1619
        %v1621 = vrot.slane %v1357, %v1620
        %vm1622 = vcmask 982912
        %v1623 = vsel %vm1622, %v1621, %v1616
        %v1624 = vadd.s32 %v1521, 4294967176
        %v1625 = vlaneseq
        %v1626 = vshrl.u32 %v1625, 7
        %v1627 = vsub.s32 %v1624, %v1626
        %v1628 = vrot.slane %v1359, %v1627
        %vm1629 = vcmask 1048512
        %v1630 = vsel %vm1629, %v1628, %v1623
        %v1631 = vlaneseq
        %v1632 = vshrl.u32 %v1631, 7
        %v1633 = vsub.s32 %v1521, %v1632
        %v1634 = vrot.slane %v1361, %v1633
        %v1635 = vlaneseq
        %v1636 = vshrl.u32 %v1635, 7
        %v1637 = vsub.s32 %v1526, %v1636
        %v1638 = vrot.slane %v1363, %v1637
        %v1639 = vsel %vm1531, %v1638, %v1634
        %v1640 = vlaneseq
        %v1641 = vshrl.u32 %v1640, 7
        %v1642 = vsub.s32 %v1533, %v1641
        %v1643 = vrot.slane %v1365, %v1642
        %v1644 = vsel %vm1538, %v1643, %v1639
        %v1645 = vlaneseq
        %v1646 = vshrl.u32 %v1645, 7
        %v1647 = vsub.s32 %v1540, %v1646
        %v1648 = vrot.slane %v1367, %v1647
        %v1649 = vsel %vm1545, %v1648, %v1644
        %v1650 = vlaneseq
        %v1651 = vshrl.u32 %v1650, 7
        %v1652 = vsub.s32 %v1547, %v1651
        %v1653 = vrot.slane %v1369, %v1652
        %v1654 = vsel %vm1552, %v1653, %v1649
        %v1655 = vlaneseq
        %v1656 = vshrl.u32 %v1655, 7
        %v1657 = vsub.s32 %v1554, %v1656
        %v1658 = vrot.slane %v1371, %v1657
        %v1659 = vsel %vm1559, %v1658, %v1654
        %v1660 = vlaneseq
        %v1661 = vshrl.u32 %v1660, 7
        %v1662 = vsub.s32 %v1561, %v1661
        %v1663 = vrot.slane %v1373, %v1662
        %v1664 = vsel %vm1566, %v1663, %v1659
        %v1665 = vlaneseq
        %v1666 = vshrl.u32 %v1665, 7
        %v1667 = vsub.s32 %v1568, %v1666
        %v1668 = vrot.slane %v1375, %v1667
        %v1669 = vsel %vm1573, %v1668, %v1664
        %v1670 = vlaneseq
        %v1671 = vshrl.u32 %v1670, 7
        %v1672 = vsub.s32 %v1575, %v1671
        %v1673 = vrot.slane %v1377, %v1672
        %v1674 = vsel %vm1580, %v1673, %v1669
        %v1675 = vlaneseq
        %v1676 = vshrl.u32 %v1675, 7
        %v1677 = vsub.s32 %v1582, %v1676
        %v1678 = vrot.slane %v1379, %v1677
        %v1679 = vsel %vm1587, %v1678, %v1674
        %v1680 = vlaneseq
        %v1681 = vshrl.u32 %v1680, 7
        %v1682 = vsub.s32 %v1589, %v1681
        %v1683 = vrot.slane %v1381, %v1682
        %v1684 = vsel %vm1594, %v1683, %v1679
        %v1685 = vlaneseq
        %v1686 = vshrl.u32 %v1685, 7
        %v1687 = vsub.s32 %v1596, %v1686
        %v1688 = vrot.slane %v1383, %v1687
        %v1689 = vsel %vm1601, %v1688, %v1684
        %v1690 = vlaneseq
        %v1691 = vshrl.u32 %v1690, 7
        %v1692 = vsub.s32 %v1603, %v1691
        %v1693 = vrot.slane %v1385, %v1692
        %v1694 = vsel %vm1608, %v1693, %v1689
        %v1695 = vlaneseq
        %v1696 = vshrl.u32 %v1695, 7
        %v1697 = vsub.s32 %v1610, %v1696
        %v1698 = vrot.slane %v1387, %v1697
        %v1699 = vsel %vm1615, %v1698, %v1694
        %v1700 = vlaneseq
        %v1701 = vshrl.u32 %v1700, 7
        %v1702 = vsub.s32 %v1617, %v1701
        %v1703 = vrot.slane %v1389, %v1702
        %v1704 = vsel %vm1622, %v1703, %v1699
        %v1705 = vlaneseq
        %v1706 = vshrl.u32 %v1705, 7
        %v1707 = vsub.s32 %v1624, %v1706
        %v1708 = vrot.slane %v1391, %v1707
        %v1709 = vsel %vm1629, %v1708, %v1704
        %v1710 = vlaneseq
        %v1711 = vshrl.u32 %v1710, 7
        %v1712 = vsub.s32 %v1521, %v1711
        %v1713 = vrot.slane %v1393, %v1712
        %v1714 = vlaneseq
        %v1715 = vshrl.u32 %v1714, 7
        %v1716 = vsub.s32 %v1526, %v1715
        %v1717 = vrot.slane %v1395, %v1716
        %v1718 = vsel %vm1531, %v1717, %v1713
        %v1719 = vlaneseq
        %v1720 = vshrl.u32 %v1719, 7
        %v1721 = vsub.s32 %v1533, %v1720
        %v1722 = vrot.slane %v1397, %v1721
        %v1723 = vsel %vm1538, %v1722, %v1718
        %v1724 = vlaneseq
        %v1725 = vshrl.u32 %v1724, 7
        %v1726 = vsub.s32 %v1540, %v1725
        %v1727 = vrot.slane %v1399, %v1726
        %v1728 = vsel %vm1545, %v1727, %v1723
        %v1729 = vlaneseq
        %v1730 = vshrl.u32 %v1729, 7
        %v1731 = vsub.s32 %v1547, %v1730
        %v1732 = vrot.slane %v1401, %v1731
        %v1733 = vsel %vm1552, %v1732, %v1728
        %v1734 = vlaneseq
        %v1735 = vshrl.u32 %v1734, 7
        %v1736 = vsub.s32 %v1554, %v1735
        %v1737 = vrot.slane %v1403, %v1736
        %v1738 = vsel %vm1559, %v1737, %v1733
        %v1739 = vlaneseq
        %v1740 = vshrl.u32 %v1739, 7
        %v1741 = vsub.s32 %v1561, %v1740
        %v1742 = vrot.slane %v1405, %v1741
        %v1743 = vsel %vm1566, %v1742, %v1738
        %v1744 = vlaneseq
        %v1745 = vshrl.u32 %v1744, 7
        %v1746 = vsub.s32 %v1568, %v1745
        %v1747 = vrot.slane %v1407, %v1746
        %v1748 = vsel %vm1573, %v1747, %v1743
        %v1749 = vlaneseq
        %v1750 = vshrl.u32 %v1749, 7
        %v1751 = vsub.s32 %v1575, %v1750
        %v1752 = vrot.slane %v1409, %v1751
        %v1753 = vsel %vm1580, %v1752, %v1748
        %v1754 = vlaneseq
        %v1755 = vshrl.u32 %v1754, 7
        %v1756 = vsub.s32 %v1582, %v1755
        %v1757 = vrot.slane %v1411, %v1756
        %v1758 = vsel %vm1587, %v1757, %v1753
        %v1759 = vlaneseq
        %v1760 = vshrl.u32 %v1759, 7
        %v1761 = vsub.s32 %v1589, %v1760
        %v1762 = vrot.slane %v1413, %v1761
        %v1763 = vsel %vm1594, %v1762, %v1758
        %v1764 = vlaneseq
        %v1765 = vshrl.u32 %v1764, 7
        %v1766 = vsub.s32 %v1596, %v1765
        %v1767 = vrot.slane %v1415, %v1766
        %v1768 = vsel %vm1601, %v1767, %v1763
        %v1769 = vlaneseq
        %v1770 = vshrl.u32 %v1769, 7
        %v1771 = vsub.s32 %v1603, %v1770
        %v1772 = vrot.slane %v1417, %v1771
        %v1773 = vsel %vm1608, %v1772, %v1768
        %v1774 = vlaneseq
        %v1775 = vshrl.u32 %v1774, 7
        %v1776 = vsub.s32 %v1610, %v1775
        %v1777 = vrot.slane %v1419, %v1776
        %v1778 = vsel %vm1615, %v1777, %v1773
        %v1779 = vlaneseq
        %v1780 = vshrl.u32 %v1779, 7
        %v1781 = vsub.s32 %v1617, %v1780
        %v1782 = vrot.slane %v1421, %v1781
        %v1783 = vsel %vm1622, %v1782, %v1778
        %v1784 = vlaneseq
        %v1785 = vshrl.u32 %v1784, 7
        %v1786 = vsub.s32 %v1624, %v1785
        %v1787 = vrot.slane %v1423, %v1786
        %v1788 = vsel %vm1629, %v1787, %v1783
        %v1789 = vlaneseq
        %v1790 = vshrl.u32 %v1789, 7
        %v1791 = vsub.s32 %v1521, %v1790
        %v1792 = vrot.slane %v1425, %v1791
        %v1793 = vlaneseq
        %v1794 = vshrl.u32 %v1793, 7
        %v1795 = vsub.s32 %v1526, %v1794
        %v1796 = vrot.slane %v1427, %v1795
        %v1797 = vsel %vm1531, %v1796, %v1792
        %v1798 = vlaneseq
        %v1799 = vshrl.u32 %v1798, 7
        %v1800 = vsub.s32 %v1533, %v1799
        %v1801 = vrot.slane %v1429, %v1800
        %v1802 = vsel %vm1538, %v1801, %v1797
        %v1803 = vlaneseq
        %v1804 = vshrl.u32 %v1803, 7
        %v1805 = vsub.s32 %v1540, %v1804
        %v1806 = vrot.slane %v1431, %v1805
        %v1807 = vsel %vm1545, %v1806, %v1802
        %v1808 = vlaneseq
        %v1809 = vshrl.u32 %v1808, 7
        %v1810 = vsub.s32 %v1547, %v1809
        %v1811 = vrot.slane %v1433, %v1810
        %v1812 = vsel %vm1552, %v1811, %v1807
        %v1813 = vlaneseq
        %v1814 = vshrl.u32 %v1813, 7
        %v1815 = vsub.s32 %v1554, %v1814
        %v1816 = vrot.slane %v1435, %v1815
        %v1817 = vsel %vm1559, %v1816, %v1812
        %v1818 = vlaneseq
        %v1819 = vshrl.u32 %v1818, 7
        %v1820 = vsub.s32 %v1561, %v1819
        %v1821 = vrot.slane %v1437, %v1820
        %v1822 = vsel %vm1566, %v1821, %v1817
        %v1823 = vlaneseq
        %v1824 = vshrl.u32 %v1823, 7
        %v1825 = vsub.s32 %v1568, %v1824
        %v1826 = vrot.slane %v1439, %v1825
        %v1827 = vsel %vm1573, %v1826, %v1822
        %v1828 = vlaneseq
        %v1829 = vshrl.u32 %v1828, 7
        %v1830 = vsub.s32 %v1575, %v1829
        %v1831 = vrot.slane %v1441, %v1830
        %v1832 = vsel %vm1580, %v1831, %v1827
        %v1833 = vlaneseq
        %v1834 = vshrl.u32 %v1833, 7
        %v1835 = vsub.s32 %v1582, %v1834
        %v1836 = vrot.slane %v1443, %v1835
        %v1837 = vsel %vm1587, %v1836, %v1832
        %v1838 = vlaneseq
        %v1839 = vshrl.u32 %v1838, 7
        %v1840 = vsub.s32 %v1589, %v1839
        %v1841 = vrot.slane %v1445, %v1840
        %v1842 = vsel %vm1594, %v1841, %v1837
        %v1843 = vlaneseq
        %v1844 = vshrl.u32 %v1843, 7
        %v1845 = vsub.s32 %v1596, %v1844
        %v1846 = vrot.slane %v1447, %v1845
        %v1847 = vsel %vm1601, %v1846, %v1842
        %v1848 = vlaneseq
        %v1849 = vshrl.u32 %v1848, 7
        %v1850 = vsub.s32 %v1603, %v1849
        %v1851 = vrot.slane %v1449, %v1850
        %v1852 = vsel %vm1608, %v1851, %v1847
        %v1853 = vlaneseq
        %v1854 = vshrl.u32 %v1853, 7
        %v1855 = vsub.s32 %v1610, %v1854
        %v1856 = vrot.slane %v1451, %v1855
        %v1857 = vsel %vm1615, %v1856, %v1852
        %v1858 = vlaneseq
        %v1859 = vshrl.u32 %v1858, 7
        %v1860 = vsub.s32 %v1617, %v1859
        %v1861 = vrot.slane %v1453, %v1860
        %v1862 = vsel %vm1622, %v1861, %v1857
        %v1863 = vlaneseq
        %v1864 = vshrl.u32 %v1863, 7
        %v1865 = vsub.s32 %v1624, %v1864
        %v1866 = vrot.slane %v1455, %v1865
        %v1867 = vsel %vm1629, %v1866, %v1862
        %vm1868 = vcmask 1041409
        %v1869 = vsel %vm1868, %v1709, %v1630
        %vm1870 = vcmask 1042434
        %v1871 = vsel %vm1870, %v1788, %v1869
        %vm1872 = vcmask 1043459
        %v1873 = vsel %vm1872, %v1867, %v1871
        %v1875 = vadd.f32 %v1327, %v1873
        %1876 = vst [vmem:[#allocation2] sm:$0xf] %v1875
        %p1877 = scmp.eq.s32.totalorder %s24, 1
        // Predicated region
        $region86: #{tpu_custom_call.1} parent=76 // pred_check
          %p1878 = pneg %p1877
        $region87: #{tpu_custom_call.1} parent=76 // pred_check_branch
          %1880 = sbr.rel (%p1878) target = $region89
        $region88: #{tpu_custom_call.1} parent=76 // pred_region
          %v1881 = vld [vmem:[#allocation2] sm:$0xf]
          %v1882 = vld [vmem:[%s3] sm:$0xff]
          %v1883 = vld [vmem:[%s3 + $0x8] sm:$0xff]
          %v1884 = vld [vmem:[%s3 + $0x10] sm:$0xff]
          %v1885 = vld [vmem:[%s3 + $0x18] sm:$0xff]
          %v1886 = vld [vmem:[%s3 + $0x20] sm:$0xff]
          %v1887 = vld [vmem:[%s3 + $0x28] sm:$0xff]
          %v1888 = vld [vmem:[%s3 + $0x30] sm:$0xff]
          %v1889 = vld [vmem:[%s3 + $0x38] sm:$0xff]
          %v1890 = vld [vmem:[%s3 + $0x40] sm:$0xff]
          %v1891 = vld [vmem:[%s3 + $0x48] sm:$0xff]
          %v1892 = vld [vmem:[%s3 + $0x50] sm:$0xff]
          %v1893 = vld [vmem:[%s3 + $0x58] sm:$0xff]
          %v1894 = vld [vmem:[%s3 + $0x60] sm:$0xff]
          %v1895 = vld [vmem:[%s3 + $0x68] sm:$0xff]
          %v1896 = vld [vmem:[%s3 + $0x70] sm:$0xff]
          %v1897 = vld [vmem:[%s3 + $0x78] sm:$0xff]
          %v1898 = vld [vmem:[%s4] sm:$0x1]
          %v1900 = vlaneseq
          %v1901 = vshrl.u32 %v1900, 7
          %v1902 = vsub.s32 0, %v1901
          %v1903 = vrot.slane %v1898, %v1902
          %1905 = vmatprep.subr.mxu0 0.0
          %1906 = vmatpush1.msra.mxu0 %v1882
          %1907 = vmatprep.subr.mxu0 0.0
          %1908 = vmatpush1.msra.mxu0 %v1883
          %1909 = vmatprep.subr.mxu0 0.0
          %1910 = vmatpush1.msra.mxu0 %v1884
          %1911 = vmatprep.subr.mxu0 0.0
          %1912 = vmatpush1.msra.mxu0 %v1885
          %1913 = vmatprep.subr.mxu0 0.0
          %1914 = vmatpush1.msra.mxu0 %v1886
          %1915 = vmatprep.subr.mxu0 0.0
          %1916 = vmatpush1.msra.mxu0 %v1887
          %1917 = vmatprep.subr.mxu0 0.0
          %1918 = vmatpush1.msra.mxu0 %v1888
          %1919 = vmatprep.subr.mxu0 0.0
          %1920 = vmatpush1.msra.mxu0 %v1889
          %1921 = vmatprep.subr.mxu0 0.0
          %1922 = vmatpush1.msra.mxu0 %v1890
          %1923 = vmatprep.subr.mxu0 0.0
          %1924 = vmatpush1.msra.mxu0 %v1891
          %1925 = vmatprep.subr.mxu0 0.0
          %1926 = vmatpush1.msra.mxu0 %v1892
          %1927 = vmatprep.subr.mxu0 0.0
          %1928 = vmatpush1.msra.mxu0 %v1893
          %1929 = vmatprep.subr.mxu0 0.0
          %1930 = vmatpush1.msra.mxu0 %v1894
          %1931 = vmatprep.subr.mxu0 0.0
          %1932 = vmatpush1.msra.mxu0 %v1895
          %1933 = vmatprep.subr.mxu0 0.0
          %1934 = vmatpush1.msra.mxu0 %v1896
          %1935 = vmatprep.subr.mxu0 0.0
          %1936 = vmatpush1.msra.mxu0 %v1897
          %1937 = vmatprep.subr.mxu0 0.0
          %1938 = vmatpush1.msra.mxu0 0.0
          %1939 = vmatprep.subr.mxu0 0.0
          %1940 = vmatpush1.msra.mxu0 0.0
          %1941 = vmatprep.subr.mxu0 0.0
          %1942 = vmatpush1.msra.mxu0 0.0
          %1943 = vmatprep.subr.mxu0 0.0
          %1944 = vmatpush1.msra.mxu0 0.0
          %1945 = vmatprep.subr.mxu0 0.0
          %1946 = vmatpush1.msra.mxu0 0.0
          %1947 = vmatprep.subr.mxu0 0.0
          %1948 = vmatpush1.msra.mxu0 0.0
          %1949 = vmatprep.subr.mxu0 0.0
          %1950 = vmatpush1.msra.mxu0 0.0
          %1951 = vmatprep.subr.mxu0 0.0
          %1952 = vmatpush1.msra.mxu0 0.0
          %1953 = vmatprep.subr.mxu0 0.0
          %1954 = vmatpush1.msra.mxu0 0.0
          %1955 = vmatprep.subr.mxu0 0.0
          %1956 = vmatpush1.msra.mxu0 0.0
          %1957 = vmatprep.subr.mxu0 0.0
          %1958 = vmatpush1.msra.mxu0 0.0
          %1959 = vmatprep.subr.mxu0 0.0
          %1960 = vmatpush1.msra.mxu0 0.0
          %1961 = vmatprep.subr.mxu0 0.0
          %1962 = vmatpush1.msra.mxu0 0.0
          %1963 = vmatprep.subr.mxu0 0.0
          %1964 = vmatpush1.msra.mxu0 0.0
          %1965 = vmatprep.subr.mxu0 0.0
          %1966 = vmatpush1.msra.mxu0 0.0
          %1967 = vmatprep.subr.mxu0 0.0
          %1968 = vmatpush1.msra.mxu0 0.0
          %1969 = vmatprep.mubr.f32.mxu0 0.0
          %1970 = vmatmul.mubr.f32.gmra.mrb[0].mxu0 %v1881
          %v1971 = vpop.f32.mrb[0].mxu0
          %v1972 = vadd.f32 %v1903, %v1971
          %v1973 = vpop.f32.mrb[0].mxu0
          %1974 = vdwg.mxu0
          %1975 = vst [vmem:[%s292] sm:$0xf] %v1972
        $region89: #{tpu_custom_call.1} parent=76 // pred_fallthru
          _
        %s1976 = sand.u32 %s151, 1
        %s1977 = scalar_lea.sflag [#allocation5], %s1976
        %s1978 = sand.u32 %s151, 1
        %s1979 = smul.addr %s1978, 4
        %s1980 = scalar_lea.vmem [#allocation4], %s1979
        // Predicated region
        $region90: #{tpu_custom_call.1} parent=76 // pred_check
          %p1981 = pneg %p161
        $region91: #{tpu_custom_call.1} parent=76 // pred_check_branch
          %1983 = sbr.rel (%p1981) target = $region93
        $region92: #{tpu_custom_call.1} parent=76 // pred_region
          %s1985 = ssub.s32 64, 64
          %1986 = vsyncadd %s1977, %s1985
          %s1987 = smul.addr %s23, 64
          %s1988 = scalar_lea.hbm %s5, %s1987
          %s1990 = sshll.u32 %s1980, 4
          %s1991 = int_to_ptr.vmem [resolvable:$true] %s1990
          %1993 = dma.vmem_to_hbm [thread:$0]  %s1991, 64, %s1988, %s1977
        $region93: #{tpu_custom_call.1} parent=76 // pred_fallthru
          _
      $region77: #{tpu_custom_call.1} parent=5 // pred_fallthru
        _
      %p1994 = scmp.le.s32.totalorder 2, %s14
      // Predicated region
      $region94: #{tpu_custom_call.1} parent=5 // pred_check
        %p1995 = pneg %p1994
      $region95: #{tpu_custom_call.1} parent=5 // pred_check_branch
        %1997 = sbr.rel (%p1995) target = $region97
      $region96: #{tpu_custom_call.1} parent=5 // pred_region
        %s1998 = ssub.s32 %s14, 2
        // Predicated region
        $region98: #{tpu_custom_call.1} parent=96 // pred_check
          %p1999 = pneg %p167
        $region99: #{tpu_custom_call.1} parent=96 // pred_check_branch
          %2001 = sbr.rel (%p1999) target = $region101
        $region100: #{tpu_custom_call.1} parent=96 // pred_region
          %s2002 = sand.u32 %s152, 1
          %s2003 = scalar_lea.sflag [#allocation5], %s2002
          %s2004 = sand.u32 %s152, 1
          %s2005 = smul.addr %s2004, 4
          %s2006 = scalar_lea.vmem [#allocation4], %s2005
          %2007 = dma.done %s2003, 64
        $region101: #{tpu_custom_call.1} parent=96 // pred_fallthru
          _
      $region97: #{tpu_custom_call.1} parent=5 // pred_fallthru
        _
    $region6: #{tpu_custom_call.1} parent=1 // loop_footer
      %s18 = sadd.s32 1, %s14
    $region7: #{tpu_custom_call.1} parent=1 // loop_footer_branch
      %13 = sbr.rel target = $region3
    $region8: #{tpu_custom_call.1} parent=1 // loop_exit
      _
    %2008 = vsyncpa [#allocation5], 1
    %s2009 = scalar_lea.sflag [#allocation5], 1
    %2010 = vsyncpa %s2009, 1

// kernel: tpu_custom_call.1
$region0: #{tpu_custom_call.1}
  #allocation0 [shape = 'u32[]', space=smem, size = 0x4, offset = 0x4, fixed_abs, tag = 'smem constant byte address 0x4 - core index']
  #allocation1 [shape = 'u32[144,128]{1,0:T(1,128)}', space=vmem, size = 0x12000, scoped, tag = 'internal scratch']
  #allocation2 [shape = 'f32[4,128]{1,0:T(4,128)}', space=vmem, size = 0x800, scoped, tag = 'scratch operand']
  %s0 = inlined_call_operand.vmem [shape: f32[16,4,256], index: 0, kind: input, shape index: {}]
  %s1 = inlined_call_operand.vmem [shape: f32[128,4], index: 1, kind: input, shape index: {}]
  %s2 = inlined_call_operand.vmem [shape: f32[128,1], index: 2, kind: input, shape index: {}]
  %s3 = inlined_call_operand.vmem [shape: f32[128,128], index: 3, kind: input, shape index: {}]
  %s4 = inlined_call_operand.vmem [shape: f32[1,128], index: 4, kind: input, shape index: {}]
  %s5 = inlined_call_operand.hbm [shape: f32[4,4,128], index: 5, kind: output, shape index: {}]
  %s6 = sld [smem:[#allocation0]]
  $region102: #{tpu_custom_call.1} parent=0
    _
  %s8 = ssub.s32 1, %s6
  %s9 = scalar_select 0, %s8, %s6
  $region1: #{tpu_custom_call.1} parent=0
    #allocation3 [shape = 'u8[16384]{0}', space=vmem, size = 0x4000, scoped, tag = 'input window, operand 0']
    #allocation4 [shape = 'u8[4096]{0}', space=vmem, size = 0x1000, scoped, tag = 'output window, operand 0']
    #allocation5 [shape = 's32[2]{0}', space=sflag, size = 0x8, scoped, tag = 'scoped memory for tpu_custom_call.1']
    %10 = vsyncpa [#allocation5], 0
    %s11 = scalar_lea.sflag [#allocation5], 1
    %12 = vsyncpa %s11, 0
    loop: start=0, step=1, limit=10
    $region2: #{tpu_custom_call.1} parent=1 // loop_pre_header
      _
    $region3: #{tpu_custom_call.1} parent=1 // loop_header
      %s14 = sphi 0, %s18
      %p15 = scmp.ge.s32.totalorder %s14, 10
      %s21 = sphi 0, %s33
      %s22 = sphi 0, %s29
      %s23 = sphi 0, %s21
      %s24 = sphi 0, %s22
      %s25 = sphi 0, %s23
      %s26 = sphi 0, %s24
      %s38 = sphi 0, %s40
      %s41 = sphi 0, %s38
      %s42 = sphi 0, %s41
      %s58 = sphi 0, %s42
      %s62 = sphi 0, %s62
      %s64 = sphi 0, %s62
      %s65 = sphi 0, %s64
      %s79 = sphi 0, %s65
      %s83 = sphi 0, %s83
      %s85 = sphi 0, %s83
      %s86 = sphi 0, %s85
      %s100 = sphi 0, %s86
      %s104 = sphi 0, %s104
      %s106 = sphi 0, %s104
      %s107 = sphi 0, %s106
      %s121 = sphi 0, %s107
      %s125 = sphi 0, %s125
      %s127 = sphi 0, %s125
      %s128 = sphi 0, %s127
      %s142 = sphi 0, %s128
      %s148 = sphi 0, %s150
      %s151 = sphi 0, %s148
      %s152 = sphi 0, %s151
      %s168 = sphi 0, %s152
    $region4: #{tpu_custom_call.1} parent=1 // loop_header_branch
      %17 = sbr.rel (%p15) target = $region8
    $region5: #{tpu_custom_call.1} parent=1 // loop_body
      %s19 = ssub.s32 %s14, 1
      %s20 = ssub.s32 %s14, 2
      %s27 = sadd.s32 1, %s22
      %p28 = scmp.ge.s32.totalorder %s27, 2
      %s29 = scalar_select %p28, 0, %s27
      %s30 = sadd.s32 1, %s21
      %s31 = scalar_select %p28, %s30, %s21
      %p32 = scmp.ge.s32.totalorder %s31, 4
      %s33 = scalar_select %p32, 0, %s31
      %s34 = ssub.s32 %s21, %s33
      %s35 = ssub.s32 %s22, %s29
      %s36 = sor.u32 %s34, %s35
      %p37 = scmp.eq.s32.totalorder %s36, 0
      %s39 = sadd.s32 %s38, 1
      %s40 = scalar_select %p37, %s38, %s39
      %p43 = pneg %p37
      %p44 = scmp.eq.s32.totalorder %s14, 7
      %p45 = por %p43, %p44
      %p46 = scmp.ne.s32.totalorder %s38, %s41
      %p47 = scmp.eq.s32.totalorder %s14, 0
      %p48 = por %p46, %p47
      %p49 = scmp.ne.s32.totalorder %s38, %s41
      %p50 = scmp.eq.s32.totalorder %s19, 7
      %p51 = por %p49, %p50
      %p52 = scmp.ne.s32.totalorder %s41, %s42
      %p53 = scmp.eq.s32.totalorder %s19, 0
      %p54 = por %p52, %p53
      %p55 = scmp.ne.s32.totalorder %s41, %s42
      %p56 = scmp.eq.s32.totalorder %s20, 7
      %p57 = por %p55, %p56
      %p59 = scmp.ne.s32.totalorder %s42, %s58
      %p60 = scmp.eq.s32.totalorder %s20, 0
      %p61 = por %p59, %p60
      %s63 = sadd.s32 %s62, 1
      %p66 = scmp.eq.s32.totalorder %s14, 7
      %p67 = scmp.ne.s32.totalorder %s62, %s64
      %p68 = scmp.eq.s32.totalorder %s14, 0
      %p69 = por %p67, %p68
      %p70 = scmp.ne.s32.totalorder %s62, %s64
      %p71 = scmp.eq.s32.totalorder %s19, 7
      %p72 = por %p70, %p71
      %p73 = scmp.ne.s32.totalorder %s64, %s65
      %p74 = scmp.eq.s32.totalorder %s19, 0
      %p75 = por %p73, %p74
      %p76 = scmp.ne.s32.totalorder %s64, %s65
      %p77 = scmp.eq.s32.totalorder %s20, 7
      %p78 = por %p76, %p77
      %p80 = scmp.ne.s32.totalorder %s65, %s79
      %p81 = scmp.eq.s32.totalorder %s20, 0
      %p82 = por %p80, %p81
      %s84 = sadd.s32 %s83, 1
      %p87 = scmp.eq.s32.totalorder %s14, 7
      %p88 = scmp.ne.s32.totalorder %s83, %s85
      %p89 = scmp.eq.s32.totalorder %s14, 0
      %p90 = por %p88, %p89
      %p91 = scmp.ne.s32.totalorder %s83, %s85
      %p92 = scmp.eq.s32.totalorder %s19, 7
      %p93 = por %p91, %p92
      %p94 = scmp.ne.s32.totalorder %s85, %s86
      %p95 = scmp.eq.s32.totalorder %s19, 0
      %p96 = por %p94, %p95
      %p97 = scmp.ne.s32.totalorder %s85, %s86
      %p98 = scmp.eq.s32.totalorder %s20, 7
      %p99 = por %p97, %p98
      %p101 = scmp.ne.s32.totalorder %s86, %s100
      %p102 = scmp.eq.s32.totalorder %s20, 0
      %p103 = por %p101, %p102
      %s105 = sadd.s32 %s104, 1
      %p108 = scmp.eq.s32.totalorder %s14, 7
      %p109 = scmp.ne.s32.totalorder %s104, %s106
      %p110 = scmp.eq.s32.totalorder %s14, 0
      %p111 = por %p109, %p110
      %p112 = scmp.ne.s32.totalorder %s104, %s106
      %p113 = scmp.eq.s32.totalorder %s19, 7
      %p114 = por %p112, %p113
      %p115 = scmp.ne.s32.totalorder %s106, %s107
      %p116 = scmp.eq.s32.totalorder %s19, 0
      %p117 = por %p115, %p116
      %p118 = scmp.ne.s32.totalorder %s106, %s107
      %p119 = scmp.eq.s32.totalorder %s20, 7
      %p120 = por %p118, %p119
      %p122 = scmp.ne.s32.totalorder %s107, %s121
      %p123 = scmp.eq.s32.totalorder %s20, 0
      %p124 = por %p122, %p123
      %s126 = sadd.s32 %s125, 1
      %p129 = scmp.eq.s32.totalorder %s14, 7
      %p130 = scmp.ne.s32.totalorder %s125, %s127
      %p131 = scmp.eq.s32.totalorder %s14, 0
      %p132 = por %p130, %p131
      %p133 = scmp.ne.s32.totalorder %s125, %s127
      %p134 = scmp.eq.s32.totalorder %s19, 7
      %p135 = por %p133, %p134
      %p136 = scmp.ne.s32.totalorder %s127, %s128
      %p137 = scmp.eq.s32.totalorder %s19, 0
      %p138 = por %p136, %p137
      %p139 = scmp.ne.s32.totalorder %s127, %s128
      %p140 = scmp.eq.s32.totalorder %s20, 7
      %p141 = por %p139, %p140
      %p143 = scmp.ne.s32.totalorder %s128, %s142
      %p144 = scmp.eq.s32.totalorder %s20, 0
      %p145 = por %p143, %p144
      %s146 = ssub.s32 %s21, %s33
      %p147 = scmp.eq.s32.totalorder %s146, 0
      %s149 = sadd.s32 %s148, 1
      %s150 = scalar_select %p147, %s148, %s149
      %p153 = pneg %p147
      %p154 = scmp.eq.s32.totalorder %s14, 7
      %p155 = por %p153, %p154
      %p156 = scmp.ne.s32.totalorder %s148, %s151
      %p157 = scmp.eq.s32.totalorder %s14, 0
      %p158 = por %p156, %p157
      %p159 = scmp.ne.s32.totalorder %s148, %s151
      %p160 = scmp.eq.s32.totalorder %s19, 7
      %p161 = por %p159, %p160
      %p162 = scmp.ne.s32.totalorder %s151, %s152
      %p163 = scmp.eq.s32.totalorder %s19, 0
      %p164 = por %p162, %p163
      %p165 = scmp.ne.s32.totalorder %s151, %s152
      %p166 = scmp.eq.s32.totalorder %s20, 7
      %p167 = por %p165, %p166
      %p169 = scmp.ne.s32.totalorder %s152, %s168
      %p170 = scmp.eq.s32.totalorder %s20, 0
      %p171 = por %p169, %p170
      %p172 = scmp.le.s32.totalorder 1, %s14
      %p173 = scmp.lt.s32.totalorder %s14, 9
      %p174 = pnand %p172, %p173
      %p175 = pneg %p174
      // Predicated region
      $region9: #{tpu_custom_call.1} parent=5 // pred_check
        _
      $region10: #{tpu_custom_call.1} parent=5 // pred_check_branch
        %177 = sbr.rel (%p174) target = $region12
      $region11: #{tpu_custom_call.1} parent=5 // pred_region
        %s178 = ssub.s32 %s14, 1
        // Predicated region
        $region13: #{tpu_custom_call.1} parent=11 // pred_check
          %p179 = pneg %p75
        $region14: #{tpu_custom_call.1} parent=11 // pred_check_branch
          %181 = sbr.rel (%p179) target = $region16
        $region15: #{tpu_custom_call.1} parent=11 // pred_region
          _
        $region16: #{tpu_custom_call.1} parent=11 // pred_fallthru
          _
        // Predicated region
        $region17: #{tpu_custom_call.1} parent=11 // pred_check
          %p182 = pneg %p96
        $region18: #{tpu_custom_call.1} parent=11 // pred_check_branch
          %184 = sbr.rel (%p182) target = $region20
        $region19: #{tpu_custom_call.1} parent=11 // pred_region
          _
        $region20: #{tpu_custom_call.1} parent=11 // pred_fallthru
          _
        // Predicated region
        $region21: #{tpu_custom_call.1} parent=11 // pred_check
          %p185 = pneg %p117
        $region22: #{tpu_custom_call.1} parent=11 // pred_check_branch
          %187 = sbr.rel (%p185) target = $region24
        $region23: #{tpu_custom_call.1} parent=11 // pred_region
          _
        $region24: #{tpu_custom_call.1} parent=11 // pred_fallthru
          _
        // Predicated region
        $region25: #{tpu_custom_call.1} parent=11 // pred_check
          %p188 = pneg %p138
        $region26: #{tpu_custom_call.1} parent=11 // pred_check_branch
          %190 = sbr.rel (%p188) target = $region28
        $region27: #{tpu_custom_call.1} parent=11 // pred_region
          _
        $region28: #{tpu_custom_call.1} parent=11 // pred_fallthru
          _
      $region12: #{tpu_custom_call.1} parent=5 // pred_fallthru
        _
      %p191 = scmp.lt.s32.totalorder %s14, 8
      // Predicated region
      $region29: #{tpu_custom_call.1} parent=5 // pred_check
        %p192 = pneg %p191
      $region30: #{tpu_custom_call.1} parent=5 // pred_check_branch
        %194 = sbr.rel (%p192) target = $region32
      $region31: #{tpu_custom_call.1} parent=5 // pred_region
        // Predicated region
        $region33: #{tpu_custom_call.1} parent=31 // pred_check
          %p195 = pneg %p48
        $region34: #{tpu_custom_call.1} parent=31 // pred_check_branch
          %197 = sbr.rel (%p195) target = $region36
        $region35: #{tpu_custom_call.1} parent=31 // pred_region
          %s198 = sand.u32 %s38, 1
          %s199 = sand.u32 %s38, 1
          %s200 = smul.addr %s199, 16
          %s201 = scalar_lea.vmem [#allocation3], %s200
          %s202 = smul.u32 4, %s21
          %s203 = smul.addr %s202, 2
          %s204 = sadd.s32 %s22, %s203
          %s205 = smul.addr %s204, 4
          %s206 = scalar_lea.vmem %s0, %s205
          // Predicated region
          $region37: #{tpu_custom_call.1} parent=35 // pred_check
            _
          $region38: #{tpu_custom_call.1} parent=35 // pred_check_branch
            %208 = sbr.rel (0) target = $region40
          $region39: #{tpu_custom_call.1} parent=35 // pred_region
            // Predicated region
            $region41: #{tpu_custom_call.1} parent=39 // pred_check
              _
            $region42: #{tpu_custom_call.1} parent=39 // pred_check_branch
              %210 = sbr.rel target = $region44
            $region43: #{tpu_custom_call.1} parent=39 // pred_region
              // Predicated region
              $region56: #{tpu_custom_call.1} parent=43 // pred_check
                _
              $region57: #{tpu_custom_call.1} parent=43 // pred_check_branch
                %231 = sbr.rel (0) target = $region59
              $region58: #{tpu_custom_call.1} parent=43 // pred_region
                loop: start=0, step=1, limit=1
                $region60: #{tpu_custom_call.1} parent=58 // loop_pre_header
                  _
                $region61: #{tpu_custom_call.1} parent=58 // loop_header
                  %s233 = sphi 0, %s237
                  %p234 = scmp.ge.s32.totalorder %s233, 1
                  %s238 = sphi %s206, %s206
                  %s239 = sphi %s201, %s201
                $region62: #{tpu_custom_call.1} parent=58 // loop_header_branch
                  %236 = sbr.rel (%p234) target = $region66
                $region63: #{tpu_custom_call.1} parent=58 // loop_body
                  _
                $region64: #{tpu_custom_call.1} parent=58 // loop_footer
                  %s237 = sadd.s32 1, %s233
                $region65: #{tpu_custom_call.1} parent=58 // loop_footer_branch
                  %232 = sbr.rel target = $region61
                $region66: #{tpu_custom_call.1} parent=58 // loop_exit
                  _
                loop: start=0, step=1, limit=1
                $region67: #{tpu_custom_call.1} parent=58 // loop_pre_header
                  _
                $region68: #{tpu_custom_call.1} parent=58 // loop_header
                  %s242 = sphi 0, %s246
                  %p243 = scmp.ge.s32.totalorder %s242, 1
                  %s247 = sphi %s206, %s206
                  %s248 = sphi %s201, %s201
                $region69: #{tpu_custom_call.1} parent=58 // loop_header_branch
                  %245 = sbr.rel (%p243) target = $region73
                $region70: #{tpu_custom_call.1} parent=58 // loop_body
                  %v249 = vld [vmem:[%s247] sm:$0xf]
                  %250 = vst [vmem:[%s248] sm:$0xf] %v249
                  %v251 = vld [vmem:[%s247 + $0x8] sm:$0xf]
                  %252 = vst [vmem:[%s248 + $0x4] sm:$0xf] %v251
                  %v253 = vld [vmem:[%s247 + $0x10] sm:$0xf]
                  %254 = vst [vmem:[%s248 + $0x8] sm:$0xf] %v253
                  %v255 = vld [vmem:[%s247 + $0x18] sm:$0xf]
                  %256 = vst [vmem:[%s248 + $0xc] sm:$0xf] %v255
                $region71: #{tpu_custom_call.1} parent=58 // loop_footer
                  %s246 = sadd.s32 1, %s242
                $region72: #{tpu_custom_call.1} parent=58 // loop_footer_branch
                  %241 = sbr.rel target = $region68
                $region73: #{tpu_custom_call.1} parent=58 // loop_exit
                  _
              $region59: #{tpu_custom_call.1} parent=43 // pred_fallthru
                _
            $region44: #{tpu_custom_call.1} parent=39 // pred_fallthru
              _
            // Predicated region
            $region45: #{tpu_custom_call.1} parent=39 // pred_check
              _
            $region46: #{tpu_custom_call.1} parent=39 // pred_check_branch
              %212 = sbr.rel (0) target = $region48
            $region47: #{tpu_custom_call.1} parent=39 // pred_region
              loop: start=0, step=1, limit=1
              $region49: #{tpu_custom_call.1} parent=47 // loop_pre_header
                _
              $region50: #{tpu_custom_call.1} parent=47 // loop_header
                %s215 = sphi 0, %s219
                %p216 = scmp.ge.s32.totalorder %s215, 1
                %s220 = sphi %s206, %s206
                %s221 = sphi %s201, %s201
              $region51: #{tpu_custom_call.1} parent=47 // loop_header_branch
                %218 = sbr.rel (%p216) target = $region55
              $region52: #{tpu_custom_call.1} parent=47 // loop_body
                %v222 = vld [vmem:[%s220] sm:$0xf]
                %223 = vst [vmem:[%s221] sm:$0xf] %v222
                %v224 = vld [vmem:[%s220 + $0x8] sm:$0xf]
                %225 = vst [vmem:[%s221 + $0x4] sm:$0xf] %v224
                %v226 = vld [vmem:[%s220 + $0x10] sm:$0xf]
                %227 = vst [vmem:[%s221 + $0x8] sm:$0xf] %v226
                %v228 = vld [vmem:[%s220 + $0x18] sm:$0xf]
                %229 = vst [vmem:[%s221 + $0xc] sm:$0xf] %v228
              $region53: #{tpu_custom_call.1} parent=47 // loop_footer
                %s219 = sadd.s32 1, %s215
              $region54: #{tpu_custom_call.1} parent=47 // loop_footer_branch
                %214 = sbr.rel target = $region50
              $region55: #{tpu_custom_call.1} parent=47 // loop_exit
                _
            $region48: #{tpu_custom_call.1} parent=39 // pred_fallthru
              _
          $region40: #{tpu_custom_call.1} parent=35 // pred_fallthru
            _
          %257 = vnop
        $region36: #{tpu_custom_call.1} parent=31 // pred_fallthru
          _
      $region32: #{tpu_custom_call.1} parent=5 // pred_fallthru
        _
      %p258 = scmp.le.s32.totalorder 1, %s14
      %p259 = scmp.lt.s32.totalorder %s14, 9
      %p260 = pnand %p258, %p259
      %p261 = pneg %p260
      // Predicated region
      $region74: #{tpu_custom_call.1} parent=5 // pred_check
        _
      $region75: #{tpu_custom_call.1} parent=5 // pred_check_branch
        %263 = sbr.rel (%p260) target = $region77
      $region76: #{tpu_custom_call.1} parent=5 // pred_region
        %s264 = ssub.s32 %s14, 1
        %s265 = sand.u32 %s41, 1
        %s266 = sand.u32 %s41, 1
        %s267 = smul.addr %s266, 16
        %s268 = scalar_lea.vmem [#allocation3], %s267
        // Predicated region
        $region78: #{tpu_custom_call.1} parent=76 // pred_check
          %p269 = pneg %p54
        $region79: #{tpu_custom_call.1} parent=76 // pred_check_branch
          %271 = sbr.rel (%p269) target = $region81
        $region80: #{tpu_custom_call.1} parent=76 // pred_region
          _
        $region81: #{tpu_custom_call.1} parent=76 // pred_fallthru
          _
        %s272 = sand.u32 %s41, 1
        %s273 = sand.u32 %s41, 1
        %s274 = smul.addr %s273, 16
        %s275 = scalar_lea.vmem [#allocation3], %s274
        %p276 = pneg %p54
        %p277 = pneg %p51
        %p278 = pneg %p75
        %p279 = pneg %p72
        %p280 = pneg %p96
        %p281 = pneg %p93
        %p282 = pneg %p117
        %p283 = pneg %p114
        %p284 = pneg %p138
        %p285 = pneg %p135
        %p286 = pneg %p164
        %p287 = pneg %p161
        %s288 = sand.u32 %s151, 1
        %s289 = scalar_lea.sflag [#allocation5], %s288
        %s290 = sand.u32 %s151, 1
        %s291 = smul.addr %s290, 4
        %s292 = scalar_lea.vmem [#allocation4], %s291
        %s293 = smul.u32 4, %s23
        %p294 = scmp.eq.s32.totalorder %s24, 0
        // Predicated region
        $region82: #{tpu_custom_call.1} parent=76 // pred_check
          %p295 = pneg %p294
        $region83: #{tpu_custom_call.1} parent=76 // pred_check_branch
          %297 = sbr.rel (%p295) target = $region85
        $region84: #{tpu_custom_call.1} parent=76 // pred_region
          %298 = vst [vmem:[#allocation2] sm:$0xf] 0.0
        $region85: #{tpu_custom_call.1} parent=76 // pred_fallthru
          _
        %v299 = vld [vmem:[%s268] sm:$0xf]
        %v300 = vld [vmem:[%s268 + $0x4] sm:$0xf]
        %v301 = vld [vmem:[%s268 + $0x8] sm:$0xf]
        %v302 = vld [vmem:[%s268 + $0xc] sm:$0xf]
        %v303 = vld [vmem:[%s1] sm:$0xff]
        %v304 = vld [vmem:[%s1 + $0x8] sm:$0xff]
        %v305 = vld [vmem:[%s1 + $0x10] sm:$0xff]
        %v306 = vld [vmem:[%s1 + $0x18] sm:$0xff]
        %v307 = vld [vmem:[%s1 + $0x20] sm:$0xff]
        %v308 = vld [vmem:[%s1 + $0x28] sm:$0xff]
        %v309 = vld [vmem:[%s1 + $0x30] sm:$0xff]
        %v310 = vld [vmem:[%s1 + $0x38] sm:$0xff]
        %v311 = vld [vmem:[%s1 + $0x40] sm:$0xff]
        %v312 = vld [vmem:[%s1 + $0x48] sm:$0xff]
        %v313 = vld [vmem:[%s1 + $0x50] sm:$0xff]
        %v314 = vld [vmem:[%s1 + $0x58] sm:$0xff]
        %v315 = vld [vmem:[%s1 + $0x60] sm:$0xff]
        %v316 = vld [vmem:[%s1 + $0x68] sm:$0xff]
        %v317 = vld [vmem:[%s1 + $0x70] sm:$0xff]
        %v318 = vld [vmem:[%s1 + $0x78] sm:$0xff]
        %v319 = vld [vmem:[%s2] sm:$0xff]
        %v320 = vld [vmem:[%s2 + $0x8] sm:$0xff]
        %v321 = vld [vmem:[%s2 + $0x10] sm:$0xff]
        %v322 = vld [vmem:[%s2 + $0x18] sm:$0xff]
        %v323 = vld [vmem:[%s2 + $0x20] sm:$0xff]
        %v324 = vld [vmem:[%s2 + $0x28] sm:$0xff]
        %v325 = vld [vmem:[%s2 + $0x30] sm:$0xff]
        %v326 = vld [vmem:[%s2 + $0x38] sm:$0xff]
        %v327 = vld [vmem:[%s2 + $0x40] sm:$0xff]
        %v328 = vld [vmem:[%s2 + $0x48] sm:$0xff]
        %v329 = vld [vmem:[%s2 + $0x50] sm:$0xff]
        %v330 = vld [vmem:[%s2 + $0x58] sm:$0xff]
        %v331 = vld [vmem:[%s2 + $0x60] sm:$0xff]
        %v332 = vld [vmem:[%s2 + $0x68] sm:$0xff]
        %v333 = vld [vmem:[%s2 + $0x70] sm:$0xff]
        %v334 = vld [vmem:[%s2 + $0x78] sm:$0xff]
        %v335 = vlaneseq
        %v336 = vshrl.u32 %v335, 7
        %v337 = vsub.s32 0, %v336
        %v338 = vrot.slane %v299, %v337
        %v339 = vlaneseq
        %v340 = vshrl.u32 %v339, 7
        %v341 = vsub.s32 0, %v340
        %v342 = vrot.slane %v300, %v341
        %v343 = vlaneseq
        %v344 = vshrl.u32 %v343, 7
        %v345 = vsub.s32 0, %v344
        %v346 = vrot.slane %v301, %v345
        %v347 = vlaneseq
        %v348 = vshrl.u32 %v347, 7
        %v349 = vsub.s32 0, %v348
        %v350 = vrot.slane %v302, %v349
        %352 = vset.pattern.permute.xlu0 0
        %353 = vperm.xlu0 %352, %v303
        %v354 = vpop.permute.xlu0 %353
        %357 = vset.pattern.permute.xlu0 0
        %358 = vperm.xlu0 %357, %v304
        %v359 = vpop.permute.xlu0 %358
        %362 = vset.pattern.permute.xlu0 0
        %363 = vperm.xlu0 %362, %v305
        %v364 = vpop.permute.xlu0 %363
        %367 = vset.pattern.permute.xlu0 0
        %368 = vperm.xlu0 %367, %v306
        %v369 = vpop.permute.xlu0 %368
        %372 = vset.pattern.permute.xlu0 0
        %373 = vperm.xlu0 %372, %v307
        %v374 = vpop.permute.xlu0 %373
        %377 = vset.pattern.permute.xlu0 0
        %378 = vperm.xlu0 %377, %v308
        %v379 = vpop.permute.xlu0 %378
        %382 = vset.pattern.permute.xlu0 0
        %383 = vperm.xlu0 %382, %v309
        %v384 = vpop.permute.xlu0 %383
        %387 = vset.pattern.permute.xlu0 0
        %388 = vperm.xlu0 %387, %v310
        %v389 = vpop.permute.xlu0 %388
        %392 = vset.pattern.permute.xlu0 0
        %393 = vperm.xlu0 %392, %v311
        %v394 = vpop.permute.xlu0 %393
        %397 = vset.pattern.permute.xlu0 0
        %398 = vperm.xlu0 %397, %v312
        %v399 = vpop.permute.xlu0 %398
        %402 = vset.pattern.permute.xlu0 0
        %403 = vperm.xlu0 %402, %v313
        %v404 = vpop.permute.xlu0 %403
        %407 = vset.pattern.permute.xlu0 0
        %408 = vperm.xlu0 %407, %v314
        %v409 = vpop.permute.xlu0 %408
        %412 = vset.pattern.permute.xlu0 0
        %413 = vperm.xlu0 %412, %v315
        %v414 = vpop.permute.xlu0 %413
        %417 = vset.pattern.permute.xlu0 0
        %418 = vperm.xlu0 %417, %v316
        %v419 = vpop.permute.xlu0 %418
        %422 = vset.pattern.permute.xlu0 0
        %423 = vperm.xlu0 %422, %v317
        %v424 = vpop.permute.xlu0 %423
        %427 = vset.pattern.permute.xlu0 0
        %428 = vperm.xlu0 %427, %v318
        %v429 = vpop.permute.xlu0 %428
        %v431 = vmul.f32 %v338, %v354
        %v432 = vmul.f32 %v338, %v359
        %v433 = vmul.f32 %v338, %v364
        %v434 = vmul.f32 %v338, %v369
        %v435 = vmul.f32 %v338, %v374
        %v436 = vmul.f32 %v338, %v379
        %v437 = vmul.f32 %v338, %v384
        %v438 = vmul.f32 %v338, %v389
        %v439 = vmul.f32 %v338, %v394
        %v440 = vmul.f32 %v338, %v399
        %v441 = vmul.f32 %v338, %v404
        %v442 = vmul.f32 %v338, %v409
        %v443 = vmul.f32 %v338, %v414
        %v444 = vmul.f32 %v338, %v419
        %v445 = vmul.f32 %v338, %v424
        %v446 = vmul.f32 %v338, %v429
        %v447 = vmul.f32 %v342, %v354
        %v448 = vmul.f32 %v342, %v359
        %v449 = vmul.f32 %v342, %v364
        %v450 = vmul.f32 %v342, %v369
        %v451 = vmul.f32 %v342, %v374
        %v452 = vmul.f32 %v342, %v379
        %v453 = vmul.f32 %v342, %v384
        %v454 = vmul.f32 %v342, %v389
        %v455 = vmul.f32 %v342, %v394
        %v456 = vmul.f32 %v342, %v399
        %v457 = vmul.f32 %v342, %v404
        %v458 = vmul.f32 %v342, %v409
        %v459 = vmul.f32 %v342, %v414
        %v460 = vmul.f32 %v342, %v419
        %v461 = vmul.f32 %v342, %v424
        %v462 = vmul.f32 %v342, %v429
        %v463 = vmul.f32 %v346, %v354
        %v464 = vmul.f32 %v346, %v359
        %v465 = vmul.f32 %v346, %v364
        %v466 = vmul.f32 %v346, %v369
        %v467 = vmul.f32 %v346, %v374
        %v468 = vmul.f32 %v346, %v379
        %v469 = vmul.f32 %v346, %v384
        %v470 = vmul.f32 %v346, %v389
        %v471 = vmul.f32 %v346, %v394
        %v472 = vmul.f32 %v346, %v399
        %v473 = vmul.f32 %v346, %v404
        %v474 = vmul.f32 %v346, %v409
        %v475 = vmul.f32 %v346, %v414
        %v476 = vmul.f32 %v346, %v419
        %v477 = vmul.f32 %v346, %v424
        %v478 = vmul.f32 %v346, %v429
        %v479 = vmul.f32 %v350, %v354
        %v480 = vmul.f32 %v350, %v359
        %v481 = vmul.f32 %v350, %v364
        %v482 = vmul.f32 %v350, %v369
        %v483 = vmul.f32 %v350, %v374
        %v484 = vmul.f32 %v350, %v379
        %v485 = vmul.f32 %v350, %v384
        %v486 = vmul.f32 %v350, %v389
        %v487 = vmul.f32 %v350, %v394
        %v488 = vmul.f32 %v350, %v399
        %v489 = vmul.f32 %v350, %v404
        %v490 = vmul.f32 %v350, %v409
        %v491 = vmul.f32 %v350, %v414
        %v492 = vmul.f32 %v350, %v419
        %v493 = vmul.f32 %v350, %v424
        %v494 = vmul.f32 %v350, %v429
        %v495 = vlaneseq
        %v496 = vshrl.u32 %v495, 7
        %v497 = vsub.s32 1, %v496
        %v498 = vrot.slane %v299, %v497
        %v499 = vlaneseq
        %v500 = vshrl.u32 %v499, 7
        %v501 = vsub.s32 1, %v500
        %v502 = vrot.slane %v300, %v501
        %v503 = vlaneseq
        %v504 = vshrl.u32 %v503, 7
        %v505 = vsub.s32 1, %v504
        %v506 = vrot.slane %v301, %v505
        %v507 = vlaneseq
        %v508 = vshrl.u32 %v507, 7
        %v509 = vsub.s32 1, %v508
        %v510 = vrot.slane %v302, %v509
        %511 = vset.pattern.permute.xlu0 1
        %512 = vperm.xlu0 %511, %v303
        %v513 = vpop.permute.xlu0 %512
        %515 = vset.pattern.permute.xlu0 1
        %516 = vperm.xlu0 %515, %v304
        %v517 = vpop.permute.xlu0 %516
        %519 = vset.pattern.permute.xlu0 1
        %520 = vperm.xlu0 %519, %v305
        %v521 = vpop.permute.xlu0 %520
        %523 = vset.pattern.permute.xlu0 1
        %524 = vperm.xlu0 %523, %v306
        %v525 = vpop.permute.xlu0 %524
        %527 = vset.pattern.permute.xlu0 1
        %528 = vperm.xlu0 %527, %v307
        %v529 = vpop.permute.xlu0 %528
        %531 = vset.pattern.permute.xlu0 1
        %532 = vperm.xlu0 %531, %v308
        %v533 = vpop.permute.xlu0 %532
        %535 = vset.pattern.permute.xlu0 1
        %536 = vperm.xlu0 %535, %v309
        %v537 = vpop.permute.xlu0 %536
        %539 = vset.pattern.permute.xlu0 1
        %540 = vperm.xlu0 %539, %v310
        %v541 = vpop.permute.xlu0 %540
        %543 = vset.pattern.permute.xlu0 1
        %544 = vperm.xlu0 %543, %v311
        %v545 = vpop.permute.xlu0 %544
        %547 = vset.pattern.permute.xlu0 1
        %548 = vperm.xlu0 %547, %v312
        %v549 = vpop.permute.xlu0 %548
        %551 = vset.pattern.permute.xlu0 1
        %552 = vperm.xlu0 %551, %v313
        %v553 = vpop.permute.xlu0 %552
        %555 = vset.pattern.permute.xlu0 1
        %556 = vperm.xlu0 %555, %v314
        %v557 = vpop.permute.xlu0 %556
        %559 = vset.pattern.permute.xlu0 1
        %560 = vperm.xlu0 %559, %v315
        %v561 = vpop.permute.xlu0 %560
        %563 = vset.pattern.permute.xlu0 1
        %564 = vperm.xlu0 %563, %v316
        %v565 = vpop.permute.xlu0 %564
        %567 = vset.pattern.permute.xlu0 1
        %568 = vperm.xlu0 %567, %v317
        %v569 = vpop.permute.xlu0 %568
        %571 = vset.pattern.permute.xlu0 1
        %572 = vperm.xlu0 %571, %v318
        %v573 = vpop.permute.xlu0 %572
        %v575 = vmul.f32 %v498, %v513
        %v576 = vmul.f32 %v498, %v517
        %v577 = vmul.f32 %v498, %v521
        %v578 = vmul.f32 %v498, %v525
        %v579 = vmul.f32 %v498, %v529
        %v580 = vmul.f32 %v498, %v533
        %v581 = vmul.f32 %v498, %v537
        %v582 = vmul.f32 %v498, %v541
        %v583 = vmul.f32 %v498, %v545
        %v584 = vmul.f32 %v498, %v549
        %v585 = vmul.f32 %v498, %v553
        %v586 = vmul.f32 %v498, %v557
        %v587 = vmul.f32 %v498, %v561
        %v588 = vmul.f32 %v498, %v565
        %v589 = vmul.f32 %v498, %v569
        %v590 = vmul.f32 %v498, %v573
        %v591 = vmul.f32 %v502, %v513
        %v592 = vmul.f32 %v502, %v517
        %v593 = vmul.f32 %v502, %v521
        %v594 = vmul.f32 %v502, %v525
        %v595 = vmul.f32 %v502, %v529
        %v596 = vmul.f32 %v502, %v533
        %v597 = vmul.f32 %v502, %v537
        %v598 = vmul.f32 %v502, %v541
        %v599 = vmul.f32 %v502, %v545
        %v600 = vmul.f32 %v502, %v549
        %v601 = vmul.f32 %v502, %v553
        %v602 = vmul.f32 %v502, %v557
        %v603 = vmul.f32 %v502, %v561
        %v604 = vmul.f32 %v502, %v565
        %v605 = vmul.f32 %v502, %v569
        %v606 = vmul.f32 %v502, %v573
        %v607 = vmul.f32 %v506, %v513
        %v608 = vmul.f32 %v506, %v517
        %v609 = vmul.f32 %v506, %v521
        %v610 = vmul.f32 %v506, %v525
        %v611 = vmul.f32 %v506, %v529
        %v612 = vmul.f32 %v506, %v533
        %v613 = vmul.f32 %v506, %v537
        %v614 = vmul.f32 %v506, %v541
        %v615 = vmul.f32 %v506, %v545
        %v616 = vmul.f32 %v506, %v549
        %v617 = vmul.f32 %v506, %v553
        %v618 = vmul.f32 %v506, %v557
        %v619 = vmul.f32 %v506, %v561
        %v620 = vmul.f32 %v506, %v565
        %v621 = vmul.f32 %v506, %v569
        %v622 = vmul.f32 %v506, %v573
        %v623 = vmul.f32 %v510, %v513
        %v624 = vmul.f32 %v510, %v517
        %v625 = vmul.f32 %v510, %v521
        %v626 = vmul.f32 %v510, %v525
        %v627 = vmul.f32 %v510, %v529
        %v628 = vmul.f32 %v510, %v533
        %v629 = vmul.f32 %v510, %v537
        %v630 = vmul.f32 %v510, %v541
        %v631 = vmul.f32 %v510, %v545
        %v632 = vmul.f32 %v510, %v549
        %v633 = vmul.f32 %v510, %v553
        %v634 = vmul.f32 %v510, %v557
        %v635 = vmul.f32 %v510, %v561
        %v636 = vmul.f32 %v510, %v565
        %v637 = vmul.f32 %v510, %v569
        %v638 = vmul.f32 %v510, %v573
        %v639 = vadd.f32 %v431, %v575
        %v640 = vadd.f32 %v432, %v576
        %v641 = vadd.f32 %v433, %v577
        %v642 = vadd.f32 %v434, %v578
        %v643 = vadd.f32 %v435, %v579
        %v644 = vadd.f32 %v436, %v580
        %v645 = vadd.f32 %v437, %v581
        %v646 = vadd.f32 %v438, %v582
        %v647 = vadd.f32 %v439, %v583
        %v648 = vadd.f32 %v440, %v584
        %v649 = vadd.f32 %v441, %v585
        %v650 = vadd.f32 %v442, %v586
        %v651 = vadd.f32 %v443, %v587
        %v652 = vadd.f32 %v444, %v588
        %v653 = vadd.f32 %v445, %v589
        %v654 = vadd.f32 %v446, %v590
        %v655 = vadd.f32 %v447, %v591
        %v656 = vadd.f32 %v448, %v592
        %v657 = vadd.f32 %v449, %v593
        %v658 = vadd.f32 %v450, %v594
        %v659 = vadd.f32 %v451, %v595
        %v660 = vadd.f32 %v452, %v596
        %v661 = vadd.f32 %v453, %v597
        %v662 = vadd.f32 %v454, %v598
        %v663 = vadd.f32 %v455, %v599
        %v664 = vadd.f32 %v456, %v600
        %v665 = vadd.f32 %v457, %v601
        %v666 = vadd.f32 %v458, %v602
        %v667 = vadd.f32 %v459, %v603
        %v668 = vadd.f32 %v460, %v604
        %v669 = vadd.f32 %v461, %v605
        %v670 = vadd.f32 %v462, %v606
        %v671 = vadd.f32 %v463, %v607
        %v672 = vadd.f32 %v464, %v608
        %v673 = vadd.f32 %v465, %v609
        %v674 = vadd.f32 %v466, %v610
        %v675 = vadd.f32 %v467, %v611
        %v676 = vadd.f32 %v468, %v612
        %v677 = vadd.f32 %v469, %v613
        %v678 = vadd.f32 %v470, %v614
        %v679 = vadd.f32 %v471, %v615
        %v680 = vadd.f32 %v472, %v616
        %v681 = vadd.f32 %v473, %v617
        %v682 = vadd.f32 %v474, %v618
        %v683 = vadd.f32 %v475, %v619
        %v684 = vadd.f32 %v476, %v620
        %v685 = vadd.f32 %v477, %v621
        %v686 = vadd.f32 %v478, %v622
        %v687 = vadd.f32 %v479, %v623
        %v688 = vadd.f32 %v480, %v624
        %v689 = vadd.f32 %v481, %v625
        %v690 = vadd.f32 %v482, %v626
        %v691 = vadd.f32 %v483, %v627
        %v692 = vadd.f32 %v484, %v628
        %v693 = vadd.f32 %v485, %v629
        %v694 = vadd.f32 %v486, %v630
        %v695 = vadd.f32 %v487, %v631
        %v696 = vadd.f32 %v488, %v632
        %v697 = vadd.f32 %v489, %v633
        %v698 = vadd.f32 %v490, %v634
        %v699 = vadd.f32 %v491, %v635
        %v700 = vadd.f32 %v492, %v636
        %v701 = vadd.f32 %v493, %v637
        %v702 = vadd.f32 %v494, %v638
        %v703 = vlaneseq
        %v704 = vshrl.u32 %v703, 7
        %v705 = vsub.s32 2, %v704
        %v706 = vrot.slane %v299, %v705
        %v707 = vlaneseq
        %v708 = vshrl.u32 %v707, 7
        %v709 = vsub.s32 2, %v708
        %v710 = vrot.slane %v300, %v709
        %v711 = vlaneseq
        %v712 = vshrl.u32 %v711, 7
        %v713 = vsub.s32 2, %v712
        %v714 = vrot.slane %v301, %v713
        %v715 = vlaneseq
        %v716 = vshrl.u32 %v715, 7
        %v717 = vsub.s32 2, %v716
        %v718 = vrot.slane %v302, %v717
        %719 = vset.pattern.permute.xlu0 2
        %720 = vperm.xlu0 %719, %v303
        %v721 = vpop.permute.xlu0 %720
        %723 = vset.pattern.permute.xlu0 2
        %724 = vperm.xlu0 %723, %v304
        %v725 = vpop.permute.xlu0 %724
        %727 = vset.pattern.permute.xlu0 2
        %728 = vperm.xlu0 %727, %v305
        %v729 = vpop.permute.xlu0 %728
        %731 = vset.pattern.permute.xlu0 2
        %732 = vperm.xlu0 %731, %v306
        %v733 = vpop.permute.xlu0 %732
        %735 = vset.pattern.permute.xlu0 2
        %736 = vperm.xlu0 %735, %v307
        %v737 = vpop.permute.xlu0 %736
        %739 = vset.pattern.permute.xlu0 2
        %740 = vperm.xlu0 %739, %v308
        %v741 = vpop.permute.xlu0 %740
        %743 = vset.pattern.permute.xlu0 2
        %744 = vperm.xlu0 %743, %v309
        %v745 = vpop.permute.xlu0 %744
        %747 = vset.pattern.permute.xlu0 2
        %748 = vperm.xlu0 %747, %v310
        %v749 = vpop.permute.xlu0 %748
        %751 = vset.pattern.permute.xlu0 2
        %752 = vperm.xlu0 %751, %v311
        %v753 = vpop.permute.xlu0 %752
        %755 = vset.pattern.permute.xlu0 2
        %756 = vperm.xlu0 %755, %v312
        %v757 = vpop.permute.xlu0 %756
        %759 = vset.pattern.permute.xlu0 2
        %760 = vperm.xlu0 %759, %v313
        %v761 = vpop.permute.xlu0 %760
        %763 = vset.pattern.permute.xlu0 2
        %764 = vperm.xlu0 %763, %v314
        %v765 = vpop.permute.xlu0 %764
        %767 = vset.pattern.permute.xlu0 2
        %768 = vperm.xlu0 %767, %v315
        %v769 = vpop.permute.xlu0 %768
        %771 = vset.pattern.permute.xlu0 2
        %772 = vperm.xlu0 %771, %v316
        %v773 = vpop.permute.xlu0 %772
        %775 = vset.pattern.permute.xlu0 2
        %776 = vperm.xlu0 %775, %v317
        %v777 = vpop.permute.xlu0 %776
        %779 = vset.pattern.permute.xlu0 2
        %780 = vperm.xlu0 %779, %v318
        %v781 = vpop.permute.xlu0 %780
        %v783 = vmul.f32 %v706, %v721
        %v784 = vmul.f32 %v706, %v725
        %v785 = vmul.f32 %v706, %v729
        %v786 = vmul.f32 %v706, %v733
        %v787 = vmul.f32 %v706, %v737
        %v788 = vmul.f32 %v706, %v741
        %v789 = vmul.f32 %v706, %v745
        %v790 = vmul.f32 %v706, %v749
        %v791 = vmul.f32 %v706, %v753
        %v792 = vmul.f32 %v706, %v757
        %v793 = vmul.f32 %v706, %v761
        %v794 = vmul.f32 %v706, %v765
        %v795 = vmul.f32 %v706, %v769
        %v796 = vmul.f32 %v706, %v773
        %v797 = vmul.f32 %v706, %v777
        %v798 = vmul.f32 %v706, %v781
        %v799 = vmul.f32 %v710, %v721
        %v800 = vmul.f32 %v710, %v725
        %v801 = vmul.f32 %v710, %v729
        %v802 = vmul.f32 %v710, %v733
        %v803 = vmul.f32 %v710, %v737
        %v804 = vmul.f32 %v710, %v741
        %v805 = vmul.f32 %v710, %v745
        %v806 = vmul.f32 %v710, %v749
        %v807 = vmul.f32 %v710, %v753
        %v808 = vmul.f32 %v710, %v757
        %v809 = vmul.f32 %v710, %v761
        %v810 = vmul.f32 %v710, %v765
        %v811 = vmul.f32 %v710, %v769
        %v812 = vmul.f32 %v710, %v773
        %v813 = vmul.f32 %v710, %v777
        %v814 = vmul.f32 %v710, %v781
        %v815 = vmul.f32 %v714, %v721
        %v816 = vmul.f32 %v714, %v725
        %v817 = vmul.f32 %v714, %v729
        %v818 = vmul.f32 %v714, %v733
        %v819 = vmul.f32 %v714, %v737
        %v820 = vmul.f32 %v714, %v741
        %v821 = vmul.f32 %v714, %v745
        %v822 = vmul.f32 %v714, %v749
        %v823 = vmul.f32 %v714, %v753
        %v824 = vmul.f32 %v714, %v757
        %v825 = vmul.f32 %v714, %v761
        %v826 = vmul.f32 %v714, %v765
        %v827 = vmul.f32 %v714, %v769
        %v828 = vmul.f32 %v714, %v773
        %v829 = vmul.f32 %v714, %v777
        %v830 = vmul.f32 %v714, %v781
        %v831 = vmul.f32 %v718, %v721
        %v832 = vmul.f32 %v718, %v725
        %v833 = vmul.f32 %v718, %v729
        %v834 = vmul.f32 %v718, %v733
        %v835 = vmul.f32 %v718, %v737
        %v836 = vmul.f32 %v718, %v741
        %v837 = vmul.f32 %v718, %v745
        %v838 = vmul.f32 %v718, %v749
        %v839 = vmul.f32 %v718, %v753
        %v840 = vmul.f32 %v718, %v757
        %v841 = vmul.f32 %v718, %v761
        %v842 = vmul.f32 %v718, %v765
        %v843 = vmul.f32 %v718, %v769
        %v844 = vmul.f32 %v718, %v773
        %v845 = vmul.f32 %v718, %v777
        %v846 = vmul.f32 %v718, %v781
        %v847 = vadd.f32 %v639, %v783
        %v848 = vadd.f32 %v640, %v784
        %v849 = vadd.f32 %v641, %v785
        %v850 = vadd.f32 %v642, %v786
        %v851 = vadd.f32 %v643, %v787
        %v852 = vadd.f32 %v644, %v788
        %v853 = vadd.f32 %v645, %v789
        %v854 = vadd.f32 %v646, %v790
        %v855 = vadd.f32 %v647, %v791
        %v856 = vadd.f32 %v648, %v792
        %v857 = vadd.f32 %v649, %v793
        %v858 = vadd.f32 %v650, %v794
        %v859 = vadd.f32 %v651, %v795
        %v860 = vadd.f32 %v652, %v796
        %v861 = vadd.f32 %v653, %v797
        %v862 = vadd.f32 %v654, %v798
        %v863 = vadd.f32 %v655, %v799
        %v864 = vadd.f32 %v656, %v800
        %v865 = vadd.f32 %v657, %v801
        %v866 = vadd.f32 %v658, %v802
        %v867 = vadd.f32 %v659, %v803
        %v868 = vadd.f32 %v660, %v804
        %v869 = vadd.f32 %v661, %v805
        %v870 = vadd.f32 %v662, %v806
        %v871 = vadd.f32 %v663, %v807
        %v872 = vadd.f32 %v664, %v808
        %v873 = vadd.f32 %v665, %v809
        %v874 = vadd.f32 %v666, %v810
        %v875 = vadd.f32 %v667, %v811
        %v876 = vadd.f32 %v668, %v812
        %v877 = vadd.f32 %v669, %v813
        %v878 = vadd.f32 %v670, %v814
        %v879 = vadd.f32 %v671, %v815
        %v880 = vadd.f32 %v672, %v816
        %v881 = vadd.f32 %v673, %v817
        %v882 = vadd.f32 %v674, %v818
        %v883 = vadd.f32 %v675, %v819
        %v884 = vadd.f32 %v676, %v820
        %v885 = vadd.f32 %v677, %v821
        %v886 = vadd.f32 %v678, %v822
        %v887 = vadd.f32 %v679, %v823
        %v888 = vadd.f32 %v680, %v824
        %v889 = vadd.f32 %v681, %v825
        %v890 = vadd.f32 %v682, %v826
        %v891 = vadd.f32 %v683, %v827
        %v892 = vadd.f32 %v684, %v828
        %v893 = vadd.f32 %v685, %v829
        %v894 = vadd.f32 %v686, %v830
        %v895 = vadd.f32 %v687, %v831
        %v896 = vadd.f32 %v688, %v832
        %v897 = vadd.f32 %v689, %v833
        %v898 = vadd.f32 %v690, %v834
        %v899 = vadd.f32 %v691, %v835
        %v900 = vadd.f32 %v692, %v836
        %v901 = vadd.f32 %v693, %v837
        %v902 = vadd.f32 %v694, %v838
        %v903 = vadd.f32 %v695, %v839
        %v904 = vadd.f32 %v696, %v840
        %v905 = vadd.f32 %v697, %v841
        %v906 = vadd.f32 %v698, %v842
        %v907 = vadd.f32 %v699, %v843
        %v908 = vadd.f32 %v700, %v844
        %v909 = vadd.f32 %v701, %v845
        %v910 = vadd.f32 %v702, %v846
        %v911 = vlaneseq
        %v912 = vshrl.u32 %v911, 7
        %v913 = vsub.s32 3, %v912
        %v914 = vrot.slane %v299, %v913
        %v915 = vlaneseq
        %v916 = vshrl.u32 %v915, 7
        %v917 = vsub.s32 3, %v916
        %v918 = vrot.slane %v300, %v917
        %v919 = vlaneseq
        %v920 = vshrl.u32 %v919, 7
        %v921 = vsub.s32 3, %v920
        %v922 = vrot.slane %v301, %v921
        %v923 = vlaneseq
        %v924 = vshrl.u32 %v923, 7
        %v925 = vsub.s32 3, %v924
        %v926 = vrot.slane %v302, %v925
        %927 = vset.pattern.permute.xlu0 3
        %928 = vperm.xlu0 %927, %v303
        %v929 = vpop.permute.xlu0 %928
        %931 = vset.pattern.permute.xlu0 3
        %932 = vperm.xlu0 %931, %v304
        %v933 = vpop.permute.xlu0 %932
        %935 = vset.pattern.permute.xlu0 3
        %936 = vperm.xlu0 %935, %v305
        %v937 = vpop.permute.xlu0 %936
        %939 = vset.pattern.permute.xlu0 3
        %940 = vperm.xlu0 %939, %v306
        %v941 = vpop.permute.xlu0 %940
        %943 = vset.pattern.permute.xlu0 3
        %944 = vperm.xlu0 %943, %v307
        %v945 = vpop.permute.xlu0 %944
        %947 = vset.pattern.permute.xlu0 3
        %948 = vperm.xlu0 %947, %v308
        %v949 = vpop.permute.xlu0 %948
        %951 = vset.pattern.permute.xlu0 3
        %952 = vperm.xlu0 %951, %v309
        %v953 = vpop.permute.xlu0 %952
        %955 = vset.pattern.permute.xlu0 3
        %956 = vperm.xlu0 %955, %v310
        %v957 = vpop.permute.xlu0 %956
        %959 = vset.pattern.permute.xlu0 3
        %960 = vperm.xlu0 %959, %v311
        %v961 = vpop.permute.xlu0 %960
        %963 = vset.pattern.permute.xlu0 3
        %964 = vperm.xlu0 %963, %v312
        %v965 = vpop.permute.xlu0 %964
        %967 = vset.pattern.permute.xlu0 3
        %968 = vperm.xlu0 %967, %v313
        %v969 = vpop.permute.xlu0 %968
        %971 = vset.pattern.permute.xlu0 3
        %972 = vperm.xlu0 %971, %v314
        %v973 = vpop.permute.xlu0 %972
        %975 = vset.pattern.permute.xlu0 3
        %976 = vperm.xlu0 %975, %v315
        %v977 = vpop.permute.xlu0 %976
        %979 = vset.pattern.permute.xlu0 3
        %980 = vperm.xlu0 %979, %v316
        %v981 = vpop.permute.xlu0 %980
        %983 = vset.pattern.permute.xlu0 3
        %984 = vperm.xlu0 %983, %v317
        %v985 = vpop.permute.xlu0 %984
        %987 = vset.pattern.permute.xlu0 3
        %988 = vperm.xlu0 %987, %v318
        %v989 = vpop.permute.xlu0 %988
        %v991 = vmul.f32 %v914, %v929
        %v992 = vmul.f32 %v914, %v933
        %v993 = vmul.f32 %v914, %v937
        %v994 = vmul.f32 %v914, %v941
        %v995 = vmul.f32 %v914, %v945
        %v996 = vmul.f32 %v914, %v949
        %v997 = vmul.f32 %v914, %v953
        %v998 = vmul.f32 %v914, %v957
        %v999 = vmul.f32 %v914, %v961
        %v1000 = vmul.f32 %v914, %v965
        %v1001 = vmul.f32 %v914, %v969
        %v1002 = vmul.f32 %v914, %v973
        %v1003 = vmul.f32 %v914, %v977
        %v1004 = vmul.f32 %v914, %v981
        %v1005 = vmul.f32 %v914, %v985
        %v1006 = vmul.f32 %v914, %v989
        %v1007 = vmul.f32 %v918, %v929
        %v1008 = vmul.f32 %v918, %v933
        %v1009 = vmul.f32 %v918, %v937
        %v1010 = vmul.f32 %v918, %v941
        %v1011 = vmul.f32 %v918, %v945
        %v1012 = vmul.f32 %v918, %v949
        %v1013 = vmul.f32 %v918, %v953
        %v1014 = vmul.f32 %v918, %v957
        %v1015 = vmul.f32 %v918, %v961
        %v1016 = vmul.f32 %v918, %v965
        %v1017 = vmul.f32 %v918, %v969
        %v1018 = vmul.f32 %v918, %v973
        %v1019 = vmul.f32 %v918, %v977
        %v1020 = vmul.f32 %v918, %v981
        %v1021 = vmul.f32 %v918, %v985
        %v1022 = vmul.f32 %v918, %v989
        %v1023 = vmul.f32 %v922, %v929
        %v1024 = vmul.f32 %v922, %v933
        %v1025 = vmul.f32 %v922, %v937
        %v1026 = vmul.f32 %v922, %v941
        %v1027 = vmul.f32 %v922, %v945
        %v1028 = vmul.f32 %v922, %v949
        %v1029 = vmul.f32 %v922, %v953
        %v1030 = vmul.f32 %v922, %v957
        %v1031 = vmul.f32 %v922, %v961
        %v1032 = vmul.f32 %v922, %v965
        %v1033 = vmul.f32 %v922, %v969
        %v1034 = vmul.f32 %v922, %v973
        %v1035 = vmul.f32 %v922, %v977
        %v1036 = vmul.f32 %v922, %v981
        %v1037 = vmul.f32 %v922, %v985
        %v1038 = vmul.f32 %v922, %v989
        %v1039 = vmul.f32 %v926, %v929
        %v1040 = vmul.f32 %v926, %v933
        %v1041 = vmul.f32 %v926, %v937
        %v1042 = vmul.f32 %v926, %v941
        %v1043 = vmul.f32 %v926, %v945
        %v1044 = vmul.f32 %v926, %v949
        %v1045 = vmul.f32 %v926, %v953
        %v1046 = vmul.f32 %v926, %v957
        %v1047 = vmul.f32 %v926, %v961
        %v1048 = vmul.f32 %v926, %v965
        %v1049 = vmul.f32 %v926, %v969
        %v1050 = vmul.f32 %v926, %v973
        %v1051 = vmul.f32 %v926, %v977
        %v1052 = vmul.f32 %v926, %v981
        %v1053 = vmul.f32 %v926, %v985
        %v1054 = vmul.f32 %v926, %v989
        %v1055 = vadd.f32 %v847, %v991
        %v1056 = vadd.f32 %v848, %v992
        %v1057 = vadd.f32 %v849, %v993
        %v1058 = vadd.f32 %v850, %v994
        %v1059 = vadd.f32 %v851, %v995
        %v1060 = vadd.f32 %v852, %v996
        %v1061 = vadd.f32 %v853, %v997
        %v1062 = vadd.f32 %v854, %v998
        %v1063 = vadd.f32 %v855, %v999
        %v1064 = vadd.f32 %v856, %v1000
        %v1065 = vadd.f32 %v857, %v1001
        %v1066 = vadd.f32 %v858, %v1002
        %v1067 = vadd.f32 %v859, %v1003
        %v1068 = vadd.f32 %v860, %v1004
        %v1069 = vadd.f32 %v861, %v1005
        %v1070 = vadd.f32 %v862, %v1006
        %v1071 = vadd.f32 %v863, %v1007
        %v1072 = vadd.f32 %v864, %v1008
        %v1073 = vadd.f32 %v865, %v1009
        %v1074 = vadd.f32 %v866, %v1010
        %v1075 = vadd.f32 %v867, %v1011
        %v1076 = vadd.f32 %v868, %v1012
        %v1077 = vadd.f32 %v869, %v1013
        %v1078 = vadd.f32 %v870, %v1014
        %v1079 = vadd.f32 %v871, %v1015
        %v1080 = vadd.f32 %v872, %v1016
        %v1081 = vadd.f32 %v873, %v1017
        %v1082 = vadd.f32 %v874, %v1018
        %v1083 = vadd.f32 %v875, %v1019
        %v1084 = vadd.f32 %v876, %v1020
        %v1085 = vadd.f32 %v877, %v1021
        %v1086 = vadd.f32 %v878, %v1022
        %v1087 = vadd.f32 %v879, %v1023
        %v1088 = vadd.f32 %v880, %v1024
        %v1089 = vadd.f32 %v881, %v1025
        %v1090 = vadd.f32 %v882, %v1026
        %v1091 = vadd.f32 %v883, %v1027
        %v1092 = vadd.f32 %v884, %v1028
        %v1093 = vadd.f32 %v885, %v1029
        %v1094 = vadd.f32 %v886, %v1030
        %v1095 = vadd.f32 %v887, %v1031
        %v1096 = vadd.f32 %v888, %v1032
        %v1097 = vadd.f32 %v889, %v1033
        %v1098 = vadd.f32 %v890, %v1034
        %v1099 = vadd.f32 %v891, %v1035
        %v1100 = vadd.f32 %v892, %v1036
        %v1101 = vadd.f32 %v893, %v1037
        %v1102 = vadd.f32 %v894, %v1038
        %v1103 = vadd.f32 %v895, %v1039
        %v1104 = vadd.f32 %v896, %v1040
        %v1105 = vadd.f32 %v897, %v1041
        %v1106 = vadd.f32 %v898, %v1042
        %v1107 = vadd.f32 %v899, %v1043
        %v1108 = vadd.f32 %v900, %v1044
        %v1109 = vadd.f32 %v901, %v1045
        %v1110 = vadd.f32 %v902, %v1046
        %v1111 = vadd.f32 %v903, %v1047
        %v1112 = vadd.f32 %v904, %v1048
        %v1113 = vadd.f32 %v905, %v1049
        %v1114 = vadd.f32 %v906, %v1050
        %v1115 = vadd.f32 %v907, %v1051
        %v1116 = vadd.f32 %v908, %v1052
        %v1117 = vadd.f32 %v909, %v1053
        %v1118 = vadd.f32 %v910, %v1054
        %1120 = vset.pattern.permute.xlu0 0
        %1121 = vperm.xlu0 %1120, %v319
        %v1122 = vpop.permute.xlu0 %1121
        %1125 = vset.pattern.permute.xlu0 0
        %1126 = vperm.xlu0 %1125, %v320
        %v1127 = vpop.permute.xlu0 %1126
        %1130 = vset.pattern.permute.xlu0 0
        %1131 = vperm.xlu0 %1130, %v321
        %v1132 = vpop.permute.xlu0 %1131
        %1135 = vset.pattern.permute.xlu0 0
        %1136 = vperm.xlu0 %1135, %v322
        %v1137 = vpop.permute.xlu0 %1136
        %1140 = vset.pattern.permute.xlu0 0
        %1141 = vperm.xlu0 %1140, %v323
        %v1142 = vpop.permute.xlu0 %1141
        %1145 = vset.pattern.permute.xlu0 0
        %1146 = vperm.xlu0 %1145, %v324
        %v1147 = vpop.permute.xlu0 %1146
        %1150 = vset.pattern.permute.xlu0 0
        %1151 = vperm.xlu0 %1150, %v325
        %v1152 = vpop.permute.xlu0 %1151
        %1155 = vset.pattern.permute.xlu0 0
        %1156 = vperm.xlu0 %1155, %v326
        %v1157 = vpop.permute.xlu0 %1156
        %1160 = vset.pattern.permute.xlu0 0
        %1161 = vperm.xlu0 %1160, %v327
        %v1162 = vpop.permute.xlu0 %1161
        %1165 = vset.pattern.permute.xlu0 0
        %1166 = vperm.xlu0 %1165, %v328
        %v1167 = vpop.permute.xlu0 %1166
        %1170 = vset.pattern.permute.xlu0 0
        %1171 = vperm.xlu0 %1170, %v329
        %v1172 = vpop.permute.xlu0 %1171
        %1175 = vset.pattern.permute.xlu0 0
        %1176 = vperm.xlu0 %1175, %v330
        %v1177 = vpop.permute.xlu0 %1176
        %1180 = vset.pattern.permute.xlu0 0
        %1181 = vperm.xlu0 %1180, %v331
        %v1182 = vpop.permute.xlu0 %1181
        %1185 = vset.pattern.permute.xlu0 0
        %1186 = vperm.xlu0 %1185, %v332
        %v1187 = vpop.permute.xlu0 %1186
        %1190 = vset.pattern.permute.xlu0 0
        %1191 = vperm.xlu0 %1190, %v333
        %v1192 = vpop.permute.xlu0 %1191
        %1195 = vset.pattern.permute.xlu0 0
        %1196 = vperm.xlu0 %1195, %v334
        %v1197 = vpop.permute.xlu0 %1196
        %v1199 = vadd.f32 %v1055, %v1122
        %v1200 = vadd.f32 %v1056, %v1127
        %v1201 = vadd.f32 %v1057, %v1132
        %v1202 = vadd.f32 %v1058, %v1137
        %v1203 = vadd.f32 %v1059, %v1142
        %v1204 = vadd.f32 %v1060, %v1147
        %v1205 = vadd.f32 %v1061, %v1152
        %v1206 = vadd.f32 %v1062, %v1157
        %v1207 = vadd.f32 %v1063, %v1162
        %v1208 = vadd.f32 %v1064, %v1167
        %v1209 = vadd.f32 %v1065, %v1172
        %v1210 = vadd.f32 %v1066, %v1177
        %v1211 = vadd.f32 %v1067, %v1182
        %v1212 = vadd.f32 %v1068, %v1187
        %v1213 = vadd.f32 %v1069, %v1192
        %v1214 = vadd.f32 %v1070, %v1197
        %v1215 = vadd.f32 %v1071, %v1122
        %v1216 = vadd.f32 %v1072, %v1127
        %v1217 = vadd.f32 %v1073, %v1132
        %v1218 = vadd.f32 %v1074, %v1137
        %v1219 = vadd.f32 %v1075, %v1142
        %v1220 = vadd.f32 %v1076, %v1147
        %v1221 = vadd.f32 %v1077, %v1152
        %v1222 = vadd.f32 %v1078, %v1157
        %v1223 = vadd.f32 %v1079, %v1162
        %v1224 = vadd.f32 %v1080, %v1167
        %v1225 = vadd.f32 %v1081, %v1172
        %v1226 = vadd.f32 %v1082, %v1177
        %v1227 = vadd.f32 %v1083, %v1182
        %v1228 = vadd.f32 %v1084, %v1187
        %v1229 = vadd.f32 %v1085, %v1192
        %v1230 = vadd.f32 %v1086, %v1197
        %v1231 = vadd.f32 %v1087, %v1122
        %v1232 = vadd.f32 %v1088, %v1127
        %v1233 = vadd.f32 %v1089, %v1132
        %v1234 = vadd.f32 %v1090, %v1137
        %v1235 = vadd.f32 %v1091, %v1142
        %v1236 = vadd.f32 %v1092, %v1147
        %v1237 = vadd.f32 %v1093, %v1152
        %v1238 = vadd.f32 %v1094, %v1157
        %v1239 = vadd.f32 %v1095, %v1162
        %v1240 = vadd.f32 %v1096, %v1167
        %v1241 = vadd.f32 %v1097, %v1172
        %v1242 = vadd.f32 %v1098, %v1177
        %v1243 = vadd.f32 %v1099, %v1182
        %v1244 = vadd.f32 %v1100, %v1187
        %v1245 = vadd.f32 %v1101, %v1192
        %v1246 = vadd.f32 %v1102, %v1197
        %v1247 = vadd.f32 %v1103, %v1122
        %v1248 = vadd.f32 %v1104, %v1127
        %v1249 = vadd.f32 %v1105, %v1132
        %v1250 = vadd.f32 %v1106, %v1137
        %v1251 = vadd.f32 %v1107, %v1142
        %v1252 = vadd.f32 %v1108, %v1147
        %v1253 = vadd.f32 %v1109, %v1152
        %v1254 = vadd.f32 %v1110, %v1157
        %v1255 = vadd.f32 %v1111, %v1162
        %v1256 = vadd.f32 %v1112, %v1167
        %v1257 = vadd.f32 %v1113, %v1172
        %v1258 = vadd.f32 %v1114, %v1177
        %v1259 = vadd.f32 %v1115, %v1182
        %v1260 = vadd.f32 %v1116, %v1187
        %v1261 = vadd.f32 %v1117, %v1192
        %v1262 = vadd.f32 %v1118, %v1197
        %v1263 = vmax.f32 %v1199, 0.0
        %v1264 = vmax.f32 %v1200, 0.0
        %v1265 = vmax.f32 %v1201, 0.0
        %v1266 = vmax.f32 %v1202, 0.0
        %v1267 = vmax.f32 %v1203, 0.0
        %v1268 = vmax.f32 %v1204, 0.0
        %v1269 = vmax.f32 %v1205, 0.0
        %v1270 = vmax.f32 %v1206, 0.0
        %v1271 = vmax.f32 %v1207, 0.0
        %v1272 = vmax.f32 %v1208, 0.0
        %v1273 = vmax.f32 %v1209, 0.0
        %v1274 = vmax.f32 %v1210, 0.0
        %v1275 = vmax.f32 %v1211, 0.0
        %v1276 = vmax.f32 %v1212, 0.0
        %v1277 = vmax.f32 %v1213, 0.0
        %v1278 = vmax.f32 %v1214, 0.0
        %v1279 = vmax.f32 %v1215, 0.0
        %v1280 = vmax.f32 %v1216, 0.0
        %v1281 = vmax.f32 %v1217, 0.0
        %v1282 = vmax.f32 %v1218, 0.0
        %v1283 = vmax.f32 %v1219, 0.0
        %v1284 = vmax.f32 %v1220, 0.0
        %v1285 = vmax.f32 %v1221, 0.0
        %v1286 = vmax.f32 %v1222, 0.0
        %v1287 = vmax.f32 %v1223, 0.0
        %v1288 = vmax.f32 %v1224, 0.0
        %v1289 = vmax.f32 %v1225, 0.0
        %v1290 = vmax.f32 %v1226, 0.0
        %v1291 = vmax.f32 %v1227, 0.0
        %v1292 = vmax.f32 %v1228, 0.0
        %v1293 = vmax.f32 %v1229, 0.0
        %v1294 = vmax.f32 %v1230, 0.0
        %v1295 = vmax.f32 %v1231, 0.0
        %v1296 = vmax.f32 %v1232, 0.0
        %v1297 = vmax.f32 %v1233, 0.0
        %v1298 = vmax.f32 %v1234, 0.0
        %v1299 = vmax.f32 %v1235, 0.0
        %v1300 = vmax.f32 %v1236, 0.0
        %v1301 = vmax.f32 %v1237, 0.0
        %v1302 = vmax.f32 %v1238, 0.0
        %v1303 = vmax.f32 %v1239, 0.0
        %v1304 = vmax.f32 %v1240, 0.0
        %v1305 = vmax.f32 %v1241, 0.0
        %v1306 = vmax.f32 %v1242, 0.0
        %v1307 = vmax.f32 %v1243, 0.0
        %v1308 = vmax.f32 %v1244, 0.0
        %v1309 = vmax.f32 %v1245, 0.0
        %v1310 = vmax.f32 %v1246, 0.0
        %v1311 = vmax.f32 %v1247, 0.0
        %v1312 = vmax.f32 %v1248, 0.0
        %v1313 = vmax.f32 %v1249, 0.0
        %v1314 = vmax.f32 %v1250, 0.0
        %v1315 = vmax.f32 %v1251, 0.0
        %v1316 = vmax.f32 %v1252, 0.0
        %v1317 = vmax.f32 %v1253, 0.0
        %v1318 = vmax.f32 %v1254, 0.0
        %v1319 = vmax.f32 %v1255, 0.0
        %v1320 = vmax.f32 %v1256, 0.0
        %v1321 = vmax.f32 %v1257, 0.0
        %v1322 = vmax.f32 %v1258, 0.0
        %v1323 = vmax.f32 %v1259, 0.0
        %v1324 = vmax.f32 %v1260, 0.0
        %v1325 = vmax.f32 %v1261, 0.0
        %v1326 = vmax.f32 %v1262, 0.0
        %v1327 = vld [vmem:[#allocation2] sm:$0xf]
        %1328 = vadd.xlane.f32.xlu0 %v1263
        %v1329 = vpop.xlane.xlu0 %1328
        %1330 = vadd.xlane.f32.xlu0 %v1264
        %v1331 = vpop.xlane.xlu0 %1330
        %1332 = vadd.xlane.f32.xlu0 %v1265
        %v1333 = vpop.xlane.xlu0 %1332
        %1334 = vadd.xlane.f32.xlu0 %v1266
        %v1335 = vpop.xlane.xlu0 %1334
        %1336 = vadd.xlane.f32.xlu0 %v1267
        %v1337 = vpop.xlane.xlu0 %1336
        %1338 = vadd.xlane.f32.xlu0 %v1268
        %v1339 = vpop.xlane.xlu0 %1338
        %1340 = vadd.xlane.f32.xlu0 %v1269
        %v1341 = vpop.xlane.xlu0 %1340
        %1342 = vadd.xlane.f32.xlu0 %v1270
        %v1343 = vpop.xlane.xlu0 %1342
        %1344 = vadd.xlane.f32.xlu0 %v1271
        %v1345 = vpop.xlane.xlu0 %1344
        %1346 = vadd.xlane.f32.xlu0 %v1272
        %v1347 = vpop.xlane.xlu0 %1346
        %1348 = vadd.xlane.f32.xlu0 %v1273
        %v1349 = vpop.xlane.xlu0 %1348
        %1350 = vadd.xlane.f32.xlu0 %v1274
        %v1351 = vpop.xlane.xlu0 %1350
        %1352 = vadd.xlane.f32.xlu0 %v1275
        %v1353 = vpop.xlane.xlu0 %1352
        %1354 = vadd.xlane.f32.xlu0 %v1276
        %v1355 = vpop.xlane.xlu0 %1354
        %1356 = vadd.xlane.f32.xlu0 %v1277
        %v1357 = vpop.xlane.xlu0 %1356
        %1358 = vadd.xlane.f32.xlu0 %v1278
        %v1359 = vpop.xlane.xlu0 %1358
        %1360 = vadd.xlane.f32.xlu0 %v1279
        %v1361 = vpop.xlane.xlu0 %1360
        %1362 = vadd.xlane.f32.xlu0 %v1280
        %v1363 = vpop.xlane.xlu0 %1362
        %1364 = vadd.xlane.f32.xlu0 %v1281
        %v1365 = vpop.xlane.xlu0 %1364
        %1366 = vadd.xlane.f32.xlu0 %v1282
        %v1367 = vpop.xlane.xlu0 %1366
        %1368 = vadd.xlane.f32.xlu0 %v1283
        %v1369 = vpop.xlane.xlu0 %1368
        %1370 = vadd.xlane.f32.xlu0 %v1284
        %v1371 = vpop.xlane.xlu0 %1370
        %1372 = vadd.xlane.f32.xlu0 %v1285
        %v1373 = vpop.xlane.xlu0 %1372
        %1374 = vadd.xlane.f32.xlu0 %v1286
        %v1375 = vpop.xlane.xlu0 %1374
        %1376 = vadd.xlane.f32.xlu0 %v1287
        %v1377 = vpop.xlane.xlu0 %1376
        %1378 = vadd.xlane.f32.xlu0 %v1288
        %v1379 = vpop.xlane.xlu0 %1378
        %1380 = vadd.xlane.f32.xlu0 %v1289
        %v1381 = vpop.xlane.xlu0 %1380
        %1382 = vadd.xlane.f32.xlu0 %v1290
        %v1383 = vpop.xlane.xlu0 %1382
        %1384 = vadd.xlane.f32.xlu0 %v1291
        %v1385 = vpop.xlane.xlu0 %1384
        %1386 = vadd.xlane.f32.xlu0 %v1292
        %v1387 = vpop.xlane.xlu0 %1386
        %1388 = vadd.xlane.f32.xlu0 %v1293
        %v1389 = vpop.xlane.xlu0 %1388
        %1390 = vadd.xlane.f32.xlu0 %v1294
        %v1391 = vpop.xlane.xlu0 %1390
        %1392 = vadd.xlane.f32.xlu0 %v1295
        %v1393 = vpop.xlane.xlu0 %1392
        %1394 = vadd.xlane.f32.xlu0 %v1296
        %v1395 = vpop.xlane.xlu0 %1394
        %1396 = vadd.xlane.f32.xlu0 %v1297
        %v1397 = vpop.xlane.xlu0 %1396
        %1398 = vadd.xlane.f32.xlu0 %v1298
        %v1399 = vpop.xlane.xlu0 %1398
        %1400 = vadd.xlane.f32.xlu0 %v1299
        %v1401 = vpop.xlane.xlu0 %1400
        %1402 = vadd.xlane.f32.xlu0 %v1300
        %v1403 = vpop.xlane.xlu0 %1402
        %1404 = vadd.xlane.f32.xlu0 %v1301
        %v1405 = vpop.xlane.xlu0 %1404
        %1406 = vadd.xlane.f32.xlu0 %v1302
        %v1407 = vpop.xlane.xlu0 %1406
        %1408 = vadd.xlane.f32.xlu0 %v1303
        %v1409 = vpop.xlane.xlu0 %1408
        %1410 = vadd.xlane.f32.xlu0 %v1304
        %v1411 = vpop.xlane.xlu0 %1410
        %1412 = vadd.xlane.f32.xlu0 %v1305
        %v1413 = vpop.xlane.xlu0 %1412
        %1414 = vadd.xlane.f32.xlu0 %v1306
        %v1415 = vpop.xlane.xlu0 %1414
        %1416 = vadd.xlane.f32.xlu0 %v1307
        %v1417 = vpop.xlane.xlu0 %1416
        %1418 = vadd.xlane.f32.xlu0 %v1308
        %v1419 = vpop.xlane.xlu0 %1418
        %1420 = vadd.xlane.f32.xlu0 %v1309
        %v1421 = vpop.xlane.xlu0 %1420
        %1422 = vadd.xlane.f32.xlu0 %v1310
        %v1423 = vpop.xlane.xlu0 %1422
        %1424 = vadd.xlane.f32.xlu0 %v1311
        %v1425 = vpop.xlane.xlu0 %1424
        %1426 = vadd.xlane.f32.xlu0 %v1312
        %v1427 = vpop.xlane.xlu0 %1426
        %1428 = vadd.xlane.f32.xlu0 %v1313
        %v1429 = vpop.xlane.xlu0 %1428
        %1430 = vadd.xlane.f32.xlu0 %v1314
        %v1431 = vpop.xlane.xlu0 %1430
        %1432 = vadd.xlane.f32.xlu0 %v1315
        %v1433 = vpop.xlane.xlu0 %1432
        %1434 = vadd.xlane.f32.xlu0 %v1316
        %v1435 = vpop.xlane.xlu0 %1434
        %1436 = vadd.xlane.f32.xlu0 %v1317
        %v1437 = vpop.xlane.xlu0 %1436
        %1438 = vadd.xlane.f32.xlu0 %v1318
        %v1439 = vpop.xlane.xlu0 %1438
        %1440 = vadd.xlane.f32.xlu0 %v1319
        %v1441 = vpop.xlane.xlu0 %1440
        %1442 = vadd.xlane.f32.xlu0 %v1320
        %v1443 = vpop.xlane.xlu0 %1442
        %1444 = vadd.xlane.f32.xlu0 %v1321
        %v1445 = vpop.xlane.xlu0 %1444
        %1446 = vadd.xlane.f32.xlu0 %v1322
        %v1447 = vpop.xlane.xlu0 %1446
        %1448 = vadd.xlane.f32.xlu0 %v1323
        %v1449 = vpop.xlane.xlu0 %1448
        %1450 = vadd.xlane.f32.xlu0 %v1324
        %v1451 = vpop.xlane.xlu0 %1450
        %1452 = vadd.xlane.f32.xlu0 %v1325
        %v1453 = vpop.xlane.xlu0 %1452
        %1454 = vadd.xlane.f32.xlu0 %v1326
        %v1455 = vpop.xlane.xlu0 %1454
        %v1520 = vlaneseq
        %v1521 = vand.u32 %v1520, 127
        %v1522 = vlaneseq
        %v1523 = vshrl.u32 %v1522, 7
        %v1524 = vsub.s32 %v1521, %v1523
        %v1525 = vrot.slane %v1329, %v1524
        %v1526 = vadd.s32 %v1521, 4294967288
        %v1527 = vlaneseq
        %v1528 = vshrl.u32 %v1527, 7
        %v1529 = vsub.s32 %v1526, %v1528
        %v1530 = vrot.slane %v1331, %v1529
        %vm1531 = vcmask 130112
        %v1532 = vsel %vm1531, %v1530, %v1525
        %v1533 = vadd.s32 %v1521, 4294967280
        %v1534 = vlaneseq
        %v1535 = vshrl.u32 %v1534, 7
        %v1536 = vsub.s32 %v1533, %v1535
        %v1537 = vrot.slane %v1333, %v1536
        %vm1538 = vcmask 195712
        %v1539 = vsel %vm1538, %v1537, %v1532
        %v1540 = vadd.s32 %v1521, 4294967272
        %v1541 = vlaneseq
        %v1542 = vshrl.u32 %v1541, 7
        %v1543 = vsub.s32 %v1540, %v1542
        %v1544 = vrot.slane %v1335, %v1543
        %vm1545 = vcmask 261312
        %v1546 = vsel %vm1545, %v1544, %v1539
        %v1547 = vadd.s32 %v1521, 4294967264
        %v1548 = vlaneseq
        %v1549 = vshrl.u32 %v1548, 7
        %v1550 = vsub.s32 %v1547, %v1549
        %v1551 = vrot.slane %v1337, %v1550
        %vm1552 = vcmask 326912
        %v1553 = vsel %vm1552, %v1551, %v1546
        %v1554 = vadd.s32 %v1521, 4294967256
        %v1555 = vlaneseq
        %v1556 = vshrl.u32 %v1555, 7
        %v1557 = vsub.s32 %v1554, %v1556
        %v1558 = vrot.slane %v1339, %v1557
        %vm1559 = vcmask 392512
        %v1560 = vsel %vm1559, %v1558, %v1553
        %v1561 = vadd.s32 %v1521, 4294967248
        %v1562 = vlaneseq
        %v1563 = vshrl.u32 %v1562, 7
        %v1564 = vsub.s32 %v1561, %v1563
        %v1565 = vrot.slane %v1341, %v1564
        %vm1566 = vcmask 458112
        %v1567 = vsel %vm1566, %v1565, %v1560
        %v1568 = vadd.s32 %v1521, 4294967240
        %v1569 = vlaneseq
        %v1570 = vshrl.u32 %v1569, 7
        %v1571 = vsub.s32 %v1568, %v1570
        %v1572 = vrot.slane %v1343, %v1571
        %vm1573 = vcmask 523712
        %v1574 = vsel %vm1573, %v1572, %v1567
        %v1575 = vadd.s32 %v1521, 4294967232
        %v1576 = vlaneseq
        %v1577 = vshrl.u32 %v1576, 7
        %v1578 = vsub.s32 %v1575, %v1577
        %v1579 = vrot.slane %v1345, %v1578
        %vm1580 = vcmask 589312
        %v1581 = vsel %vm1580, %v1579, %v1574
        %v1582 = vadd.s32 %v1521, 4294967224
        %v1583 = vlaneseq
        %v1584 = vshrl.u32 %v1583, 7
        %v1585 = vsub.s32 %v1582, %v1584
        %v1586 = vrot.slane %v1347, %v1585
        %vm1587 = vcmask 654912
        %v1588 = vsel %vm1587, %v1586, %v1581
        %v1589 = vadd.s32 %v1521, 4294967216
        %v1590 = vlaneseq
        %v1591 = vshrl.u32 %v1590, 7
        %v1592 = vsub.s32 %v1589, %v1591
        %v1593 = vrot.slane %v1349, %v1592
        %vm1594 = vcmask 720512
        %v1595 = vsel %vm1594, %v1593, %v1588
        %v1596 = vadd.s32 %v1521, 4294967208
        %v1597 = vlaneseq
        %v1598 = vshrl.u32 %v1597, 7
        %v1599 = vsub.s32 %v1596, %v1598
        %v1600 = vrot.slane %v1351, %v1599
        %vm1601 = vcmask 786112
        %v1602 = vsel %vm1601, %v1600, %v1595
        %v1603 = vadd.s32 %v1521, 4294967200
        %v1604 = vlaneseq
        %v1605 = vshrl.u32 %v1604, 7
        %v1606 = vsub.s32 %v1603, %v1605
        %v1607 = vrot.slane %v1353, %v1606
        %vm1608 = vcmask 851712
        %v1609 = vsel %vm1608, %v1607, %v1602
        %v1610 = vadd.s32 %v1521, 4294967192
        %v1611 = vlaneseq
        %v1612 = vshrl.u32 %v1611, 7
        %v1613 = vsub.s32 %v1610, %v1612
        %v1614 = vrot.slane %v1355, %v1613
        %vm1615 = vcmask 917312
        %v1616 = vsel %vm1615, %v1614, %v1609
        %v1617 = vadd.s32 %v1521, 4294967184
        %v1618 = vlaneseq
        %v1619 = vshrl.u32 %v1618, 7
        %v1620 = vsub.s32 %v1617, %v1619
        %v1621 = vrot.slane %v1357, %v1620
        %vm1622 = vcmask 982912
        %v1623 = vsel %vm1622, %v1621, %v1616
        %v1624 = vadd.s32 %v1521, 4294967176
        %v1625 = vlaneseq
        %v1626 = vshrl.u32 %v1625, 7
        %v1627 = vsub.s32 %v1624, %v1626
        %v1628 = vrot.slane %v1359, %v1627
        %vm1629 = vcmask 1048512
        %v1630 = vsel %vm1629, %v1628, %v1623
        %v1631 = vlaneseq
        %v1632 = vshrl.u32 %v1631, 7
        %v1633 = vsub.s32 %v1521, %v1632
        %v1634 = vrot.slane %v1361, %v1633
        %v1635 = vlaneseq
        %v1636 = vshrl.u32 %v1635, 7
        %v1637 = vsub.s32 %v1526, %v1636
        %v1638 = vrot.slane %v1363, %v1637
        %v1639 = vsel %vm1531, %v1638, %v1634
        %v1640 = vlaneseq
        %v1641 = vshrl.u32 %v1640, 7
        %v1642 = vsub.s32 %v1533, %v1641
        %v1643 = vrot.slane %v1365, %v1642
        %v1644 = vsel %vm1538, %v1643, %v1639
        %v1645 = vlaneseq
        %v1646 = vshrl.u32 %v1645, 7
        %v1647 = vsub.s32 %v1540, %v1646
        %v1648 = vrot.slane %v1367, %v1647
        %v1649 = vsel %vm1545, %v1648, %v1644
        %v1650 = vlaneseq
        %v1651 = vshrl.u32 %v1650, 7
        %v1652 = vsub.s32 %v1547, %v1651
        %v1653 = vrot.slane %v1369, %v1652
        %v1654 = vsel %vm1552, %v1653, %v1649
        %v1655 = vlaneseq
        %v1656 = vshrl.u32 %v1655, 7
        %v1657 = vsub.s32 %v1554, %v1656
        %v1658 = vrot.slane %v1371, %v1657
        %v1659 = vsel %vm1559, %v1658, %v1654
        %v1660 = vlaneseq
        %v1661 = vshrl.u32 %v1660, 7
        %v1662 = vsub.s32 %v1561, %v1661
        %v1663 = vrot.slane %v1373, %v1662
        %v1664 = vsel %vm1566, %v1663, %v1659
        %v1665 = vlaneseq
        %v1666 = vshrl.u32 %v1665, 7
        %v1667 = vsub.s32 %v1568, %v1666
        %v1668 = vrot.slane %v1375, %v1667
        %v1669 = vsel %vm1573, %v1668, %v1664
        %v1670 = vlaneseq
        %v1671 = vshrl.u32 %v1670, 7
        %v1672 = vsub.s32 %v1575, %v1671
        %v1673 = vrot.slane %v1377, %v1672
        %v1674 = vsel %vm1580, %v1673, %v1669
        %v1675 = vlaneseq
        %v1676 = vshrl.u32 %v1675, 7
        %v1677 = vsub.s32 %v1582, %v1676
        %v1678 = vrot.slane %v1379, %v1677
        %v1679 = vsel %vm1587, %v1678, %v1674
        %v1680 = vlaneseq
        %v1681 = vshrl.u32 %v1680, 7
        %v1682 = vsub.s32 %v1589, %v1681
        %v1683 = vrot.slane %v1381, %v1682
        %v1684 = vsel %vm1594, %v1683, %v1679
        %v1685 = vlaneseq
        %v1686 = vshrl.u32 %v1685, 7
        %v1687 = vsub.s32 %v1596, %v1686
        %v1688 = vrot.slane %v1383, %v1687
        %v1689 = vsel %vm1601, %v1688, %v1684
        %v1690 = vlaneseq
        %v1691 = vshrl.u32 %v1690, 7
        %v1692 = vsub.s32 %v1603, %v1691
        %v1693 = vrot.slane %v1385, %v1692
        %v1694 = vsel %vm1608, %v1693, %v1689
        %v1695 = vlaneseq
        %v1696 = vshrl.u32 %v1695, 7
        %v1697 = vsub.s32 %v1610, %v1696
        %v1698 = vrot.slane %v1387, %v1697
        %v1699 = vsel %vm1615, %v1698, %v1694
        %v1700 = vlaneseq
        %v1701 = vshrl.u32 %v1700, 7
        %v1702 = vsub.s32 %v1617, %v1701
        %v1703 = vrot.slane %v1389, %v1702
        %v1704 = vsel %vm1622, %v1703, %v1699
        %v1705 = vlaneseq
        %v1706 = vshrl.u32 %v1705, 7
        %v1707 = vsub.s32 %v1624, %v1706
        %v1708 = vrot.slane %v1391, %v1707
        %v1709 = vsel %vm1629, %v1708, %v1704
        %v1710 = vlaneseq
        %v1711 = vshrl.u32 %v1710, 7
        %v1712 = vsub.s32 %v1521, %v1711
        %v1713 = vrot.slane %v1393, %v1712
        %v1714 = vlaneseq
        %v1715 = vshrl.u32 %v1714, 7
        %v1716 = vsub.s32 %v1526, %v1715
        %v1717 = vrot.slane %v1395, %v1716
        %v1718 = vsel %vm1531, %v1717, %v1713
        %v1719 = vlaneseq
        %v1720 = vshrl.u32 %v1719, 7
        %v1721 = vsub.s32 %v1533, %v1720
        %v1722 = vrot.slane %v1397, %v1721
        %v1723 = vsel %vm1538, %v1722, %v1718
        %v1724 = vlaneseq
        %v1725 = vshrl.u32 %v1724, 7
        %v1726 = vsub.s32 %v1540, %v1725
        %v1727 = vrot.slane %v1399, %v1726
        %v1728 = vsel %vm1545, %v1727, %v1723
        %v1729 = vlaneseq
        %v1730 = vshrl.u32 %v1729, 7
        %v1731 = vsub.s32 %v1547, %v1730
        %v1732 = vrot.slane %v1401, %v1731
        %v1733 = vsel %vm1552, %v1732, %v1728
        %v1734 = vlaneseq
        %v1735 = vshrl.u32 %v1734, 7
        %v1736 = vsub.s32 %v1554, %v1735
        %v1737 = vrot.slane %v1403, %v1736
        %v1738 = vsel %vm1559, %v1737, %v1733
        %v1739 = vlaneseq
        %v1740 = vshrl.u32 %v1739, 7
        %v1741 = vsub.s32 %v1561, %v1740
        %v1742 = vrot.slane %v1405, %v1741
        %v1743 = vsel %vm1566, %v1742, %v1738
        %v1744 = vlaneseq
        %v1745 = vshrl.u32 %v1744, 7
        %v1746 = vsub.s32 %v1568, %v1745
        %v1747 = vrot.slane %v1407, %v1746
        %v1748 = vsel %vm1573, %v1747, %v1743
        %v1749 = vlaneseq
        %v1750 = vshrl.u32 %v1749, 7
        %v1751 = vsub.s32 %v1575, %v1750
        %v1752 = vrot.slane %v1409, %v1751
        %v1753 = vsel %vm1580, %v1752, %v1748
        %v1754 = vlaneseq
        %v1755 = vshrl.u32 %v1754, 7
        %v1756 = vsub.s32 %v1582, %v1755
        %v1757 = vrot.slane %v1411, %v1756
        %v1758 = vsel %vm1587, %v1757, %v1753
        %v1759 = vlaneseq
        %v1760 = vshrl.u32 %v1759, 7
        %v1761 = vsub.s32 %v1589, %v1760
        %v1762 = vrot.slane %v1413, %v1761
        %v1763 = vsel %vm1594, %v1762, %v1758
        %v1764 = vlaneseq
        %v1765 = vshrl.u32 %v1764, 7
        %v1766 = vsub.s32 %v1596, %v1765
        %v1767 = vrot.slane %v1415, %v1766
        %v1768 = vsel %vm1601, %v1767, %v1763
        %v1769 = vlaneseq
        %v1770 = vshrl.u32 %v1769, 7
        %v1771 = vsub.s32 %v1603, %v1770
        %v1772 = vrot.slane %v1417, %v1771
        %v1773 = vsel %vm1608, %v1772, %v1768
        %v1774 = vlaneseq
        %v1775 = vshrl.u32 %v1774, 7
        %v1776 = vsub.s32 %v1610, %v1775
        %v1777 = vrot.slane %v1419, %v1776
        %v1778 = vsel %vm1615, %v1777, %v1773
        %v1779 = vlaneseq
        %v1780 = vshrl.u32 %v1779, 7
        %v1781 = vsub.s32 %v1617, %v1780
        %v1782 = vrot.slane %v1421, %v1781
        %v1783 = vsel %vm1622, %v1782, %v1778
        %v1784 = vlaneseq
        %v1785 = vshrl.u32 %v1784, 7
        %v1786 = vsub.s32 %v1624, %v1785
        %v1787 = vrot.slane %v1423, %v1786
        %v1788 = vsel %vm1629, %v1787, %v1783
        %v1789 = vlaneseq
        %v1790 = vshrl.u32 %v1789, 7
        %v1791 = vsub.s32 %v1521, %v1790
        %v1792 = vrot.slane %v1425, %v1791
        %v1793 = vlaneseq
        %v1794 = vshrl.u32 %v1793, 7
        %v1795 = vsub.s32 %v1526, %v1794
        %v1796 = vrot.slane %v1427, %v1795
        %v1797 = vsel %vm1531, %v1796, %v1792
        %v1798 = vlaneseq
        %v1799 = vshrl.u32 %v1798, 7
        %v1800 = vsub.s32 %v1533, %v1799
        %v1801 = vrot.slane %v1429, %v1800
        %v1802 = vsel %vm1538, %v1801, %v1797
        %v1803 = vlaneseq
        %v1804 = vshrl.u32 %v1803, 7
        %v1805 = vsub.s32 %v1540, %v1804
        %v1806 = vrot.slane %v1431, %v1805
        %v1807 = vsel %vm1545, %v1806, %v1802
        %v1808 = vlaneseq
        %v1809 = vshrl.u32 %v1808, 7
        %v1810 = vsub.s32 %v1547, %v1809
        %v1811 = vrot.slane %v1433, %v1810
        %v1812 = vsel %vm1552, %v1811, %v1807
        %v1813 = vlaneseq
        %v1814 = vshrl.u32 %v1813, 7
        %v1815 = vsub.s32 %v1554, %v1814
        %v1816 = vrot.slane %v1435, %v1815
        %v1817 = vsel %vm1559, %v1816, %v1812
        %v1818 = vlaneseq
        %v1819 = vshrl.u32 %v1818, 7
        %v1820 = vsub.s32 %v1561, %v1819
        %v1821 = vrot.slane %v1437, %v1820
        %v1822 = vsel %vm1566, %v1821, %v1817
        %v1823 = vlaneseq
        %v1824 = vshrl.u32 %v1823, 7
        %v1825 = vsub.s32 %v1568, %v1824
        %v1826 = vrot.slane %v1439, %v1825
        %v1827 = vsel %vm1573, %v1826, %v1822
        %v1828 = vlaneseq
        %v1829 = vshrl.u32 %v1828, 7
        %v1830 = vsub.s32 %v1575, %v1829
        %v1831 = vrot.slane %v1441, %v1830
        %v1832 = vsel %vm1580, %v1831, %v1827
        %v1833 = vlaneseq
        %v1834 = vshrl.u32 %v1833, 7
        %v1835 = vsub.s32 %v1582, %v1834
        %v1836 = vrot.slane %v1443, %v1835
        %v1837 = vsel %vm1587, %v1836, %v1832
        %v1838 = vlaneseq
        %v1839 = vshrl.u32 %v1838, 7
        %v1840 = vsub.s32 %v1589, %v1839
        %v1841 = vrot.slane %v1445, %v1840
        %v1842 = vsel %vm1594, %v1841, %v1837
        %v1843 = vlaneseq
        %v1844 = vshrl.u32 %v1843, 7
        %v1845 = vsub.s32 %v1596, %v1844
        %v1846 = vrot.slane %v1447, %v1845
        %v1847 = vsel %vm1601, %v1846, %v1842
        %v1848 = vlaneseq
        %v1849 = vshrl.u32 %v1848, 7
        %v1850 = vsub.s32 %v1603, %v1849
        %v1851 = vrot.slane %v1449, %v1850
        %v1852 = vsel %vm1608, %v1851, %v1847
        %v1853 = vlaneseq
        %v1854 = vshrl.u32 %v1853, 7
        %v1855 = vsub.s32 %v1610, %v1854
        %v1856 = vrot.slane %v1451, %v1855
        %v1857 = vsel %vm1615, %v1856, %v1852
        %v1858 = vlaneseq
        %v1859 = vshrl.u32 %v1858, 7
        %v1860 = vsub.s32 %v1617, %v1859
        %v1861 = vrot.slane %v1453, %v1860
        %v1862 = vsel %vm1622, %v1861, %v1857
        %v1863 = vlaneseq
        %v1864 = vshrl.u32 %v1863, 7
        %v1865 = vsub.s32 %v1624, %v1864
        %v1866 = vrot.slane %v1455, %v1865
        %v1867 = vsel %vm1629, %v1866, %v1862
        %vm1868 = vcmask 1041409
        %v1869 = vsel %vm1868, %v1709, %v1630
        %vm1870 = vcmask 1042434
        %v1871 = vsel %vm1870, %v1788, %v1869
        %vm1872 = vcmask 1043459
        %v1873 = vsel %vm1872, %v1867, %v1871
        %v1875 = vadd.f32 %v1327, %v1873
        %1876 = vst [vmem:[#allocation2] sm:$0xf] %v1875
        %p1877 = scmp.eq.s32.totalorder %s24, 1
        // Predicated region
        $region86: #{tpu_custom_call.1} parent=76 // pred_check
          %p1878 = pneg %p1877
        $region87: #{tpu_custom_call.1} parent=76 // pred_check_branch
          %1880 = sbr.rel (%p1878) target = $region89
        $region88: #{tpu_custom_call.1} parent=76 // pred_region
          %v1881 = vld [vmem:[#allocation2] sm:$0xf]
          %v1882 = vld [vmem:[%s3] sm:$0xff]
          %v1883 = vld [vmem:[%s3 + $0x8] sm:$0xff]
          %v1884 = vld [vmem:[%s3 + $0x10] sm:$0xff]
          %v1885 = vld [vmem:[%s3 + $0x18] sm:$0xff]
          %v1886 = vld [vmem:[%s3 + $0x20] sm:$0xff]
          %v1887 = vld [vmem:[%s3 + $0x28] sm:$0xff]
          %v1888 = vld [vmem:[%s3 + $0x30] sm:$0xff]
          %v1889 = vld [vmem:[%s3 + $0x38] sm:$0xff]
          %v1890 = vld [vmem:[%s3 + $0x40] sm:$0xff]
          %v1891 = vld [vmem:[%s3 + $0x48] sm:$0xff]
          %v1892 = vld [vmem:[%s3 + $0x50] sm:$0xff]
          %v1893 = vld [vmem:[%s3 + $0x58] sm:$0xff]
          %v1894 = vld [vmem:[%s3 + $0x60] sm:$0xff]
          %v1895 = vld [vmem:[%s3 + $0x68] sm:$0xff]
          %v1896 = vld [vmem:[%s3 + $0x70] sm:$0xff]
          %v1897 = vld [vmem:[%s3 + $0x78] sm:$0xff]
          %v1898 = vld [vmem:[%s4] sm:$0x1]
          %v1900 = vlaneseq
          %v1901 = vshrl.u32 %v1900, 7
          %v1902 = vsub.s32 0, %v1901
          %v1903 = vrot.slane %v1898, %v1902
          %1905 = vmatprep.subr.mxu0 0.0
          %1906 = vmatpush1.msra.mxu0 %v1882
          %1907 = vmatprep.subr.mxu0 0.0
          %1908 = vmatpush1.msra.mxu0 %v1883
          %1909 = vmatprep.subr.mxu0 0.0
          %1910 = vmatpush1.msra.mxu0 %v1884
          %1911 = vmatprep.subr.mxu0 0.0
          %1912 = vmatpush1.msra.mxu0 %v1885
          %1913 = vmatprep.subr.mxu0 0.0
          %1914 = vmatpush1.msra.mxu0 %v1886
          %1915 = vmatprep.subr.mxu0 0.0
          %1916 = vmatpush1.msra.mxu0 %v1887
          %1917 = vmatprep.subr.mxu0 0.0
          %1918 = vmatpush1.msra.mxu0 %v1888
          %1919 = vmatprep.subr.mxu0 0.0
          %1920 = vmatpush1.msra.mxu0 %v1889
          %1921 = vmatprep.subr.mxu0 0.0
          %1922 = vmatpush1.msra.mxu0 %v1890
          %1923 = vmatprep.subr.mxu0 0.0
          %1924 = vmatpush1.msra.mxu0 %v1891
          %1925 = vmatprep.subr.mxu0 0.0
          %1926 = vmatpush1.msra.mxu0 %v1892
          %1927 = vmatprep.subr.mxu0 0.0
          %1928 = vmatpush1.msra.mxu0 %v1893
          %1929 = vmatprep.subr.mxu0 0.0
          %1930 = vmatpush1.msra.mxu0 %v1894
          %1931 = vmatprep.subr.mxu0 0.0
          %1932 = vmatpush1.msra.mxu0 %v1895
          %1933 = vmatprep.subr.mxu0 0.0
          %1934 = vmatpush1.msra.mxu0 %v1896
          %1935 = vmatprep.subr.mxu0 0.0
          %1936 = vmatpush1.msra.mxu0 %v1897
          %1937 = vmatprep.subr.mxu0 0.0
          %1938 = vmatpush1.msra.mxu0 0.0
          %1939 = vmatprep.subr.mxu0 0.0
          %1940 = vmatpush1.msra.mxu0 0.0
          %1941 = vmatprep.subr.mxu0 0.0
          %1942 = vmatpush1.msra.mxu0 0.0
          %1943 = vmatprep.subr.mxu0 0.0
          %1944 = vmatpush1.msra.mxu0 0.0
          %1945 = vmatprep.subr.mxu0 0.0
          %1946 = vmatpush1.msra.mxu0 0.0
          %1947 = vmatprep.subr.mxu0 0.0
          %1948 = vmatpush1.msra.mxu0 0.0
          %1949 = vmatprep.subr.mxu0 0.0
          %1950 = vmatpush1.msra.mxu0 0.0
          %1951 = vmatprep.subr.mxu0 0.0
          %1952 = vmatpush1.msra.mxu0 0.0
          %1953 = vmatprep.subr.mxu0 0.0
          %1954 = vmatpush1.msra.mxu0 0.0
          %1955 = vmatprep.subr.mxu0 0.0
          %1956 = vmatpush1.msra.mxu0 0.0
          %1957 = vmatprep.subr.mxu0 0.0
          %1958 = vmatpush1.msra.mxu0 0.0
          %1959 = vmatprep.subr.mxu0 0.0
          %1960 = vmatpush1.msra.mxu0 0.0
          %1961 = vmatprep.subr.mxu0 0.0
          %1962 = vmatpush1.msra.mxu0 0.0
          %1963 = vmatprep.subr.mxu0 0.0
          %1964 = vmatpush1.msra.mxu0 0.0
          %1965 = vmatprep.subr.mxu0 0.0
          %1966 = vmatpush1.msra.mxu0 0.0
          %1967 = vmatprep.subr.mxu0 0.0
          %1968 = vmatpush1.msra.mxu0 0.0
          %1969 = vmatprep.mubr.f32.mxu0 0.0
          %1970 = vmatmul.mubr.f32.gmra.mrb[0].mxu0 %v1881
          %v1971 = vpop.f32.mrb[0].mxu0
          %v1972 = vadd.f32 %v1903, %v1971
          %v1973 = vpop.f32.mrb[0].mxu0
          %1974 = vdwg.mxu0
          %1975 = vst [vmem:[%s292] sm:$0xf] %v1972
        $region89: #{tpu_custom_call.1} parent=76 // pred_fallthru
          _
        %s1976 = sand.u32 %s151, 1
        %s1977 = scalar_lea.sflag [#allocation5], %s1976
        %s1978 = sand.u32 %s151, 1
        %s1979 = smul.addr %s1978, 4
        %s1980 = scalar_lea.vmem [#allocation4], %s1979
        // Predicated region
        $region90: #{tpu_custom_call.1} parent=76 // pred_check
          %p1981 = pneg %p161
        $region91: #{tpu_custom_call.1} parent=76 // pred_check_branch
          %1983 = sbr.rel (%p1981) target = $region93
        $region92: #{tpu_custom_call.1} parent=76 // pred_region
          %s1985 = ssub.s32 64, 64
          %1986 = vsyncadd %s1977, %s1985
          %s1987 = smul.addr %s23, 64
          %s1988 = scalar_lea.hbm %s5, %s1987
          %s1990 = sshll.u32 %s1980, 4
          %s1991 = int_to_ptr.vmem [resolvable:$true] %s1990
          %1993 = dma.vmem_to_hbm [thread:$0]  %s1991, 64, %s1988, %s1977
        $region93: #{tpu_custom_call.1} parent=76 // pred_fallthru
          _
      $region77: #{tpu_custom_call.1} parent=5 // pred_fallthru
        _
      %p1994 = scmp.le.s32.totalorder 2, %s14
      // Predicated region
      $region94: #{tpu_custom_call.1} parent=5 // pred_check
        %p1995 = pneg %p1994
      $region95: #{tpu_custom_call.1} parent=5 // pred_check_branch
        %1997 = sbr.rel (%p1995) target = $region97
      $region96: #{tpu_custom_call.1} parent=5 // pred_region
        %s1998 = ssub.s32 %s14, 2
        // Predicated region
        $region98: #{tpu_custom_call.1} parent=96 // pred_check
          %p1999 = pneg %p167
        $region99: #{tpu_custom_call.1} parent=96 // pred_check_branch
          %2001 = sbr.rel (%p1999) target = $region101
        $region100: #{tpu_custom_call.1} parent=96 // pred_region
          %s2002 = sand.u32 %s152, 1
          %s2003 = scalar_lea.sflag [#allocation5], %s2002
          %s2004 = sand.u32 %s152, 1
          %s2005 = smul.addr %s2004, 4
          %s2006 = scalar_lea.vmem [#allocation4], %s2005
          %2007 = dma.done %s2003, 64
        $region101: #{tpu_custom_call.1} parent=96 // pred_fallthru
          _
      $region97: #{tpu_custom_call.1} parent=5 // pred_fallthru
        _
    $region6: #{tpu_custom_call.1} parent=1 // loop_footer
      %s18 = sadd.s32 1, %s14
    $region7: #{tpu_custom_call.1} parent=1 // loop_footer_branch
      %13 = sbr.rel target = $region3
    $region8: #{tpu_custom_call.1} parent=1 // loop_exit
      _
    %2008 = vsyncpa [#allocation5], 1
    %s2009 = scalar_lea.sflag [#allocation5], 1
    %2010 = vsyncpa %s2009, 1

</llo_original>
